<compile_context>
chip_gen: v7x
topology: tpu7x:2x2x1
jax: 0.10.0
libtpu: 0.0.40
codegen_flags: <defaults>
</compile_context>

<pallas_src>
import jax
import jax.numpy as jnp
from jax.experimental import pallas as pl
from jax.experimental.pallas import tpu as pltpu


# --------------------------------------------------------------------------
# Helpers
# --------------------------------------------------------------------------
def _row_block(n, candidates=(512, 256, 128, 64, 32, 16, 8)):
    """Largest candidate that evenly divides n (falls back to n itself).

    Note (v7x): prefer >= 2 row blocks when N permits so the "parallel" grid axis can
    actually shard across both TensorCores; at the demo sizes grid=(1,) is fine.
    """
    for c in candidates:
        if c <= n and n % c == 0:
            return c
    return n


def _time_block(t, candidates=(64, 32, 16, 8, 4, 2, 1)):
    """Largest candidate dividing T.  Always succeeds (1 divides everything), so a
    prime T degrades to a per-step grid instead of a whole-T VMEM block."""
    for c in candidates:
        if c <= t and t % c == 0:
            return c
    return 1


# --------------------------------------------------------------------------
# Pallas kernels
# --------------------------------------------------------------------------
def proj_single_kernel(x_ref, w_ref, b_ref, o_ref):
    """o = x @ w + b  (bf16 MXU inputs, f32 accumulate, cast to o dtype).

    Used for the layer-0 hoisted input projection: w is the fused (D_in, 8H) weight
    holding [W_ih_fwd | W_ih_bwd], so one wide matmul serves both directions.
    """
    x = x_ref[...].astype(jnp.bfloat16)
    acc = jnp.dot(x, w_ref[...], preferred_element_type=jnp.float32)
    o_ref[...] = (acc + b_ref[...]).astype(o_ref.dtype)


def proj_pair_kernel(a_ref, b_in_ref, wa_ref, wb_ref, bias_ref, o_ref):
    """o = a @ wa + b @ wb + bias.

    Consumes the two direction halves (y_fwd, y_bwd) of the previous BiLSTM layer
    directly, so no (T, B, 2H) concat is ever materialized.  Used for layer-1+ gate
    projections (o = bf16 gates) and for the final Linear (o = f32 logits).
    """
    acc = jnp.dot(a_ref[...].astype(jnp.bfloat16), wa_ref[...],
                  preferred_element_type=jnp.float32)
    acc = acc + jnp.dot(b_in_ref[...].astype(jnp.bfloat16), wb_ref[...],
                        preferred_element_type=jnp.float32)
    o_ref[...] = (acc + bias_ref[...]).astype(o_ref.dtype)


def bilstm_kernel(gxf_ref, gxb_ref, whh_ref, yf_ref, yb_ref, h_sc, c_sc):
    """Fused forward+backward LSTM recurrence over one time block per grid step.

    gxf_ref : (T_BLK, B, 4H) bf16  fwd input gates for time block t
    gxb_ref : (T_BLK, B, 4H) bf16  bwd input gates for time block nT-1-t
    whh_ref : (H, 8H)        bf16  [W_hh_fwd | W_hh_bwd]
    yf_ref  : (T_BLK, B, H)  bf16  fwd hidden states for time block t
    yb_ref  : (T_BLK, B, H)  bf16  bwd hidden states for time block nT-1-t
    h_sc,c_sc : (2B, H) f32 carries (rows 0:B fwd, B:2B bwd), persist across the grid.
    """
    t = pl.program_id(0)
    t_blk, B, G4 = gxf_ref.shape
    H = yf_ref.shape[-1]

    @pl.when(t == 0)
    def _():
        h_sc[...] = jnp.zeros_like(h_sc)
        c_sc[...] = jnp.zeros_like(c_sc)

    whh = whh_ref[...]  # held in vregs across the unrolled loop

    def gate_math(gates, c_prev):
        # NOTE: if H is not a multiple of 128 these per-gate slices are sub-lane-tile
        # (XLU relayouts); padding H / reordering the gate axis would fix that.
        i = jax.nn.sigmoid(gates[:, 0 * H:1 * H])
        f = jax.nn.sigmoid(gates[:, 1 * H:2 * H])
        g = jnp.tanh(gates[:, 2 * H:3 * H])
        o = jax.nn.sigmoid(gates[:, 3 * H:4 * H])
        c_new = f * c_prev + i * g
        h_new = o * jnp.tanh(c_new)
        return h_new, c_new

    outs_f = [None] * t_blk
    outs_b = [None] * t_blk

    # Short fixed trip count -> trace-time unroll so the LLO scheduler sees both
    # directions' work in every bundle.  (For very large T_BLK switch to fori_loop.)
    for k in range(t_blk):
        kb = t_blk - 1 - k  # bwd direction walks its block in descending local time

        # One batched MXU op for both directions: (2B, H) @ (H, 8H).
        hh = jnp.dot(h_sc[...].astype(jnp.bfloat16), whh,
                     preferred_element_type=jnp.float32)           # (2B, 8H)

        gates_f = gxf_ref[k].astype(jnp.float32) + hh[0:B, 0:G4]
        gates_b = gxb_ref[kb].astype(jnp.float32) + hh[B:2 * B, G4:2 * G4]

        hf_new, cf_new = gate_math(gates_f, c_sc[0:B, :])
        hb_new, cb_new = gate_math(gates_b, c_sc[B:2 * B, :])

        h_sc[0:B, :] = hf_new
        h_sc[B:2 * B, :] = hb_new
        c_sc[0:B, :] = cf_new
        c_sc[B:2 * B, :] = cb_new

        outs_f[k] = hf_new.astype(yf_ref.dtype)
        outs_b[kb] = hb_new.astype(yb_ref.dtype)

    # One contiguous (T_BLK, B, H) store per direction per grid step.
    yf_ref[...] = jnp.stack(outs_f)
    yb_ref[...] = jnp.stack(outs_b)


# --------------------------------------------------------------------------
# Pallas wrappers
# --------------------------------------------------------------------------
def proj_single(x2d, w, b, out_dtype):
    """(N, D) @ (D, G) + (1, G) -> (N, G), row-tiled 'parallel' grid."""
    N, D = x2d.shape
    G = w.shape[1]
    rb = _row_block(N)
    return pl.pallas_call(
        proj_single_kernel,
        out_shape=jax.ShapeDtypeStruct((N, G), out_dtype),
        grid_spec=pltpu.PrefetchScalarGridSpec(
            num_scalar_prefetch=0,
            grid=(N // rb,),
            in_specs=[
                pl.BlockSpec((rb, D), lambda i: (i, 0)),
                pl.BlockSpec((D, G), lambda i: (0, 0)),
                pl.BlockSpec((1, G), lambda i: (0, 0)),
            ],
            out_specs=pl.BlockSpec((rb, G), lambda i: (i, 0)),
        ),
        compiler_params=pltpu.CompilerParams(dimension_semantics=("parallel",)),
    )(x2d, w, b)


def proj_pair(a2d, b2d, wa, wb, bias, out_dtype):
    """(N, H) @ (H, G) + (N, H) @ (H, G) + (1, G) -> (N, G), row-tiled."""
    N, H = a2d.shape
    G = wa.shape[1]
    rb = _row_block(N)
    return pl.pallas_call(
        proj_pair_kernel,
        out_shape=jax.ShapeDtypeStruct((N, G), out_dtype),
        grid_spec=pltpu.PrefetchScalarGridSpec(
            num_scalar_prefetch=0,
            grid=(N // rb,),
            in_specs=[
                pl.BlockSpec((rb, H), lambda i: (i, 0)),
                pl.BlockSpec((rb, H), lambda i: (i, 0)),
                pl.BlockSpec((H, G), lambda i: (0, 0)),
                pl.BlockSpec((H, G), lambda i: (0, 0)),
                pl.BlockSpec((1, G), lambda i: (0, 0)),
            ],
            out_specs=pl.BlockSpec((rb, G), lambda i: (i, 0)),
        ),
        compiler_params=pltpu.CompilerParams(dimension_semantics=("parallel",)),
    )(a2d, b2d, wa, wb, bias)


def bilstm_recurrence(gates, whh, t_blk):
    """Fused bidirectional recurrence.

    gates : (T, B, 8H) bf16  hoisted input gates, columns [fwd 4H | bwd 4H]
    whh   : (H, 8H)    bf16  [W_hh_fwd | W_hh_bwd]
    Returns (y_fwd, y_bwd), each (T, B, H) bf16, with time-blocked output writeback.
    """
    T, B, G8 = gates.shape
    G4 = G8 // 2
    H = whh.shape[0]
    nT = T // t_blk

    # Advisory cost hint for the XLA scheduler around this long serial kernel.
    cost = pl.CostEstimate(
        flops=int(2 * T * (2 * B) * H * G8 + 10 * T * (2 * B) * G4),
        transcendentals=int(T * (2 * B) * (G4 + H)),
        bytes_accessed=int(gates.size * 2 + 2 * T * B * H * 2 + whh.size * 2),
    )

    return pl.pallas_call(
        bilstm_kernel,
        out_shape=(
            jax.ShapeDtypeStruct((T, B, H), jnp.bfloat16),
            jax.ShapeDtypeStruct((T, B, H), jnp.bfloat16),
        ),
        grid_spec=pltpu.PrefetchScalarGridSpec(
            num_scalar_prefetch=0,
            grid=(nT,),
            in_specs=[
                # Two views of the SAME gates array: fwd 4H columns at time block t,
                # bwd 4H columns at time block nT-1-t.
                pl.BlockSpec((t_blk, B, G4), lambda t: (t, 0, 0)),
                pl.BlockSpec((t_blk, B, G4), lambda t: (nT - 1 - t, 0, 1)),
                pl.BlockSpec((H, G8), lambda t: (0, 0)),
            ],
            # Time-blocked outputs: VMEM stays O(T_BLK) and writeback pipelines with
            # compute (no full-T resident buffer).
            out_specs=(
                pl.BlockSpec((t_blk, B, H), lambda t: (t, 0, 0)),
                pl.BlockSpec((t_blk, B, H), lambda t: (nT - 1 - t, 0, 0)),
            ),
            scratch_shapes=[
                pltpu.VMEM((2 * B, H), jnp.float32),   # h carries [fwd; bwd]
                pltpu.VMEM((2 * B, H), jnp.float32),   # c carries [fwd; bwd]
            ],
        ),
        compiler_params=pltpu.CompilerParams(
            dimension_semantics=("arbitrary",),        # recurrence: sequential grid
        ),
        cost_estimate=cost,
    )(gates, gates, whh)


# --------------------------------------------------------------------------
# Parameter init (PyTorch-compatible math; weights stored transposed & fused, bf16)
# --------------------------------------------------------------------------
def init_params(key, input_dim, hidden_dim, output_dim, num_layers=2):
    H = hidden_dim
    k_lstm = 1.0 / float(H) ** 0.5

    def u(k, shape, bound):
        return jax.random.uniform(k, shape, jnp.float32, -bound, bound)

    params = {"lstm": []}
    for layer in range(num_layers):
        d_in = input_dim if layer == 0 else 2 * H
        key, k1, k2, k3, k4, k5, k6, k7, k8 = jax.random.split(key, 9)
        # PyTorch: W_ih [4H, d_in], W_hh [4H, H]; stored transposed here, gate order
        # (i, f, g, o) kept consistent between projection and recurrence.
        w_ih_f = u(k1, (d_in, 4 * H), k_lstm)
        w_ih_b = u(k2, (d_in, 4 * H), k_lstm)
        w_hh_f = u(k3, (H, 4 * H), k_lstm)
        w_hh_b = u(k4, (H, 4 * H), k_lstm)
        b_f = u(k5, (4 * H,), k_lstm) + u(k6, (4 * H,), k_lstm)   # b_ih + b_hh
        b_b = u(k7, (4 * H,), k_lstm) + u(k8, (4 * H,), k_lstm)

        w_ih_cat = jnp.concatenate([w_ih_f, w_ih_b], axis=1).astype(jnp.bfloat16)
        lp = {
            "whh": jnp.concatenate([w_hh_f, w_hh_b], axis=1).astype(jnp.bfloat16),
            "b": jnp.concatenate([b_f, b_b])[None, :],            # (1, 8H) f32
        }
        if layer == 0:
            lp["w_ih"] = w_ih_cat                                 # (d_in, 8H)
        else:
            # Split so the layer consumes y_fwd / y_bwd directly (no concat).
            lp["w_ih_top"] = w_ih_cat[:H]                         # (H, 8H)
            lp["w_ih_bot"] = w_ih_cat[H:]                         # (H, 8H)
        params["lstm"].append(lp)

    key, kw, kb = jax.random.split(key, 3)
    k_fc = 1.0 / float(2 * H) ** 0.5
    fc_w = u(kw, (2 * H, output_dim), k_fc).astype(jnp.bfloat16)
    params["fc_w_top"] = fc_w[:H]
    params["fc_w_bot"] = fc_w[H:]
    params["fc_b"] = u(kb, (1, output_dim), k_fc)
    return params


# --------------------------------------------------------------------------
# Forward pass (equivalent to TranscriptionModel.forward, eval mode)
# --------------------------------------------------------------------------
@jax.jit
def transcription_model_forward(x, params):
    """x: (B, T, input_dim) -> (B, T, output_dim)."""
    B, T, D = x.shape
    t_blk = _time_block(T)

    x_tm = jnp.transpose(x, (1, 0, 2)).reshape(T * B, D)   # time-major, flattened rows

    # ---- layer 0: hoisted wide input projection + fused bidirectional recurrence ----
    lp0 = params["lstm"][0]
    gates = proj_single(x_tm, lp0["w_ih"], lp0["b"], jnp.bfloat16)          # (T*B, 8H)
    G8 = gates.shape[-1]
    yf, yb = bilstm_recurrence(gates.reshape(T, B, G8), lp0["whh"], t_blk)  # (T,B,H) x2
    H = yf.shape[-1]

    # ---- layers 1..: consume (y_fwd, y_bwd) directly, no concat ----
    for lp in params["lstm"][1:]:
        gates = proj_pair(yf.reshape(T * B, H), yb.reshape(T * B, H),
                          lp["w_ih_top"], lp["w_ih_bot"], lp["b"], jnp.bfloat16)
        yf, yb = bilstm_recurrence(gates.reshape(T, B, G8), lp["whh"], t_blk)

    # Dropout(p=0.3) is identity in eval/inference mode.
    # TODO(synk): training-mode dropout (RNG masking) not implemented.
    out2d = proj_pair(yf.reshape(T * B, H), yb.reshape(T * B, H),
                      params["fc_w_top"], params["fc_w_bot"], params["fc_b"],
                      jnp.float32)                                           # (T*B, O)
    out = out2d.reshape(T, B, -1)
    return jnp.transpose(out, (1, 0, 2))                                     # (B, T, O)


# --------------------------------------------------------------------------
if __name__ == "__main__":
    BATCH, SEQ = 2, 8
    INPUT_DIM, HIDDEN_DIM, OUTPUT_DIM = 16, 32, 10

    key = jax.random.PRNGKey(0)
    key, kx = jax.random.split(key)
    x = jax.random.normal(kx, (BATCH, SEQ, INPUT_DIM), jnp.float32)

    params = init_params(key, INPUT_DIM, HIDDEN_DIM, OUTPUT_DIM)

    out = transcription_model_forward(x, params)
    jax.block_until_ready(out)

    assert out.shape == (BATCH, SEQ, OUTPUT_DIM), out.shape
    assert out.dtype == jnp.float32
    assert bool(jnp.all(jnp.isfinite(out)))
    print("KERNEL_OK")
</pallas_src>

<mosaic_0001>
module attributes {stable_mosaic.version = 11 : i64} {
  func.func @proj_single_kernel(%arg0: i32, %arg1: memref<16x16xf32, #tpu.memory_space<vmem>>, %arg2: memref<16x256xbf16, #tpu.memory_space<vmem>>, %arg3: memref<1x256xf32, #tpu.memory_space<vmem>>, %arg4: memref<16x256xbf16, #tpu.memory_space<vmem>>) attributes {dimension_semantics = [#tpu.dimension_semantics<parallel>], iteration_bounds = array<i64: 1>, scalar_prefetch = 0 : i64, scratch_operands = 0 : i64, tpu.core_type = #tpu.core_type<tc>, window_params = [{transform_indices = @transform_0, window_bounds = array<i64: 16, 16>}, {pipeline_mode = #tpu.pipeline_mode<synchronous>, transform_indices = @transform_1, window_bounds = array<i64: 16, 256>}, {pipeline_mode = #tpu.pipeline_mode<synchronous>, transform_indices = @transform_2, window_bounds = array<i64: 1, 256>}, {transform_indices = @transform_3, window_bounds = array<i64: 16, 256>}]} {
    %c0 = arith.constant 0 : index
    %c0_0 = arith.constant 0 : index
    %0 = vector.load %arg1[%c0, %c0_0] : memref<16x16xf32, #tpu.memory_space<vmem>>, vector<16x16xf32>
    %1 = arith.truncf %0 : vector<16x16xf32> to vector<16x16xbf16>
    %c0_1 = arith.constant 0 : index
    %c0_2 = arith.constant 0 : index
    %2 = vector.load %arg2[%c0_1, %c0_2] : memref<16x256xbf16, #tpu.memory_space<vmem>>, vector<16x256xbf16>
    %cst = arith.constant dense<0.000000e+00> : vector<16x256xf32>
    %3 = tpu.matmul %1, %2, %cst {dimension_numbers = #tpu.dot_dimension_numbers<[1], [0], [0], [1], [0, 0, 1, 1], [], []>} : vector<16x16xbf16>, vector<16x256xbf16>, vector<16x256xf32> -> vector<16x256xf32>
    %c0_3 = arith.constant 0 : index
    %c0_4 = arith.constant 0 : index
    %4 = vector.load %arg3[%c0_3, %c0_4] : memref<1x256xf32, #tpu.memory_space<vmem>>, vector<1x256xf32>
    %5 = vector.broadcast %4 : vector<1x256xf32> to vector<16x256xf32>
    %6 = arith.addf %3, %5 : vector<16x256xf32>
    %7 = arith.truncf %6 : vector<16x256xf32> to vector<16x256xbf16>
    %c0_5 = arith.constant 0 : index
    %c0_6 = arith.constant 0 : index
    %8 = vector.load %arg4[%c0_5, %c0_6] : memref<16x256xbf16, #tpu.memory_space<vmem>>, vector<16x256xbf16>
    tpu.vector_store %arg4[%c0_5, %c0_6], %7 {strides = array<i32>} : memref<16x256xbf16, #tpu.memory_space<vmem>>, vector<16x256xbf16>,
    return
  }
  func.func @transform_0(%arg0: i32) -> (i32, i32) {
    %c0_i32 = arith.constant 0 : i32
    %c0_i32_0 = arith.constant 0 : i32
    return %arg0, %c0_i32 : i32, i32
  }
  func.func @transform_1(%arg0: i32) -> (i32, i32) {
    %c0_i32 = arith.constant 0 : i32
    %c0_i32_0 = arith.constant 0 : i32
    %c0_i32_1 = arith.constant 0 : i32
    return %c0_i32, %c0_i32_0 : i32, i32
  }
  func.func @transform_2(%arg0: i32) -> (i32, i32) {
    %c0_i32 = arith.constant 0 : i32
    %c0_i32_0 = arith.constant 0 : i32
    %c0_i32_1 = arith.constant 0 : i32
    return %c0_i32, %c0_i32_0 : i32, i32
  }
  func.func @transform_3(%arg0: i32) -> (i32, i32) {
    %c0_i32 = arith.constant 0 : i32
    %c0_i32_0 = arith.constant 0 : i32
    return %arg0, %c0_i32 : i32, i32
  }
}

module attributes {stable_mosaic.version = 11 : i64} {
  func.func @bilstm_kernel(%arg0: i32, %arg1: memref<8x2x128xbf16, #tpu.memory_space<vmem>>, %arg2: memref<8x2x128xbf16, #tpu.memory_space<vmem>>, %arg3: memref<32x256xbf16, #tpu.memory_space<vmem>>, %arg4: memref<8x2x32xbf16, #tpu.memory_space<vmem>>, %arg5: memref<8x2x32xbf16, #tpu.memory_space<vmem>>, %arg6: memref<4x32xf32, #tpu.memory_space<vmem>>, %arg7: memref<4x32xf32, #tpu.memory_space<vmem>>) attributes {dimension_semantics = [#tpu.dimension_semantics<arbitrary>], iteration_bounds = array<i64: 1>, scalar_prefetch = 0 : i64, scratch_operands = 2 : i64, tpu.core_type = #tpu.core_type<tc>, window_params = [{transform_indices = @transform_0, window_bounds = array<i64: 8, 2, 128>}, {transform_indices = @transform_1, window_bounds = array<i64: 8, 2, 128>}, {pipeline_mode = #tpu.pipeline_mode<synchronous>, transform_indices = @transform_2, window_bounds = array<i64: 32, 256>}, {transform_indices = @transform_3, window_bounds = array<i64: 8, 2, 32>}, {transform_indices = @transform_4, window_bounds = array<i64: 8, 2, 32>}]} {
    %c0_i32 = arith.constant 0 : i32
    %0 = arith.cmpi eq, %arg0, %c0_i32 : i32
    %1 = arith.extui %0 : i1 to i32
    %c0_i32_0 = arith.constant 0 : i32
    %2 = arith.cmpi ne, %1, %c0_i32_0 : i32
    scf.if %2 {
      %cst_216 = arith.constant 0.000000e+00 : f32
      %592 = vector.broadcast %cst_216 : f32 to vector<4x32xf32>
      %c0_217 = arith.constant 0 : index
      %c0_218 = arith.constant 0 : index
      %593 = vector.load %arg6[%c0_217, %c0_218] : memref<4x32xf32, #tpu.memory_space<vmem>>, vector<4x32xf32>
      tpu.vector_store %arg6[%c0_217, %c0_218], %592 {strides = array<i32>} : memref<4x32xf32, #tpu.memory_space<vmem>>, vector<4x32xf32>,
      %cst_219 = arith.constant 0.000000e+00 : f32
      %594 = vector.broadcast %cst_219 : f32 to vector<4x32xf32>
      %c0_220 = arith.constant 0 : index
      %c0_221 = arith.constant 0 : index
      %595 = vector.load %arg7[%c0_220, %c0_221] : memref<4x32xf32, #tpu.memory_space<vmem>>, vector<4x32xf32>
      tpu.vector_store %arg7[%c0_220, %c0_221], %594 {strides = array<i32>} : memref<4x32xf32, #tpu.memory_space<vmem>>, vector<4x32xf32>,
    } else {
    }
    %c0 = arith.constant 0 : index
    %c0_1 = arith.constant 0 : index
    %3 = vector.load %arg3[%c0, %c0_1] : memref<32x256xbf16, #tpu.memory_space<vmem>>, vector<32x256xbf16>
    %c0_2 = arith.constant 0 : index
    %c0_3 = arith.constant 0 : index
    %4 = vector.load %arg6[%c0_2, %c0_3] : memref<4x32xf32, #tpu.memory_space<vmem>>, vector<4x32xf32>
    %5 = arith.truncf %4 : vector<4x32xf32> to vector<4x32xbf16>
    %cst = arith.constant dense<0.000000e+00> : vector<4x256xf32>
    %6 = tpu.matmul %5, %3, %cst {dimension_numbers = #tpu.dot_dimension_numbers<[1], [0], [0], [1], [0, 0, 1, 1], [], []>} : vector<4x32xbf16>, vector<32x256xbf16>, vector<4x256xf32> -> vector<4x256xf32>
    %c0_4 = arith.constant 0 : index
    %c0_5 = arith.constant 0 : index
    %c0_6 = arith.constant 0 : index
    %7 = vector.load %arg1[%c0_4, %c0_5, %c0_6] : memref<8x2x128xbf16, #tpu.memory_space<vmem>>, vector<1x2x128xbf16>
    %8 = vector.shape_cast %7 : vector<1x2x128xbf16> to vector<2x128xbf16>
    %9 = arith.extf %8 : vector<2x128xbf16> to vector<2x128xf32>
    %10 = vector.extract_strided_slice %6 {offsets = [0, 0], sizes = [2, 128], strides = [1, 1]} : vector<4x256xf32> to vector<2x128xf32>
    %11 = arith.addf %9, %10 : vector<2x128xf32>
    %c7 = arith.constant 7 : index
    %c0_7 = arith.constant 0 : index
    %c0_8 = arith.constant 0 : index
    %12 = vector.load %arg2[%c7, %c0_7, %c0_8] : memref<8x2x128xbf16, #tpu.memory_space<vmem>>, vector<1x2x128xbf16>
    %13 = vector.shape_cast %12 : vector<1x2x128xbf16> to vector<2x128xbf16>
    %14 = arith.extf %13 : vector<2x128xbf16> to vector<2x128xf32>
    %15 = vector.extract_strided_slice %6 {offsets = [2, 128], sizes = [2, 128], strides = [1, 1]} : vector<4x256xf32> to vector<2x128xf32>
    %16 = arith.addf %14, %15 : vector<2x128xf32>
    %c0_9 = arith.constant 0 : index
    %c0_10 = arith.constant 0 : index
    %17 = vector.load %arg7[%c0_9, %c0_10] : memref<4x32xf32, #tpu.memory_space<vmem>>, vector<2x32xf32>
    %18 = vector.extract_strided_slice %11 {offsets = [0, 0], sizes = [2, 32], strides = [1, 1]} : vector<2x128xf32> to vector<2x32xf32>
    %19 = arith.negf %18 : vector<2x32xf32>
    %20 = math.exp %19 : vector<2x32xf32>
    %cst_11 = arith.constant 1.000000e+00 : f32
    %21 = vector.broadcast %cst_11 : f32 to vector<2x32xf32>
    %22 = arith.addf %21, %20 : vector<2x32xf32>
    %23 = arith.divf %21, %22 : vector<2x32xf32>
    %24 = vector.extract_strided_slice %11 {offsets = [0, 32], sizes = [2, 32], strides = [1, 1]} : vector<2x128xf32> to vector<2x32xf32>
    %25 = arith.negf %24 : vector<2x32xf32>
    %26 = math.exp %25 : vector<2x32xf32>
    %cst_12 = arith.constant 1.000000e+00 : f32
    %27 = vector.broadcast %cst_12 : f32 to vector<2x32xf32>
    %28 = arith.addf %27, %26 : vector<2x32xf32>
    %29 = arith.divf %27, %28 : vector<2x32xf32>
    %30 = vector.extract_strided_slice %11 {offsets = [0, 64], sizes = [2, 32], strides = [1, 1]} : vector<2x128xf32> to vector<2x32xf32>
    %31 = math.tanh %30 : vector<2x32xf32>
    %32 = vector.extract_strided_slice %11 {offsets = [0, 96], sizes = [2, 32], strides = [1, 1]} : vector<2x128xf32> to vector<2x32xf32>
    %33 = arith.negf %32 : vector<2x32xf32>
    %34 = math.exp %33 : vector<2x32xf32>
    %cst_13 = arith.constant 1.000000e+00 : f32
    %35 = vector.broadcast %cst_13 : f32 to vector<2x32xf32>
    %36 = arith.addf %35, %34 : vector<2x32xf32>
    %37 = arith.divf %35, %36 : vector<2x32xf32>
    %38 = arith.mulf %29, %17 : vector<2x32xf32>
    %39 = arith.mulf %23, %31 : vector<2x32xf32>
    %40 = arith.addf %38, %39 : vector<2x32xf32>
    %41 = math.tanh %40 : vector<2x32xf32>
    %42 = arith.mulf %37, %41 : vector<2x32xf32>
    %c2 = arith.constant 2 : index
    %c0_14 = arith.constant 0 : index
    %43 = vector.load %arg7[%c2, %c0_14] : memref<4x32xf32, #tpu.memory_space<vmem>>, vector<2x32xf32>
    %44 = vector.extract_strided_slice %16 {offsets = [0, 0], sizes = [2, 32], strides = [1, 1]} : vector<2x128xf32> to vector<2x32xf32>
    %45 = arith.negf %44 : vector<2x32xf32>
    %46 = math.exp %45 : vector<2x32xf32>
    %cst_15 = arith.constant 1.000000e+00 : f32
    %47 = vector.broadcast %cst_15 : f32 to vector<2x32xf32>
    %48 = arith.addf %47, %46 : vector<2x32xf32>
    %49 = arith.divf %47, %48 : vector<2x32xf32>
    %50 = vector.extract_strided_slice %16 {offsets = [0, 32], sizes = [2, 32], strides = [1, 1]} : vector<2x128xf32> to vector<2x32xf32>
    %51 = arith.negf %50 : vector<2x32xf32>
    %52 = math.exp %51 : vector<2x32xf32>
    %cst_16 = arith.constant 1.000000e+00 : f32
    %53 = vector.broadcast %cst_16 : f32 to vector<2x32xf32>
    %54 = arith.addf %53, %52 : vector<2x32xf32>
    %55 = arith.divf %53, %54 : vector<2x32xf32>
    %56 = vector.extract_strided_slice %16 {offsets = [0, 64], sizes = [2, 32], strides = [1, 1]} : vector<2x128xf32> to vector<2x32xf32>
    %57 = math.tanh %56 : vector<2x32xf32>
    %58 = vector.extract_strided_slice %16 {offsets = [0, 96], sizes = [2, 32], strides = [1, 1]} : vector<2x128xf32> to vector<2x32xf32>
    %59 = arith.negf %58 : vector<2x32xf32>
    %60 = math.exp %59 : vector<2x32xf32>
    %cst_17 = arith.constant 1.000000e+00 : f32
    %61 = vector.broadcast %cst_17 : f32 to vector<2x32xf32>
    %62 = arith.addf %61, %60 : vector<2x32xf32>
    %63 = arith.divf %61, %62 : vector<2x32xf32>
    %64 = arith.mulf %55, %43 : vector<2x32xf32>
    %65 = arith.mulf %49, %57 : vector<2x32xf32>
    %66 = arith.addf %64, %65 : vector<2x32xf32>
    %67 = math.tanh %66 : vector<2x32xf32>
    %68 = arith.mulf %63, %67 : vector<2x32xf32>
    %c0_18 = arith.constant 0 : index
    %c0_19 = arith.constant 0 : index
    %69 = vector.load %arg6[%c0_18, %c0_19] : memref<4x32xf32, #tpu.memory_space<vmem>>, vector<2x32xf32>
    tpu.vector_store %arg6[%c0_18, %c0_19], %42 {strides = array<i32>} : memref<4x32xf32, #tpu.memory_space<vmem>>, vector<2x32xf32>,
    %c2_20 = arith.constant 2 : index
    %c0_21 = arith.constant 0 : index
    %70 = vector.load %arg6[%c2_20, %c0_21] : memref<4x32xf32, #tpu.memory_space<vmem>>, vector<2x32xf32>
    tpu.vector_store %arg6[%c2_20, %c0_21], %68 {strides = array<i32>} : memref<4x32xf32, #tpu.memory_space<vmem>>, vector<2x32xf32>,
    %c0_22 = arith.constant 0 : index
    %c0_23 = arith.constant 0 : index
    %71 = vector.load %arg7[%c0_22, %c0_23] : memref<4x32xf32, #tpu.memory_space<vmem>>, vector<2x32xf32>
    tpu.vector_store %arg7[%c0_22, %c0_23], %40 {strides = array<i32>} : memref<4x32xf32, #tpu.memory_space<vmem>>, vector<2x32xf32>,
    %c2_24 = arith.constant 2 : index
    %c0_25 = arith.constant 0 : index
    %72 = vector.load %arg7[%c2_24, %c0_25] : memref<4x32xf32, #tpu.memory_space<vmem>>, vector<2x32xf32>
    tpu.vector_store %arg7[%c2_24, %c0_25], %66 {strides = array<i32>} : memref<4x32xf32, #tpu.memory_space<vmem>>, vector<2x32xf32>,
    %73 = arith.truncf %42 : vector<2x32xf32> to vector<2x32xbf16>
    %74 = arith.truncf %68 : vector<2x32xf32> to vector<2x32xbf16>
    %c0_26 = arith.constant 0 : index
    %c0_27 = arith.constant 0 : index
    %75 = vector.load %arg6[%c0_26, %c0_27] : memref<4x32xf32, #tpu.memory_space<vmem>>, vector<4x32xf32>
    %76 = arith.truncf %75 : vector<4x32xf32> to vector<4x32xbf16>
    %cst_28 = arith.constant dense<0.000000e+00> : vector<4x256xf32>
    %77 = tpu.matmul %76, %3, %cst_28 {dimension_numbers = #tpu.dot_dimension_numbers<[1], [0], [0], [1], [0, 0, 1, 1], [], []>} : vector<4x32xbf16>, vector<32x256xbf16>, vector<4x256xf32> -> vector<4x256xf32>
    %c1 = arith.constant 1 : index
    %c0_29 = arith.constant 0 : index
    %c0_30 = arith.constant 0 : index
    %78 = vector.load %arg1[%c1, %c0_29, %c0_30] : memref<8x2x128xbf16, #tpu.memory_space<vmem>>, vector<1x2x128xbf16>
    %79 = vector.shape_cast %78 : vector<1x2x128xbf16> to vector<2x128xbf16>
    %80 = arith.extf %79 : vector<2x128xbf16> to vector<2x128xf32>
    %81 = vector.extract_strided_slice %77 {offsets = [0, 0], sizes = [2, 128], strides = [1, 1]} : vector<4x256xf32> to vector<2x128xf32>
    %82 = arith.addf %80, %81 : vector<2x128xf32>
    %c6 = arith.constant 6 : index
    %c0_31 = arith.constant 0 : index
    %c0_32 = arith.constant 0 : index
    %83 = vector.load %arg2[%c6, %c0_31, %c0_32] : memref<8x2x128xbf16, #tpu.memory_space<vmem>>, vector<1x2x128xbf16>
    %84 = vector.shape_cast %83 : vector<1x2x128xbf16> to vector<2x128xbf16>
    %85 = arith.extf %84 : vector<2x128xbf16> to vector<2x128xf32>
    %86 = vector.extract_strided_slice %77 {offsets = [2, 128], sizes = [2, 128], strides = [1, 1]} : vector<4x256xf32> to vector<2x128xf32>
    %87 = arith.addf %85, %86 : vector<2x128xf32>
    %c0_33 = arith.constant 0 : index
    %c0_34 = arith.constant 0 : index
    %88 = vector.load %arg7[%c0_33, %c0_34] : memref<4x32xf32, #tpu.memory_space<vmem>>, vector<2x32xf32>
    %89 = vector.extract_strided_slice %82 {offsets = [0, 0], sizes = [2, 32], strides = [1, 1]} : vector<2x128xf32> to vector<2x32xf32>
    %90 = arith.negf %89 : vector<2x32xf32>
    %91 = math.exp %90 : vector<2x32xf32>
    %cst_35 = arith.constant 1.000000e+00 : f32
    %92 = vector.broadcast %cst_35 : f32 to vector<2x32xf32>
    %93 = arith.addf %92, %91 : vector<2x32xf32>
    %94 = arith.divf %92, %93 : vector<2x32xf32>
    %95 = vector.extract_strided_slice %82 {offsets = [0, 32], sizes = [2, 32], strides = [1, 1]} : vector<2x128xf32> to vector<2x32xf32>
    %96 = arith.negf %95 : vector<2x32xf32>
    %97 = math.exp %96 : vector<2x32xf32>
    %cst_36 = arith.constant 1.000000e+00 : f32
    %98 = vector.broadcast %cst_36 : f32 to vector<2x32xf32>
    %99 = arith.addf %98, %97 : vector<2x32xf32>
    %100 = arith.divf %98, %99 : vector<2x32xf32>
    %101 = vector.extract_strided_slice %82 {offsets = [0, 64], sizes = [2, 32], strides = [1, 1]} : vector<2x128xf32> to vector<2x32xf32>
    %102 = math.tanh %101 : vector<2x32xf32>
    %103 = vector.extract_strided_slice %82 {offsets = [0, 96], sizes = [2, 32], strides = [1, 1]} : vector<2x128xf32> to vector<2x32xf32>
    %104 = arith.negf %103 : vector<2x32xf32>
    %105 = math.exp %104 : vector<2x32xf32>
    %cst_37 = arith.constant 1.000000e+00 : f32
    %106 = vector.broadcast %cst_37 : f32 to vector<2x32xf32>
    %107 = arith.addf %106, %105 : vector<2x32xf32>
    %108 = arith.divf %106, %107 : vector<2x32xf32>
    %109 = arith.mulf %100, %88 : vector<2x32xf32>
    %110 = arith.mulf %94, %102 : vector<2x32xf32>
    %111 = arith.addf %109, %110 : vector<2x32xf32>
    %112 = math.tanh %111 : vector<2x32xf32>
    %113 = arith.mulf %108, %112 : vector<2x32xf32>
    %c2_38 = arith.constant 2 : index
    %c0_39 = arith.constant 0 : index
    %114 = vector.load %arg7[%c2_38, %c0_39] : memref<4x32xf32, #tpu.memory_space<vmem>>, vector<2x32xf32>
    %115 = vector.extract_strided_slice %87 {offsets = [0, 0], sizes = [2, 32], strides = [1, 1]} : vector<2x128xf32> to vector<2x32xf32>
    %116 = arith.negf %115 : vector<2x32xf32>
    %117 = math.exp %116 : vector<2x32xf32>
    %cst_40 = arith.constant 1.000000e+00 : f32
    %118 = vector.broadcast %cst_40 : f32 to vector<2x32xf32>
    %119 = arith.addf %118, %117 : vector<2x32xf32>
    %120 = arith.divf %118, %119 : vector<2x32xf32>
    %121 = vector.extract_strided_slice %87 {offsets = [0, 32], sizes = [2, 32], strides = [1, 1]} : vector<2x128xf32> to vector<2x32xf32>
    %122 = arith.negf %121 : vector<2x32xf32>
    %123 = math.exp %122 : vector<2x32xf32>
    %cst_41 = arith.constant 1.000000e+00 : f32
    %124 = vector.broadcast %cst_41 : f32 to vector<2x32xf32>
    %125 = arith.addf %124, %123 : vector<2x32xf32>
    %126 = arith.divf %124, %125 : vector<2x32xf32>
    %127 = vector.extract_strided_slice %87 {offsets = [0, 64], sizes = [2, 32], strides = [1, 1]} : vector<2x128xf32> to vector<2x32xf32>
    %128 = math.tanh %127 : vector<2x32xf32>
    %129 = vector.extract_strided_slice %87 {offsets = [0, 96], sizes = [2, 32], strides = [1, 1]} : vector<2x128xf32> to vector<2x32xf32>
    %130 = arith.negf %129 : vector<2x32xf32>
    %131 = math.exp %130 : vector<2x32xf32>
    %cst_42 = arith.constant 1.000000e+00 : f32
    %132 = vector.broadcast %cst_42 : f32 to vector<2x32xf32>
    %133 = arith.addf %132, %131 : vector<2x32xf32>
    %134 = arith.divf %132, %133 : vector<2x32xf32>
    %135 = arith.mulf %126, %114 : vector<2x32xf32>
    %136 = arith.mulf %120, %128 : vector<2x32xf32>
    %137 = arith.addf %135, %136 : vector<2x32xf32>
    %138 = math.tanh %137 : vector<2x32xf32>
    %139 = arith.mulf %134, %138 : vector<2x32xf32>
    %c0_43 = arith.constant 0 : index
    %c0_44 = arith.constant 0 : index
    %140 = vector.load %arg6[%c0_43, %c0_44] : memref<4x32xf32, #tpu.memory_space<vmem>>, vector<2x32xf32>
    tpu.vector_store %arg6[%c0_43, %c0_44], %113 {strides = array<i32>} : memref<4x32xf32, #tpu.memory_space<vmem>>, vector<2x32xf32>,
    %c2_45 = arith.constant 2 : index
    %c0_46 = arith.constant 0 : index
    %141 = vector.load %arg6[%c2_45, %c0_46] : memref<4x32xf32, #tpu.memory_space<vmem>>, vector<2x32xf32>
    tpu.vector_store %arg6[%c2_45, %c0_46], %139 {strides = array<i32>} : memref<4x32xf32, #tpu.memory_space<vmem>>, vector<2x32xf32>,
    %c0_47 = arith.constant 0 : index
    %c0_48 = arith.constant 0 : index
    %142 = vector.load %arg7[%c0_47, %c0_48] : memref<4x32xf32, #tpu.memory_space<vmem>>, vector<2x32xf32>
    tpu.vector_store %arg7[%c0_47, %c0_48], %111 {strides = array<i32>} : memref<4x32xf32, #tpu.memory_space<vmem>>, vector<2x32xf32>,
    %c2_49 = arith.constant 2 : index
    %c0_50 = arith.constant 0 : index
    %143 = vector.load %arg7[%c2_49, %c0_50] : memref<4x32xf32, #tpu.memory_space<vmem>>, vector<2x32xf32>
    tpu.vector_store %arg7[%c2_49, %c0_50], %137 {strides = array<i32>} : memref<4x32xf32, #tpu.memory_space<vmem>>, vector<2x32xf32>,
    %144 = arith.truncf %113 : vector<2x32xf32> to vector<2x32xbf16>
    %145 = arith.truncf %139 : vector<2x32xf32> to vector<2x32xbf16>
    %c0_51 = arith.constant 0 : index
    %c0_52 = arith.constant 0 : index
    %146 = vector.load %arg6[%c0_51, %c0_52] : memref<4x32xf32, #tpu.memory_space<vmem>>, vector<4x32xf32>
    %147 = arith.truncf %146 : vector<4x32xf32> to vector<4x32xbf16>
    %cst_53 = arith.constant dense<0.000000e+00> : vector<4x256xf32>
    %148 = tpu.matmul %147, %3, %cst_53 {dimension_numbers = #tpu.dot_dimension_numbers<[1], [0], [0], [1], [0, 0, 1, 1], [], []>} : vector<4x32xbf16>, vector<32x256xbf16>, vector<4x256xf32> -> vector<4x256xf32>
    %c2_54 = arith.constant 2 : index
    %c0_55 = arith.constant 0 : index
    %c0_56 = arith.constant 0 : index
    %149 = vector.load %arg1[%c2_54, %c0_55, %c0_56] : memref<8x2x128xbf16, #tpu.memory_space<vmem>>, vector<1x2x128xbf16>
    %150 = vector.shape_cast %149 : vector<1x2x128xbf16> to vector<2x128xbf16>
    %151 = arith.extf %150 : vector<2x128xbf16> to vector<2x128xf32>
    %152 = vector.extract_strided_slice %148 {offsets = [0, 0], sizes = [2, 128], strides = [1, 1]} : vector<4x256xf32> to vector<2x128xf32>
    %153 = arith.addf %151, %152 : vector<2x128xf32>
    %c5 = arith.constant 5 : index
    %c0_57 = arith.constant 0 : index
    %c0_58 = arith.constant 0 : index
    %154 = vector.load %arg2[%c5, %c0_57, %c0_58] : memref<8x2x128xbf16, #tpu.memory_space<vmem>>, vector<1x2x128xbf16>
    %155 = vector.shape_cast %154 : vector<1x2x128xbf16> to vector<2x128xbf16>
    %156 = arith.extf %155 : vector<2x128xbf16> to vector<2x128xf32>
    %157 = vector.extract_strided_slice %148 {offsets = [2, 128], sizes = [2, 128], strides = [1, 1]} : vector<4x256xf32> to vector<2x128xf32>
    %158 = arith.addf %156, %157 : vector<2x128xf32>
    %c0_59 = arith.constant 0 : index
    %c0_60 = arith.constant 0 : index
    %159 = vector.load %arg7[%c0_59, %c0_60] : memref<4x32xf32, #tpu.memory_space<vmem>>, vector<2x32xf32>
    %160 = vector.extract_strided_slice %153 {offsets = [0, 0], sizes = [2, 32], strides = [1, 1]} : vector<2x128xf32> to vector<2x32xf32>
    %161 = arith.negf %160 : vector<2x32xf32>
    %162 = math.exp %161 : vector<2x32xf32>
    %cst_61 = arith.constant 1.000000e+00 : f32
    %163 = vector.broadcast %cst_61 : f32 to vector<2x32xf32>
    %164 = arith.addf %163, %162 : vector<2x32xf32>
    %165 = arith.divf %163, %164 : vector<2x32xf32>
    %166 = vector.extract_strided_slice %153 {offsets = [0, 32], sizes = [2, 32], strides = [1, 1]} : vector<2x128xf32> to vector<2x32xf32>
    %167 = arith.negf %166 : vector<2x32xf32>
    %168 = math.exp %167 : vector<2x32xf32>
    %cst_62 = arith.constant 1.000000e+00 : f32
    %169 = vector.broadcast %cst_62 : f32 to vector<2x32xf32>
    %170 = arith.addf %169, %168 : vector<2x32xf32>
    %171 = arith.divf %169, %170 : vector<2x32xf32>
    %172 = vector.extract_strided_slice %153 {offsets = [0, 64], sizes = [2, 32], strides = [1, 1]} : vector<2x128xf32> to vector<2x32xf32>
    %173 = math.tanh %172 : vector<2x32xf32>
    %174 = vector.extract_strided_slice %153 {offsets = [0, 96], sizes = [2, 32], strides = [1, 1]} : vector<2x128xf32> to vector<2x32xf32>
    %175 = arith.negf %174 : vector<2x32xf32>
    %176 = math.exp %175 : vector<2x32xf32>
    %cst_63 = arith.constant 1.000000e+00 : f32
    %177 = vector.broadcast %cst_63 : f32 to vector<2x32xf32>
    %178 = arith.addf %177, %176 : vector<2x32xf32>
    %179 = arith.divf %177, %178 : vector<2x32xf32>
    %180 = arith.mulf %171, %159 : vector<2x32xf32>
    %181 = arith.mulf %165, %173 : vector<2x32xf32>
    %182 = arith.addf %180, %181 : vector<2x32xf32>
    %183 = math.tanh %182 : vector<2x32xf32>
    %184 = arith.mulf %179, %183 : vector<2x32xf32>
    %c2_64 = arith.constant 2 : index
    %c0_65 = arith.constant 0 : index
    %185 = vector.load %arg7[%c2_64, %c0_65] : memref<4x32xf32, #tpu.memory_space<vmem>>, vector<2x32xf32>
    %186 = vector.extract_strided_slice %158 {offsets = [0, 0], sizes = [2, 32], strides = [1, 1]} : vector<2x128xf32> to vector<2x32xf32>
    %187 = arith.negf %186 : vector<2x32xf32>
    %188 = math.exp %187 : vector<2x32xf32>
    %cst_66 = arith.constant 1.000000e+00 : f32
    %189 = vector.broadcast %cst_66 : f32 to vector<2x32xf32>
    %190 = arith.addf %189, %188 : vector<2x32xf32>
    %191 = arith.divf %189, %190 : vector<2x32xf32>
    %192 = vector.extract_strided_slice %158 {offsets = [0, 32], sizes = [2, 32], strides = [1, 1]} : vector<2x128xf32> to vector<2x32xf32>
    %193 = arith.negf %192 : vector<2x32xf32>
    %194 = math.exp %193 : vector<2x32xf32>
    %cst_67 = arith.constant 1.000000e+00 : f32
    %195 = vector.broadcast %cst_67 : f32 to vector<2x32xf32>
    %196 = arith.addf %195, %194 : vector<2x32xf32>
    %197 = arith.divf %195, %196 : vector<2x32xf32>
    %198 = vector.extract_strided_slice %158 {offsets = [0, 64], sizes = [2, 32], strides = [1, 1]} : vector<2x128xf32> to vector<2x32xf32>
    %199 = math.tanh %198 : vector<2x32xf32>
    %200 = vector.extract_strided_slice %158 {offsets = [0, 96], sizes = [2, 32], strides = [1, 1]} : vector<2x128xf32> to vector<2x32xf32>
    %201 = arith.negf %200 : vector<2x32xf32>
    %202 = math.exp %201 : vector<2x32xf32>
    %cst_68 = arith.constant 1.000000e+00 : f32
    %203 = vector.broadcast %cst_68 : f32 to vector<2x32xf32>
    %204 = arith.addf %203, %202 : vector<2x32xf32>
    %205 = arith.divf %203, %204 : vector<2x32xf32>
    %206 = arith.mulf %197, %185 : vector<2x32xf32>
    %207 = arith.mulf %191, %199 : vector<2x32xf32>
    %208 = arith.addf %206, %207 : vector<2x32xf32>
    %209 = math.tanh %208 : vector<2x32xf32>
    %210 = arith.mulf %205, %209 : vector<2x32xf32>
    %c0_69 = arith.constant 0 : index
    %c0_70 = arith.constant 0 : index
    %211 = vector.load %arg6[%c0_69, %c0_70] : memref<4x32xf32, #tpu.memory_space<vmem>>, vector<2x32xf32>
    tpu.vector_store %arg6[%c0_69, %c0_70], %184 {strides = array<i32>} : memref<4x32xf32, #tpu.memory_space<vmem>>, vector<2x32xf32>,
    %c2_71 = arith.constant 2 : index
    %c0_72 = arith.constant 0 : index
    %212 = vector.load %arg6[%c2_71, %c0_72] : memref<4x32xf32, #tpu.memory_space<vmem>>, vector<2x32xf32>
    tpu.vector_store %arg6[%c2_71, %c0_72], %210 {strides = array<i32>} : memref<4x32xf32, #tpu.memory_space<vmem>>, vector<2x32xf32>,
    %c0_73 = arith.constant 0 : index
    %c0_74 = arith.constant 0 : index
    %213 = vector.load %arg7[%c0_73, %c0_74] : memref<4x32xf32, #tpu.memory_space<vmem>>, vector<2x32xf32>
    tpu.vector_store %arg7[%c0_73, %c0_74], %182 {strides = array<i32>} : memref<4x32xf32, #tpu.memory_space<vmem>>, vector<2x32xf32>,
    %c2_75 = arith.constant 2 : index
    %c0_76 = arith.constant 0 : index
    %214 = vector.load %arg7[%c2_75, %c0_76] : memref<4x32xf32, #tpu.memory_space<vmem>>, vector<2x32xf32>
    tpu.vector_store %arg7[%c2_75, %c0_76], %208 {strides = array<i32>} : memref<4x32xf32, #tpu.memory_space<vmem>>, vector<2x32xf32>,
    %215 = arith.truncf %184 : vector<2x32xf32> to vector<2x32xbf16>
    %216 = arith.truncf %210 : vector<2x32xf32> to vector<2x32xbf16>
    %c0_77 = arith.constant 0 : index
    %c0_78 = arith.constant 0 : index
    %217 = vector.load %arg6[%c0_77, %c0_78] : memref<4x32xf32, #tpu.memory_space<vmem>>, vector<4x32xf32>
    %218 = arith.truncf %217 : vector<4x32xf32> to vector<4x32xbf16>
    %cst_79 = arith.constant dense<0.000000e+00> : vector<4x256xf32>
    %219 = tpu.matmul %218, %3, %cst_79 {dimension_numbers = #tpu.dot_dimension_numbers<[1], [0], [0], [1], [0, 0, 1, 1], [], []>} : vector<4x32xbf16>, vector<32x256xbf16>, vector<4x256xf32> -> vector<4x256xf32>
    %c3 = arith.constant 3 : index
    %c0_80 = arith.constant 0 : index
    %c0_81 = arith.constant 0 : index
    %220 = vector.load %arg1[%c3, %c0_80, %c0_81] : memref<8x2x128xbf16, #tpu.memory_space<vmem>>, vector<1x2x128xbf16>
    %221 = vector.shape_cast %220 : vector<1x2x128xbf16> to vector<2x128xbf16>
    %222 = arith.extf %221 : vector<2x128xbf16> to vector<2x128xf32>
    %223 = vector.extract_strided_slice %219 {offsets = [0, 0], sizes = [2, 128], strides = [1, 1]} : vector<4x256xf32> to vector<2x128xf32>
    %224 = arith.addf %222, %223 : vector<2x128xf32>
    %c4 = arith.constant 4 : index
    %c0_82 = arith.constant 0 : index
    %c0_83 = arith.constant 0 : index
    %225 = vector.load %arg2[%c4, %c0_82, %c0_83] : memref<8x2x128xbf16, #tpu.memory_space<vmem>>, vector<1x2x128xbf16>
    %226 = vector.shape_cast %225 : vector<1x2x128xbf16> to vector<2x128xbf16>
    %227 = arith.extf %226 : vector<2x128xbf16> to vector<2x128xf32>
    %228 = vector.extract_strided_slice %219 {offsets = [2, 128], sizes = [2, 128], strides = [1, 1]} : vector<4x256xf32> to vector<2x128xf32>
    %229 = arith.addf %227, %228 : vector<2x128xf32>
    %c0_84 = arith.constant 0 : index
    %c0_85 = arith.constant 0 : index
    %230 = vector.load %arg7[%c0_84, %c0_85] : memref<4x32xf32, #tpu.memory_space<vmem>>, vector<2x32xf32>
    %231 = vector.extract_strided_slice %224 {offsets = [0, 0], sizes = [2, 32], strides = [1, 1]} : vector<2x128xf32> to vector<2x32xf32>
    %232 = arith.negf %231 : vector<2x32xf32>
    %233 = math.exp %232 : vector<2x32xf32>
    %cst_86 = arith.constant 1.000000e+00 : f32
    %234 = vector.broadcast %cst_86 : f32 to vector<2x32xf32>
    %235 = arith.addf %234, %233 : vector<2x32xf32>
    %236 = arith.divf %234, %235 : vector<2x32xf32>
    %237 = vector.extract_strided_slice %224 {offsets = [0, 32], sizes = [2, 32], strides = [1, 1]} : vector<2x128xf32> to vector<2x32xf32>
    %238 = arith.negf %237 : vector<2x32xf32>
    %239 = math.exp %238 : vector<2x32xf32>
    %cst_87 = arith.constant 1.000000e+00 : f32
    %240 = vector.broadcast %cst_87 : f32 to vector<2x32xf32>
    %241 = arith.addf %240, %239 : vector<2x32xf32>
    %242 = arith.divf %240, %241 : vector<2x32xf32>
    %243 = vector.extract_strided_slice %224 {offsets = [0, 64], sizes = [2, 32], strides = [1, 1]} : vector<2x128xf32> to vector<2x32xf32>
    %244 = math.tanh %243 : vector<2x32xf32>
    %245 = vector.extract_strided_slice %224 {offsets = [0, 96], sizes = [2, 32], strides = [1, 1]} : vector<2x128xf32> to vector<2x32xf32>
    %246 = arith.negf %245 : vector<2x32xf32>
    %247 = math.exp %246 : vector<2x32xf32>
    %cst_88 = arith.constant 1.000000e+00 : f32
    %248 = vector.broadcast %cst_88 : f32 to vector<2x32xf32>
    %249 = arith.addf %248, %247 : vector<2x32xf32>
    %250 = arith.divf %248, %249 : vector<2x32xf32>
    %251 = arith.mulf %242, %230 : vector<2x32xf32>
    %252 = arith.mulf %236, %244 : vector<2x32xf32>
    %253 = arith.addf %251, %252 : vector<2x32xf32>
    %254 = math.tanh %253 : vector<2x32xf32>
    %255 = arith.mulf %250, %254 : vector<2x32xf32>
    %c2_89 = arith.constant 2 : index
    %c0_90 = arith.constant 0 : index
    %256 = vector.load %arg7[%c2_89, %c0_90] : memref<4x32xf32, #tpu.memory_space<vmem>>, vector<2x32xf32>
    %257 = vector.extract_strided_slice %229 {offsets = [0, 0], sizes = [2, 32], strides = [1, 1]} : vector<2x128xf32> to vector<2x32xf32>
    %258 = arith.negf %257 : vector<2x32xf32>
    %259 = math.exp %258 : vector<2x32xf32>
    %cst_91 = arith.constant 1.000000e+00 : f32
    %260 = vector.broadcast %cst_91 : f32 to vector<2x32xf32>
    %261 = arith.addf %260, %259 : vector<2x32xf32>
    %262 = arith.divf %260, %261 : vector<2x32xf32>
    %263 = vector.extract_strided_slice %229 {offsets = [0, 32], sizes = [2, 32], strides = [1, 1]} : vector<2x128xf32> to vector<2x32xf32>
    %264 = arith.negf %263 : vector<2x32xf32>
    %265 = math.exp %264 : vector<2x32xf32>
    %cst_92 = arith.constant 1.000000e+00 : f32
    %266 = vector.broadcast %cst_92 : f32 to vector<2x32xf32>
    %267 = arith.addf %266, %265 : vector<2x32xf32>
    %268 = arith.divf %266, %267 : vector<2x32xf32>
    %269 = vector.extract_strided_slice %229 {offsets = [0, 64], sizes = [2, 32], strides = [1, 1]} : vector<2x128xf32> to vector<2x32xf32>
    %270 = math.tanh %269 : vector<2x32xf32>
    %271 = vector.extract_strided_slice %229 {offsets = [0, 96], sizes = [2, 32], strides = [1, 1]} : vector<2x128xf32> to vector<2x32xf32>
    %272 = arith.negf %271 : vector<2x32xf32>
    %273 = math.exp %272 : vector<2x32xf32>
    %cst_93 = arith.constant 1.000000e+00 : f32
    %274 = vector.broadcast %cst_93 : f32 to vector<2x32xf32>
    %275 = arith.addf %274, %273 : vector<2x32xf32>
    %276 = arith.divf %274, %275 : vector<2x32xf32>
    %277 = arith.mulf %268, %256 : vector<2x32xf32>
    %278 = arith.mulf %262, %270 : vector<2x32xf32>
    %279 = arith.addf %277, %278 : vector<2x32xf32>
    %280 = math.tanh %279 : vector<2x32xf32>
    %281 = arith.mulf %276, %280 : vector<2x32xf32>
    %c0_94 = arith.constant 0 : index
    %c0_95 = arith.constant 0 : index
    %282 = vector.load %arg6[%c0_94, %c0_95] : memref<4x32xf32, #tpu.memory_space<vmem>>, vector<2x32xf32>
    tpu.vector_store %arg6[%c0_94, %c0_95], %255 {strides = array<i32>} : memref<4x32xf32, #tpu.memory_space<vmem>>, vector<2x32xf32>,
    %c2_96 = arith.constant 2 : index
    %c0_97 = arith.constant 0 : index
    %283 = vector.load %arg6[%c2_96, %c0_97] : memref<4x32xf32, #tpu.memory_space<vmem>>, vector<2x32xf32>
    tpu.vector_store %arg6[%c2_96, %c0_97], %281 {strides = array<i32>} : memref<4x32xf32, #tpu.memory_space<vmem>>, vector<2x32xf32>,
    %c0_98 = arith.constant 0 : index
    %c0_99 = arith.constant 0 : index
    %284 = vector.load %arg7[%c0_98, %c0_99] : memref<4x32xf32, #tpu.memory_space<vmem>>, vector<2x32xf32>
    tpu.vector_store %arg7[%c0_98, %c0_99], %253 {strides = array<i32>} : memref<4x32xf32, #tpu.memory_space<vmem>>, vector<2x32xf32>,
    %c2_100 = arith.constant 2 : index
    %c0_101 = arith.constant 0 : index
    %285 = vector.load %arg7[%c2_100, %c0_101] : memref<4x32xf32, #tpu.memory_space<vmem>>, vector<2x32xf32>
    tpu.vector_store %arg7[%c2_100, %c0_101], %279 {strides = array<i32>} : memref<4x32xf32, #tpu.memory_space<vmem>>, vector<2x32xf32>,
    %286 = arith.truncf %255 : vector<2x32xf32> to vector<2x32xbf16>
    %287 = arith.truncf %281 : vector<2x32xf32> to vector<2x32xbf16>
    %c0_102 = arith.constant 0 : index
    %c0_103 = arith.constant 0 : index
    %288 = vector.load %arg6[%c0_102, %c0_103] : memref<4x32xf32, #tpu.memory_space<vmem>>, vector<4x32xf32>
    %289 = arith.truncf %288 : vector<4x32xf32> to vector<4x32xbf16>
    %cst_104 = arith.constant dense<0.000000e+00> : vector<4x256xf32>
    %290 = tpu.matmul %289, %3, %cst_104 {dimension_numbers = #tpu.dot_dimension_numbers<[1], [0], [0], [1], [0, 0, 1, 1], [], []>} : vector<4x32xbf16>, vector<32x256xbf16>, vector<4x256xf32> -> vector<4x256xf32>
    %c4_105 = arith.constant 4 : index
    %c0_106 = arith.constant 0 : index
    %c0_107 = arith.constant 0 : index
    %291 = vector.load %arg1[%c4_105, %c0_106, %c0_107] : memref<8x2x128xbf16, #tpu.memory_space<vmem>>, vector<1x2x128xbf16>
    %292 = vector.shape_cast %291 : vector<1x2x128xbf16> to vector<2x128xbf16>
    %293 = arith.extf %292 : vector<2x128xbf16> to vector<2x128xf32>
    %294 = vector.extract_strided_slice %290 {offsets = [0, 0], sizes = [2, 128], strides = [1, 1]} : vector<4x256xf32> to vector<2x128xf32>
    %295 = arith.addf %293, %294 : vector<2x128xf32>
    %c3_108 = arith.constant 3 : index
    %c0_109 = arith.constant 0 : index
    %c0_110 = arith.constant 0 : index
    %296 = vector.load %arg2[%c3_108, %c0_109, %c0_110] : memref<8x2x128xbf16, #tpu.memory_space<vmem>>, vector<1x2x128xbf16>
    %297 = vector.shape_cast %296 : vector<1x2x128xbf16> to vector<2x128xbf16>
    %298 = arith.extf %297 : vector<2x128xbf16> to vector<2x128xf32>
    %299 = vector.extract_strided_slice %290 {offsets = [2, 128], sizes = [2, 128], strides = [1, 1]} : vector<4x256xf32> to vector<2x128xf32>
    %300 = arith.addf %298, %299 : vector<2x128xf32>
    %c0_111 = arith.constant 0 : index
    %c0_112 = arith.constant 0 : index
    %301 = vector.load %arg7[%c0_111, %c0_112] : memref<4x32xf32, #tpu.memory_space<vmem>>, vector<2x32xf32>
    %302 = vector.extract_strided_slice %295 {offsets = [0, 0], sizes = [2, 32], strides = [1, 1]} : vector<2x128xf32> to vector<2x32xf32>
    %303 = arith.negf %302 : vector<2x32xf32>
    %304 = math.exp %303 : vector<2x32xf32>
    %cst_113 = arith.constant 1.000000e+00 : f32
    %305 = vector.broadcast %cst_113 : f32 to vector<2x32xf32>
    %306 = arith.addf %305, %304 : vector<2x32xf32>
    %307 = arith.divf %305, %306 : vector<2x32xf32>
    %308 = vector.extract_strided_slice %295 {offsets = [0, 32], sizes = [2, 32], strides = [1, 1]} : vector<2x128xf32> to vector<2x32xf32>
    %309 = arith.negf %308 : vector<2x32xf32>
    %310 = math.exp %309 : vector<2x32xf32>
    %cst_114 = arith.constant 1.000000e+00 : f32
    %311 = vector.broadcast %cst_114 : f32 to vector<2x32xf32>
    %312 = arith.addf %311, %310 : vector<2x32xf32>
    %313 = arith.divf %311, %312 : vector<2x32xf32>
    %314 = vector.extract_strided_slice %295 {offsets = [0, 64], sizes = [2, 32], strides = [1, 1]} : vector<2x128xf32> to vector<2x32xf32>
    %315 = math.tanh %314 : vector<2x32xf32>
    %316 = vector.extract_strided_slice %295 {offsets = [0, 96], sizes = [2, 32], strides = [1, 1]} : vector<2x128xf32> to vector<2x32xf32>
    %317 = arith.negf %316 : vector<2x32xf32>
    %318 = math.exp %317 : vector<2x32xf32>
    %cst_115 = arith.constant 1.000000e+00 : f32
    %319 = vector.broadcast %cst_115 : f32 to vector<2x32xf32>
    %320 = arith.addf %319, %318 : vector<2x32xf32>
    %321 = arith.divf %319, %320 : vector<2x32xf32>
    %322 = arith.mulf %313, %301 : vector<2x32xf32>
    %323 = arith.mulf %307, %315 : vector<2x32xf32>
    %324 = arith.addf %322, %323 : vector<2x32xf32>
    %325 = math.tanh %324 : vector<2x32xf32>
    %326 = arith.mulf %321, %325 : vector<2x32xf32>
    %c2_116 = arith.constant 2 : index
    %c0_117 = arith.constant 0 : index
    %327 = vector.load %arg7[%c2_116, %c0_117] : memref<4x32xf32, #tpu.memory_space<vmem>>, vector<2x32xf32>
    %328 = vector.extract_strided_slice %300 {offsets = [0, 0], sizes = [2, 32], strides = [1, 1]} : vector<2x128xf32> to vector<2x32xf32>
    %329 = arith.negf %328 : vector<2x32xf32>
    %330 = math.exp %329 : vector<2x32xf32>
    %cst_118 = arith.constant 1.000000e+00 : f32
    %331 = vector.broadcast %cst_118 : f32 to vector<2x32xf32>
    %332 = arith.addf %331, %330 : vector<2x32xf32>
    %333 = arith.divf %331, %332 : vector<2x32xf32>
    %334 = vector.extract_strided_slice %300 {offsets = [0, 32], sizes = [2, 32], strides = [1, 1]} : vector<2x128xf32> to vector<2x32xf32>
    %335 = arith.negf %334 : vector<2x32xf32>
    %336 = math.exp %335 : vector<2x32xf32>
    %cst_119 = arith.constant 1.000000e+00 : f32
    %337 = vector.broadcast %cst_119 : f32 to vector<2x32xf32>
    %338 = arith.addf %337, %336 : vector<2x32xf32>
    %339 = arith.divf %337, %338 : vector<2x32xf32>
    %340 = vector.extract_strided_slice %300 {offsets = [0, 64], sizes = [2, 32], strides = [1, 1]} : vector<2x128xf32> to vector<2x32xf32>
    %341 = math.tanh %340 : vector<2x32xf32>
    %342 = vector.extract_strided_slice %300 {offsets = [0, 96], sizes = [2, 32], strides = [1, 1]} : vector<2x128xf32> to vector<2x32xf32>
    %343 = arith.negf %342 : vector<2x32xf32>
    %344 = math.exp %343 : vector<2x32xf32>
    %cst_120 = arith.constant 1.000000e+00 : f32
    %345 = vector.broadcast %cst_120 : f32 to vector<2x32xf32>
    %346 = arith.addf %345, %344 : vector<2x32xf32>
    %347 = arith.divf %345, %346 : vector<2x32xf32>
    %348 = arith.mulf %339, %327 : vector<2x32xf32>
    %349 = arith.mulf %333, %341 : vector<2x32xf32>
    %350 = arith.addf %348, %349 : vector<2x32xf32>
    %351 = math.tanh %350 : vector<2x32xf32>
    %352 = arith.mulf %347, %351 : vector<2x32xf32>
    %c0_121 = arith.constant 0 : index
    %c0_122 = arith.constant 0 : index
    %353 = vector.load %arg6[%c0_121, %c0_122] : memref<4x32xf32, #tpu.memory_space<vmem>>, vector<2x32xf32>
    tpu.vector_store %arg6[%c0_121, %c0_122], %326 {strides = array<i32>} : memref<4x32xf32, #tpu.memory_space<vmem>>, vector<2x32xf32>,
    %c2_123 = arith.constant 2 : index
    %c0_124 = arith.constant 0 : index
    %354 = vector.load %arg6[%c2_123, %c0_124] : memref<4x32xf32, #tpu.memory_space<vmem>>, vector<2x32xf32>
    tpu.vector_store %arg6[%c2_123, %c0_124], %352 {strides = array<i32>} : memref<4x32xf32, #tpu.memory_space<vmem>>, vector<2x32xf32>,
    %c0_125 = arith.constant 0 : index
    %c0_126 = arith.constant 0 : index
    %355 = vector.load %arg7[%c0_125, %c0_126] : memref<4x32xf32, #tpu.memory_space<vmem>>, vector<2x32xf32>
    tpu.vector_store %arg7[%c0_125, %c0_126], %324 {strides = array<i32>} : memref<4x32xf32, #tpu.memory_space<vmem>>, vector<2x32xf32>,
    %c2_127 = arith.constant 2 : index
    %c0_128 = arith.constant 0 : index
    %356 = vector.load %arg7[%c2_127, %c0_128] : memref<4x32xf32, #tpu.memory_space<vmem>>, vector<2x32xf32>
    tpu.vector_store %arg7[%c2_127, %c0_128], %350 {strides = array<i32>} : memref<4x32xf32, #tpu.memory_space<vmem>>, vector<2x32xf32>,
    %357 = arith.truncf %326 : vector<2x32xf32> to vector<2x32xbf16>
    %358 = arith.truncf %352 : vector<2x32xf32> to vector<2x32xbf16>
    %c0_129 = arith.constant 0 : index
    %c0_130 = arith.constant 0 : index
    %359 = vector.load %arg6[%c0_129, %c0_130] : memref<4x32xf32, #tpu.memory_space<vmem>>, vector<4x32xf32>
    %360 = arith.truncf %359 : vector<4x32xf32> to vector<4x32xbf16>
    %cst_131 = arith.constant dense<0.000000e+00> : vector<4x256xf32>
    %361 = tpu.matmul %360, %3, %cst_131 {dimension_numbers = #tpu.dot_dimension_numbers<[1], [0], [0], [1], [0, 0, 1, 1], [], []>} : vector<4x32xbf16>, vector<32x256xbf16>, vector<4x256xf32> -> vector<4x256xf32>
    %c5_132 = arith.constant 5 : index
    %c0_133 = arith.constant 0 : index
    %c0_134 = arith.constant 0 : index
    %362 = vector.load %arg1[%c5_132, %c0_133, %c0_134] : memref<8x2x128xbf16, #tpu.memory_space<vmem>>, vector<1x2x128xbf16>
    %363 = vector.shape_cast %362 : vector<1x2x128xbf16> to vector<2x128xbf16>
    %364 = arith.extf %363 : vector<2x128xbf16> to vector<2x128xf32>
    %365 = vector.extract_strided_slice %361 {offsets = [0, 0], sizes = [2, 128], strides = [1, 1]} : vector<4x256xf32> to vector<2x128xf32>
    %366 = arith.addf %364, %365 : vector<2x128xf32>
    %c2_135 = arith.constant 2 : index
    %c0_136 = arith.constant 0 : index
    %c0_137 = arith.constant 0 : index
    %367 = vector.load %arg2[%c2_135, %c0_136, %c0_137] : memref<8x2x128xbf16, #tpu.memory_space<vmem>>, vector<1x2x128xbf16>
    %368 = vector.shape_cast %367 : vector<1x2x128xbf16> to vector<2x128xbf16>
    %369 = arith.extf %368 : vector<2x128xbf16> to vector<2x128xf32>
    %370 = vector.extract_strided_slice %361 {offsets = [2, 128], sizes = [2, 128], strides = [1, 1]} : vector<4x256xf32> to vector<2x128xf32>
    %371 = arith.addf %369, %370 : vector<2x128xf32>
    %c0_138 = arith.constant 0 : index
    %c0_139 = arith.constant 0 : index
    %372 = vector.load %arg7[%c0_138, %c0_139] : memref<4x32xf32, #tpu.memory_space<vmem>>, vector<2x32xf32>
    %373 = vector.extract_strided_slice %366 {offsets = [0, 0], sizes = [2, 32], strides = [1, 1]} : vector<2x128xf32> to vector<2x32xf32>
    %374 = arith.negf %373 : vector<2x32xf32>
    %375 = math.exp %374 : vector<2x32xf32>
    %cst_140 = arith.constant 1.000000e+00 : f32
    %376 = vector.broadcast %cst_140 : f32 to vector<2x32xf32>
    %377 = arith.addf %376, %375 : vector<2x32xf32>
    %378 = arith.divf %376, %377 : vector<2x32xf32>
    %379 = vector.extract_strided_slice %366 {offsets = [0, 32], sizes = [2, 32], strides = [1, 1]} : vector<2x128xf32> to vector<2x32xf32>
    %380 = arith.negf %379 : vector<2x32xf32>
    %381 = math.exp %380 : vector<2x32xf32>
    %cst_141 = arith.constant 1.000000e+00 : f32
    %382 = vector.broadcast %cst_141 : f32 to vector<2x32xf32>
    %383 = arith.addf %382, %381 : vector<2x32xf32>
    %384 = arith.divf %382, %383 : vector<2x32xf32>
    %385 = vector.extract_strided_slice %366 {offsets = [0, 64], sizes = [2, 32], strides = [1, 1]} : vector<2x128xf32> to vector<2x32xf32>
    %386 = math.tanh %385 : vector<2x32xf32>
    %387 = vector.extract_strided_slice %366 {offsets = [0, 96], sizes = [2, 32], strides = [1, 1]} : vector<2x128xf32> to vector<2x32xf32>
    %388 = arith.negf %387 : vector<2x32xf32>
    %389 = math.exp %388 : vector<2x32xf32>
    %cst_142 = arith.constant 1.000000e+00 : f32
    %390 = vector.broadcast %cst_142 : f32 to vector<2x32xf32>
    %391 = arith.addf %390, %389 : vector<2x32xf32>
    %392 = arith.divf %390, %391 : vector<2x32xf32>
    %393 = arith.mulf %384, %372 : vector<2x32xf32>
    %394 = arith.mulf %378, %386 : vector<2x32xf32>
    %395 = arith.addf %393, %394 : vector<2x32xf32>
    %396 = math.tanh %395 : vector<2x32xf32>
    %397 = arith.mulf %392, %396 : vector<2x32xf32>
    %c2_143 = arith.constant 2 : index
    %c0_144 = arith.constant 0 : index
    %398 = vector.load %arg7[%c2_143, %c0_144] : memref<4x32xf32, #tpu.memory_space<vmem>>, vector<2x32xf32>
    %399 = vector.extract_strided_slice %371 {offsets = [0, 0], sizes = [2, 32], strides = [1, 1]} : vector<2x128xf32> to vector<2x32xf32>
    %400 = arith.negf %399 : vector<2x32xf32>
    %401 = math.exp %400 : vector<2x32xf32>
    %cst_145 = arith.constant 1.000000e+00 : f32
    %402 = vector.broadcast %cst_145 : f32 to vector<2x32xf32>
    %403 = arith.addf %402, %401 : vector<2x32xf32>
    %404 = arith.divf %402, %403 : vector<2x32xf32>
    %405 = vector.extract_strided_slice %371 {offsets = [0, 32], sizes = [2, 32], strides = [1, 1]} : vector<2x128xf32> to vector<2x32xf32>
    %406 = arith.negf %405 : vector<2x32xf32>
    %407 = math.exp %406 : vector<2x32xf32>
    %cst_146 = arith.constant 1.000000e+00 : f32
    %408 = vector.broadcast %cst_146 : f32 to vector<2x32xf32>
    %409 = arith.addf %408, %407 : vector<2x32xf32>
    %410 = arith.divf %408, %409 : vector<2x32xf32>
    %411 = vector.extract_strided_slice %371 {offsets = [0, 64], sizes = [2, 32], strides = [1, 1]} : vector<2x128xf32> to vector<2x32xf32>
    %412 = math.tanh %411 : vector<2x32xf32>
    %413 = vector.extract_strided_slice %371 {offsets = [0, 96], sizes = [2, 32], strides = [1, 1]} : vector<2x128xf32> to vector<2x32xf32>
    %414 = arith.negf %413 : vector<2x32xf32>
    %415 = math.exp %414 : vector<2x32xf32>
    %cst_147 = arith.constant 1.000000e+00 : f32
    %416 = vector.broadcast %cst_147 : f32 to vector<2x32xf32>
    %417 = arith.addf %416, %415 : vector<2x32xf32>
    %418 = arith.divf %416, %417 : vector<2x32xf32>
    %419 = arith.mulf %410, %398 : vector<2x32xf32>
    %420 = arith.mulf %404, %412 : vector<2x32xf32>
    %421 = arith.addf %419, %420 : vector<2x32xf32>
    %422 = math.tanh %421 : vector<2x32xf32>
    %423 = arith.mulf %418, %422 : vector<2x32xf32>
    %c0_148 = arith.constant 0 : index
    %c0_149 = arith.constant 0 : index
    %424 = vector.load %arg6[%c0_148, %c0_149] : memref<4x32xf32, #tpu.memory_space<vmem>>, vector<2x32xf32>
    tpu.vector_store %arg6[%c0_148, %c0_149], %397 {strides = array<i32>} : memref<4x32xf32, #tpu.memory_space<vmem>>, vector<2x32xf32>,
    %c2_150 = arith.constant 2 : index
    %c0_151 = arith.constant 0 : index
    %425 = vector.load %arg6[%c2_150, %c0_151] : memref<4x32xf32, #tpu.memory_space<vmem>>, vector<2x32xf32>
    tpu.vector_store %arg6[%c2_150, %c0_151], %423 {strides = array<i32>} : memref<4x32xf32, #tpu.memory_space<vmem>>, vector<2x32xf32>,
    %c0_152 = arith.constant 0 : index
    %c0_153 = arith.constant 0 : index
    %426 = vector.load %arg7[%c0_152, %c0_153] : memref<4x32xf32, #tpu.memory_space<vmem>>, vector<2x32xf32>
    tpu.vector_store %arg7[%c0_152, %c0_153], %395 {strides = array<i32>} : memref<4x32xf32, #tpu.memory_space<vmem>>, vector<2x32xf32>,
    %c2_154 = arith.constant 2 : index
    %c0_155 = arith.constant 0 : index
    %427 = vector.load %arg7[%c2_154, %c0_155] : memref<4x32xf32, #tpu.memory_space<vmem>>, vector<2x32xf32>
    tpu.vector_store %arg7[%c2_154, %c0_155], %421 {strides = array<i32>} : memref<4x32xf32, #tpu.memory_space<vmem>>, vector<2x32xf32>,
    %428 = arith.truncf %397 : vector<2x32xf32> to vector<2x32xbf16>
    %429 = arith.truncf %423 : vector<2x32xf32> to vector<2x32xbf16>
    %c0_156 = arith.constant 0 : index
    %c0_157 = arith.constant 0 : index
    %430 = vector.load %arg6[%c0_156, %c0_157] : memref<4x32xf32, #tpu.memory_space<vmem>>, vector<4x32xf32>
    %431 = arith.truncf %430 : vector<4x32xf32> to vector<4x32xbf16>
    %cst_158 = arith.constant dense<0.000000e+00> : vector<4x256xf32>
    %432 = tpu.matmul %431, %3, %cst_158 {dimension_numbers = #tpu.dot_dimension_numbers<[1], [0], [0], [1], [0, 0, 1, 1], [], []>} : vector<4x32xbf16>, vector<32x256xbf16>, vector<4x256xf32> -> vector<4x256xf32>
    %c6_159 = arith.constant 6 : index
    %c0_160 = arith.constant 0 : index
    %c0_161 = arith.constant 0 : index
    %433 = vector.load %arg1[%c6_159, %c0_160, %c0_161] : memref<8x2x128xbf16, #tpu.memory_space<vmem>>, vector<1x2x128xbf16>
    %434 = vector.shape_cast %433 : vector<1x2x128xbf16> to vector<2x128xbf16>
    %435 = arith.extf %434 : vector<2x128xbf16> to vector<2x128xf32>
    %436 = vector.extract_strided_slice %432 {offsets = [0, 0], sizes = [2, 128], strides = [1, 1]} : vector<4x256xf32> to vector<2x128xf32>
    %437 = arith.addf %435, %436 : vector<2x128xf32>
    %c1_162 = arith.constant 1 : index
    %c0_163 = arith.constant 0 : index
    %c0_164 = arith.constant 0 : index
    %438 = vector.load %arg2[%c1_162, %c0_163, %c0_164] : memref<8x2x128xbf16, #tpu.memory_space<vmem>>, vector<1x2x128xbf16>
    %439 = vector.shape_cast %438 : vector<1x2x128xbf16> to vector<2x128xbf16>
    %440 = arith.extf %439 : vector<2x128xbf16> to vector<2x128xf32>
    %441 = vector.extract_strided_slice %432 {offsets = [2, 128], sizes = [2, 128], strides = [1, 1]} : vector<4x256xf32> to vector<2x128xf32>
    %442 = arith.addf %440, %441 : vector<2x128xf32>
    %c0_165 = arith.constant 0 : index
    %c0_166 = arith.constant 0 : index
    %443 = vector.load %arg7[%c0_165, %c0_166] : memref<4x32xf32, #tpu.memory_space<vmem>>, vector<2x32xf32>
    %444 = vector.extract_strided_slice %437 {offsets = [0, 0], sizes = [2, 32], strides = [1, 1]} : vector<2x128xf32> to vector<2x32xf32>
    %445 = arith.negf %444 : vector<2x32xf32>
    %446 = math.exp %445 : vector<2x32xf32>
    %cst_167 = arith.constant 1.000000e+00 : f32
    %447 = vector.broadcast %cst_167 : f32 to vector<2x32xf32>
    %448 = arith.addf %447, %446 : vector<2x32xf32>
    %449 = arith.divf %447, %448 : vector<2x32xf32>
    %450 = vector.extract_strided_slice %437 {offsets = [0, 32], sizes = [2, 32], strides = [1, 1]} : vector<2x128xf32> to vector<2x32xf32>
    %451 = arith.negf %450 : vector<2x32xf32>
    %452 = math.exp %451 : vector<2x32xf32>
    %cst_168 = arith.constant 1.000000e+00 : f32
    %453 = vector.broadcast %cst_168 : f32 to vector<2x32xf32>
    %454 = arith.addf %453, %452 : vector<2x32xf32>
    %455 = arith.divf %453, %454 : vector<2x32xf32>
    %456 = vector.extract_strided_slice %437 {offsets = [0, 64], sizes = [2, 32], strides = [1, 1]} : vector<2x128xf32> to vector<2x32xf32>
    %457 = math.tanh %456 : vector<2x32xf32>
    %458 = vector.extract_strided_slice %437 {offsets = [0, 96], sizes = [2, 32], strides = [1, 1]} : vector<2x128xf32> to vector<2x32xf32>
    %459 = arith.negf %458 : vector<2x32xf32>
    %460 = math.exp %459 : vector<2x32xf32>
    %cst_169 = arith.constant 1.000000e+00 : f32
    %461 = vector.broadcast %cst_169 : f32 to vector<2x32xf32>
    %462 = arith.addf %461, %460 : vector<2x32xf32>
    %463 = arith.divf %461, %462 : vector<2x32xf32>
    %464 = arith.mulf %455, %443 : vector<2x32xf32>
    %465 = arith.mulf %449, %457 : vector<2x32xf32>
    %466 = arith.addf %464, %465 : vector<2x32xf32>
    %467 = math.tanh %466 : vector<2x32xf32>
    %468 = arith.mulf %463, %467 : vector<2x32xf32>
    %c2_170 = arith.constant 2 : index
    %c0_171 = arith.constant 0 : index
    %469 = vector.load %arg7[%c2_170, %c0_171] : memref<4x32xf32, #tpu.memory_space<vmem>>, vector<2x32xf32>
    %470 = vector.extract_strided_slice %442 {offsets = [0, 0], sizes = [2, 32], strides = [1, 1]} : vector<2x128xf32> to vector<2x32xf32>
    %471 = arith.negf %470 : vector<2x32xf32>
    %472 = math.exp %471 : vector<2x32xf32>
    %cst_172 = arith.constant 1.000000e+00 : f32
    %473 = vector.broadcast %cst_172 : f32 to vector<2x32xf32>
    %474 = arith.addf %473, %472 : vector<2x32xf32>
    %475 = arith.divf %473, %474 : vector<2x32xf32>
    %476 = vector.extract_strided_slice %442 {offsets = [0, 32], sizes = [2, 32], strides = [1, 1]} : vector<2x128xf32> to vector<2x32xf32>
    %477 = arith.negf %476 : vector<2x32xf32>
    %478 = math.exp %477 : vector<2x32xf32>
    %cst_173 = arith.constant 1.000000e+00 : f32
    %479 = vector.broadcast %cst_173 : f32 to vector<2x32xf32>
    %480 = arith.addf %479, %478 : vector<2x32xf32>
    %481 = arith.divf %479, %480 : vector<2x32xf32>
    %482 = vector.extract_strided_slice %442 {offsets = [0, 64], sizes = [2, 32], strides = [1, 1]} : vector<2x128xf32> to vector<2x32xf32>
    %483 = math.tanh %482 : vector<2x32xf32>
    %484 = vector.extract_strided_slice %442 {offsets = [0, 96], sizes = [2, 32], strides = [1, 1]} : vector<2x128xf32> to vector<2x32xf32>
    %485 = arith.negf %484 : vector<2x32xf32>
    %486 = math.exp %485 : vector<2x32xf32>
    %cst_174 = arith.constant 1.000000e+00 : f32
    %487 = vector.broadcast %cst_174 : f32 to vector<2x32xf32>
    %488 = arith.addf %487, %486 : vector<2x32xf32>
    %489 = arith.divf %487, %488 : vector<2x32xf32>
    %490 = arith.mulf %481, %469 : vector<2x32xf32>
    %491 = arith.mulf %475, %483 : vector<2x32xf32>
    %492 = arith.addf %490, %491 : vector<2x32xf32>
    %493 = math.tanh %492 : vector<2x32xf32>
    %494 = arith.mulf %489, %493 : vector<2x32xf32>
    %c0_175 = arith.constant 0 : index
    %c0_176 = arith.constant 0 : index
    %495 = vector.load %arg6[%c0_175, %c0_176] : memref<4x32xf32, #tpu.memory_space<vmem>>, vector<2x32xf32>
    tpu.vector_store %arg6[%c0_175, %c0_176], %468 {strides = array<i32>} : memref<4x32xf32, #tpu.memory_space<vmem>>, vector<2x32xf32>,
    %c2_177 = arith.constant 2 : index
    %c0_178 = arith.constant 0 : index
    %496 = vector.load %arg6[%c2_177, %c0_178] : memref<4x32xf32, #tpu.memory_space<vmem>>, vector<2x32xf32>
    tpu.vector_store %arg6[%c2_177, %c0_178], %494 {strides = array<i32>} : memref<4x32xf32, #tpu.memory_space<vmem>>, vector<2x32xf32>,
    %c0_179 = arith.constant 0 : index
    %c0_180 = arith.constant 0 : index
    %497 = vector.load %arg7[%c0_179, %c0_180] : memref<4x32xf32, #tpu.memory_space<vmem>>, vector<2x32xf32>
    tpu.vector_store %arg7[%c0_179, %c0_180], %466 {strides = array<i32>} : memref<4x32xf32, #tpu.memory_space<vmem>>, vector<2x32xf32>,
    %c2_181 = arith.constant 2 : index
    %c0_182 = arith.constant 0 : index
    %498 = vector.load %arg7[%c2_181, %c0_182] : memref<4x32xf32, #tpu.memory_space<vmem>>, vector<2x32xf32>
    tpu.vector_store %arg7[%c2_181, %c0_182], %492 {strides = array<i32>} : memref<4x32xf32, #tpu.memory_space<vmem>>, vector<2x32xf32>,
    %499 = arith.truncf %468 : vector<2x32xf32> to vector<2x32xbf16>
    %500 = arith.truncf %494 : vector<2x32xf32> to vector<2x32xbf16>
    %c0_183 = arith.constant 0 : index
    %c0_184 = arith.constant 0 : index
    %501 = vector.load %arg6[%c0_183, %c0_184] : memref<4x32xf32, #tpu.memory_space<vmem>>, vector<4x32xf32>
    %502 = arith.truncf %501 : vector<4x32xf32> to vector<4x32xbf16>
    %cst_185 = arith.constant dense<0.000000e+00> : vector<4x256xf32>
    %503 = tpu.matmul %502, %3, %cst_185 {dimension_numbers = #tpu.dot_dimension_numbers<[1], [0], [0], [1], [0, 0, 1, 1], [], []>} : vector<4x32xbf16>, vector<32x256xbf16>, vector<4x256xf32> -> vector<4x256xf32>
    %c7_186 = arith.constant 7 : index
    %c0_187 = arith.constant 0 : index
    %c0_188 = arith.constant 0 : index
    %504 = vector.load %arg1[%c7_186, %c0_187, %c0_188] : memref<8x2x128xbf16, #tpu.memory_space<vmem>>, vector<1x2x128xbf16>
    %505 = vector.shape_cast %504 : vector<1x2x128xbf16> to vector<2x128xbf16>
    %506 = arith.extf %505 : vector<2x128xbf16> to vector<2x128xf32>
    %507 = vector.extract_strided_slice %503 {offsets = [0, 0], sizes = [2, 128], strides = [1, 1]} : vector<4x256xf32> to vector<2x128xf32>
    %508 = arith.addf %506, %507 : vector<2x128xf32>
    %c0_189 = arith.constant 0 : index
    %c0_190 = arith.constant 0 : index
    %c0_191 = arith.constant 0 : index
    %509 = vector.load %arg2[%c0_189, %c0_190, %c0_191] : memref<8x2x128xbf16, #tpu.memory_space<vmem>>, vector<1x2x128xbf16>
    %510 = vector.shape_cast %509 : vector<1x2x128xbf16> to vector<2x128xbf16>
    %511 = arith.extf %510 : vector<2x128xbf16> to vector<2x128xf32>
    %512 = vector.extract_strided_slice %503 {offsets = [2, 128], sizes = [2, 128], strides = [1, 1]} : vector<4x256xf32> to vector<2x128xf32>
    %513 = arith.addf %511, %512 : vector<2x128xf32>
    %c0_192 = arith.constant 0 : index
    %c0_193 = arith.constant 0 : index
    %514 = vector.load %arg7[%c0_192, %c0_193] : memref<4x32xf32, #tpu.memory_space<vmem>>, vector<2x32xf32>
    %515 = vector.extract_strided_slice %508 {offsets = [0, 0], sizes = [2, 32], strides = [1, 1]} : vector<2x128xf32> to vector<2x32xf32>
    %516 = arith.negf %515 : vector<2x32xf32>
    %517 = math.exp %516 : vector<2x32xf32>
    %cst_194 = arith.constant 1.000000e+00 : f32
    %518 = vector.broadcast %cst_194 : f32 to vector<2x32xf32>
    %519 = arith.addf %518, %517 : vector<2x32xf32>
    %520 = arith.divf %518, %519 : vector<2x32xf32>
    %521 = vector.extract_strided_slice %508 {offsets = [0, 32], sizes = [2, 32], strides = [1, 1]} : vector<2x128xf32> to vector<2x32xf32>
    %522 = arith.negf %521 : vector<2x32xf32>
    %523 = math.exp %522 : vector<2x32xf32>
    %cst_195 = arith.constant 1.000000e+00 : f32
    %524 = vector.broadcast %cst_195 : f32 to vector<2x32xf32>
    %525 = arith.addf %524, %523 : vector<2x32xf32>
    %526 = arith.divf %524, %525 : vector<2x32xf32>
    %527 = vector.extract_strided_slice %508 {offsets = [0, 64], sizes = [2, 32], strides = [1, 1]} : vector<2x128xf32> to vector<2x32xf32>
    %528 = math.tanh %527 : vector<2x32xf32>
    %529 = vector.extract_strided_slice %508 {offsets = [0, 96], sizes = [2, 32], strides = [1, 1]} : vector<2x128xf32> to vector<2x32xf32>
    %530 = arith.negf %529 : vector<2x32xf32>
    %531 = math.exp %530 : vector<2x32xf32>
    %cst_196 = arith.constant 1.000000e+00 : f32
    %532 = vector.broadcast %cst_196 : f32 to vector<2x32xf32>
    %533 = arith.addf %532, %531 : vector<2x32xf32>
    %534 = arith.divf %532, %533 : vector<2x32xf32>
    %535 = arith.mulf %526, %514 : vector<2x32xf32>
    %536 = arith.mulf %520, %528 : vector<2x32xf32>
    %537 = arith.addf %535, %536 : vector<2x32xf32>
    %538 = math.tanh %537 : vector<2x32xf32>
    %539 = arith.mulf %534, %538 : vector<2x32xf32>
    %c2_197 = arith.constant 2 : index
    %c0_198 = arith.constant 0 : index
    %540 = vector.load %arg7[%c2_197, %c0_198] : memref<4x32xf32, #tpu.memory_space<vmem>>, vector<2x32xf32>
    %541 = vector.extract_strided_slice %513 {offsets = [0, 0], sizes = [2, 32], strides = [1, 1]} : vector<2x128xf32> to vector<2x32xf32>
    %542 = arith.negf %541 : vector<2x32xf32>
    %543 = math.exp %542 : vector<2x32xf32>
    %cst_199 = arith.constant 1.000000e+00 : f32
    %544 = vector.broadcast %cst_199 : f32 to vector<2x32xf32>
    %545 = arith.addf %544, %543 : vector<2x32xf32>
    %546 = arith.divf %544, %545 : vector<2x32xf32>
    %547 = vector.extract_strided_slice %513 {offsets = [0, 32], sizes = [2, 32], strides = [1, 1]} : vector<2x128xf32> to vector<2x32xf32>
    %548 = arith.negf %547 : vector<2x32xf32>
    %549 = math.exp %548 : vector<2x32xf32>
    %cst_200 = arith.constant 1.000000e+00 : f32
    %550 = vector.broadcast %cst_200 : f32 to vector<2x32xf32>
    %551 = arith.addf %550, %549 : vector<2x32xf32>
    %552 = arith.divf %550, %551 : vector<2x32xf32>
    %553 = vector.extract_strided_slice %513 {offsets = [0, 64], sizes = [2, 32], strides = [1, 1]} : vector<2x128xf32> to vector<2x32xf32>
    %554 = math.tanh %553 : vector<2x32xf32>
    %555 = vector.extract_strided_slice %513 {offsets = [0, 96], sizes = [2, 32], strides = [1, 1]} : vector<2x128xf32> to vector<2x32xf32>
    %556 = arith.negf %555 : vector<2x32xf32>
    %557 = math.exp %556 : vector<2x32xf32>
    %cst_201 = arith.constant 1.000000e+00 : f32
    %558 = vector.broadcast %cst_201 : f32 to vector<2x32xf32>
    %559 = arith.addf %558, %557 : vector<2x32xf32>
    %560 = arith.divf %558, %559 : vector<2x32xf32>
    %561 = arith.mulf %552, %540 : vector<2x32xf32>
    %562 = arith.mulf %546, %554 : vector<2x32xf32>
    %563 = arith.addf %561, %562 : vector<2x32xf32>
    %564 = math.tanh %563 : vector<2x32xf32>
    %565 = arith.mulf %560, %564 : vector<2x32xf32>
    %c0_202 = arith.constant 0 : index
    %c0_203 = arith.constant 0 : index
    %566 = vector.load %arg6[%c0_202, %c0_203] : memref<4x32xf32, #tpu.memory_space<vmem>>, vector<2x32xf32>
    tpu.vector_store %arg6[%c0_202, %c0_203], %539 {strides = array<i32>} : memref<4x32xf32, #tpu.memory_space<vmem>>, vector<2x32xf32>,
    %c2_204 = arith.constant 2 : index
    %c0_205 = arith.constant 0 : index
    %567 = vector.load %arg6[%c2_204, %c0_205] : memref<4x32xf32, #tpu.memory_space<vmem>>, vector<2x32xf32>
    tpu.vector_store %arg6[%c2_204, %c0_205], %565 {strides = array<i32>} : memref<4x32xf32, #tpu.memory_space<vmem>>, vector<2x32xf32>,
    %c0_206 = arith.constant 0 : index
    %c0_207 = arith.constant 0 : index
    %568 = vector.load %arg7[%c0_206, %c0_207] : memref<4x32xf32, #tpu.memory_space<vmem>>, vector<2x32xf32>
    tpu.vector_store %arg7[%c0_206, %c0_207], %537 {strides = array<i32>} : memref<4x32xf32, #tpu.memory_space<vmem>>, vector<2x32xf32>,
    %c2_208 = arith.constant 2 : index
    %c0_209 = arith.constant 0 : index
    %569 = vector.load %arg7[%c2_208, %c0_209] : memref<4x32xf32, #tpu.memory_space<vmem>>, vector<2x32xf32>
    tpu.vector_store %arg7[%c2_208, %c0_209], %563 {strides = array<i32>} : memref<4x32xf32, #tpu.memory_space<vmem>>, vector<2x32xf32>,
    %570 = arith.truncf %539 : vector<2x32xf32> to vector<2x32xbf16>
    %571 = arith.truncf %565 : vector<2x32xf32> to vector<2x32xbf16>
    %572 = vector.shape_cast %73 : vector<2x32xbf16> to vector<1x2x32xbf16>
    %573 = vector.shape_cast %144 : vector<2x32xbf16> to vector<1x2x32xbf16>
    %574 = vector.shape_cast %215 : vector<2x32xbf16> to vector<1x2x32xbf16>
    %575 = vector.shape_cast %286 : vector<2x32xbf16> to vector<1x2x32xbf16>
    %576 = vector.shape_cast %357 : vector<2x32xbf16> to vector<1x2x32xbf16>
    %577 = vector.shape_cast %428 : vector<2x32xbf16> to vector<1x2x32xbf16>
    %578 = vector.shape_cast %499 : vector<2x32xbf16> to vector<1x2x32xbf16>
    %579 = vector.shape_cast %570 : vector<2x32xbf16> to vector<1x2x32xbf16>
    %580 = tpu.concatenate %572, %573, %574, %575, %576, %577, %578, %579 in 0 : vector<1x2x32xbf16>, vector<1x2x32xbf16>, vector<1x2x32xbf16>, vector<1x2x32xbf16>, vector<1x2x32xbf16>, vector<1x2x32xbf16>, vector<1x2x32xbf16>, vector<1x2x32xbf16> -> vector<8x2x32xbf16>
    %c0_210 = arith.constant 0 : index
    %c0_211 = arith.constant 0 : index
    %c0_212 = arith.constant 0 : index
    %581 = vector.load %arg4[%c0_210, %c0_211, %c0_212] : memref<8x2x32xbf16, #tpu.memory_space<vmem>>, vector<8x2x32xbf16>
    tpu.vector_store %arg4[%c0_210, %c0_211, %c0_212], %580 {strides = array<i32>} : memref<8x2x32xbf16, #tpu.memory_space<vmem>>, vector<8x2x32xbf16>,
    %582 = vector.shape_cast %571 : vector<2x32xbf16> to vector<1x2x32xbf16>
    %583 = vector.shape_cast %500 : vector<2x32xbf16> to vector<1x2x32xbf16>
    %584 = vector.shape_cast %429 : vector<2x32xbf16> to vector<1x2x32xbf16>
    %585 = vector.shape_cast %358 : vector<2x32xbf16> to vector<1x2x32xbf16>
    %586 = vector.shape_cast %287 : vector<2x32xbf16> to vector<1x2x32xbf16>
    %587 = vector.shape_cast %216 : vector<2x32xbf16> to vector<1x2x32xbf16>
    %588 = vector.shape_cast %145 : vector<2x32xbf16> to vector<1x2x32xbf16>
    %589 = vector.shape_cast %74 : vector<2x32xbf16> to vector<1x2x32xbf16>
    %590 = tpu.concatenate %582, %583, %584, %585, %586, %587, %588, %589 in 0 : vector<1x2x32xbf16>, vector<1x2x32xbf16>, vector<1x2x32xbf16>, vector<1x2x32xbf16>, vector<1x2x32xbf16>, vector<1x2x32xbf16>, vector<1x2x32xbf16>, vector<1x2x32xbf16> -> vector<8x2x32xbf16>
    %c0_213 = arith.constant 0 : index
    %c0_214 = arith.constant 0 : index
    %c0_215 = arith.constant 0 : index
    %591 = vector.load %arg5[%c0_213, %c0_214, %c0_215] : memref<8x2x32xbf16, #tpu.memory_space<vmem>>, vector<8x2x32xbf16>
    tpu.vector_store %arg5[%c0_213, %c0_214, %c0_215], %590 {strides = array<i32>} : memref<8x2x32xbf16, #tpu.memory_space<vmem>>, vector<8x2x32xbf16>,
    return
  }
  func.func @transform_0(%arg0: i32) -> (i32, i32, i32) {
    %c0_i32 = arith.constant 0 : i32
    %c0_i32_0 = arith.constant 0 : i32
    %c0_i32_1 = arith.constant 0 : i32
    return %arg0, %c0_i32, %c0_i32_0 : i32, i32, i32
  }
  func.func @transform_1(%arg0: i32) -> (i32, i32, i32) {
    %c0_i32 = arith.constant 0 : i32
    %0 = arith.subi %c0_i32, %arg0 : i32
    %c0_i32_0 = arith.constant 0 : i32
    %c1_i32 = arith.constant 1 : i32
    %c0_i32_1 = arith.constant 0 : i32
    return %0, %c0_i32_0, %c1_i32 : i32, i32, i32
  }
  func.func @transform_2(%arg0: i32) -> (i32, i32) {
    %c0_i32 = arith.constant 0 : i32
    %c0_i32_0 = arith.constant 0 : i32
    %c0_i32_1 = arith.constant 0 : i32
    return %c0_i32, %c0_i32_0 : i32, i32
  }
  func.func @transform_3(%arg0: i32) -> (i32, i32, i32) {
    %c0_i32 = arith.constant 0 : i32
    %c0_i32_0 = arith.constant 0 : i32
    %c0_i32_1 = arith.constant 0 : i32
    return %arg0, %c0_i32, %c0_i32_0 : i32, i32, i32
  }
  func.func @transform_4(%arg0: i32) -> (i32, i32, i32) {
    %c0_i32 = arith.constant 0 : i32
    %0 = arith.subi %c0_i32, %arg0 : i32
    %c0_i32_0 = arith.constant 0 : i32
    %c0_i32_1 = arith.constant 0 : i32
    %c0_i32_2 = arith.constant 0 : i32
    return %0, %c0_i32_0, %c0_i32_1 : i32, i32, i32
  }
}

module attributes {stable_mosaic.version = 11 : i64} {
  func.func @proj_pair_kernel(%arg0: i32, %arg1: memref<16x32xbf16, #tpu.memory_space<vmem>>, %arg2: memref<16x32xbf16, #tpu.memory_space<vmem>>, %arg3: memref<32x256xbf16, #tpu.memory_space<vmem>>, %arg4: memref<32x256xbf16, #tpu.memory_space<vmem>>, %arg5: memref<1x256xf32, #tpu.memory_space<vmem>>, %arg6: memref<16x256xbf16, #tpu.memory_space<vmem>>) attributes {dimension_semantics = [#tpu.dimension_semantics<parallel>], iteration_bounds = array<i64: 1>, scalar_prefetch = 0 : i64, scratch_operands = 0 : i64, tpu.core_type = #tpu.core_type<tc>, window_params = [{transform_indices = @transform_0, window_bounds = array<i64: 16, 32>}, {transform_indices = @transform_1, window_bounds = array<i64: 16, 32>}, {pipeline_mode = #tpu.pipeline_mode<synchronous>, transform_indices = @transform_2, window_bounds = array<i64: 32, 256>}, {pipeline_mode = #tpu.pipeline_mode<synchronous>, transform_indices = @transform_3, window_bounds = array<i64: 32, 256>}, {pipeline_mode = #tpu.pipeline_mode<synchronous>, transform_indices = @transform_4, window_bounds = array<i64: 1, 256>}, {transform_indices = @transform_5, window_bounds = array<i64: 16, 256>}]} {
    %c0 = arith.constant 0 : index
    %c0_0 = arith.constant 0 : index
    %0 = vector.load %arg1[%c0, %c0_0] : memref<16x32xbf16, #tpu.memory_space<vmem>>, vector<16x32xbf16>
    %c0_1 = arith.constant 0 : index
    %c0_2 = arith.constant 0 : index
    %1 = vector.load %arg3[%c0_1, %c0_2] : memref<32x256xbf16, #tpu.memory_space<vmem>>, vector<32x256xbf16>
    %cst = arith.constant dense<0.000000e+00> : vector<16x256xf32>
    %2 = tpu.matmul %0, %1, %cst {dimension_numbers = #tpu.dot_dimension_numbers<[1], [0], [0], [1], [0, 0, 1, 1], [], []>} : vector<16x32xbf16>, vector<32x256xbf16>, vector<16x256xf32> -> vector<16x256xf32>
    %c0_3 = arith.constant 0 : index
    %c0_4 = arith.constant 0 : index
    %3 = vector.load %arg2[%c0_3, %c0_4] : memref<16x32xbf16, #tpu.memory_space<vmem>>, vector<16x32xbf16>
    %c0_5 = arith.constant 0 : index
    %c0_6 = arith.constant 0 : index
    %4 = vector.load %arg4[%c0_5, %c0_6] : memref<32x256xbf16, #tpu.memory_space<vmem>>, vector<32x256xbf16>
    %cst_7 = arith.constant dense<0.000000e+00> : vector<16x256xf32>
    %5 = tpu.matmul %3, %4, %cst_7 {dimension_numbers = #tpu.dot_dimension_numbers<[1], [0], [0], [1], [0, 0, 1, 1], [], []>} : vector<16x32xbf16>, vector<32x256xbf16>, vector<16x256xf32> -> vector<16x256xf32>
    %6 = arith.addf %2, %5 : vector<16x256xf32>
    %c0_8 = arith.constant 0 : index
    %c0_9 = arith.constant 0 : index
    %7 = vector.load %arg5[%c0_8, %c0_9] : memref<1x256xf32, #tpu.memory_space<vmem>>, vector<1x256xf32>
    %8 = vector.broadcast %7 : vector<1x256xf32> to vector<16x256xf32>
    %9 = arith.addf %6, %8 : vector<16x256xf32>
    %10 = arith.truncf %9 : vector<16x256xf32> to vector<16x256xbf16>
    %c0_10 = arith.constant 0 : index
    %c0_11 = arith.constant 0 : index
    %11 = vector.load %arg6[%c0_10, %c0_11] : memref<16x256xbf16, #tpu.memory_space<vmem>>, vector<16x256xbf16>
    tpu.vector_store %arg6[%c0_10, %c0_11], %10 {strides = array<i32>} : memref<16x256xbf16, #tpu.memory_space<vmem>>, vector<16x256xbf16>,
    return
  }
  func.func @transform_0(%arg0: i32) -> (i32, i32) {
    %c0_i32 = arith.constant 0 : i32
    %c0_i32_0 = arith.constant 0 : i32
    return %arg0, %c0_i32 : i32, i32
  }
  func.func @transform_1(%arg0: i32) -> (i32, i32) {
    %c0_i32 = arith.constant 0 : i32
    %c0_i32_0 = arith.constant 0 : i32
    return %arg0, %c0_i32 : i32, i32
  }
  func.func @transform_2(%arg0: i32) -> (i32, i32) {
    %c0_i32 = arith.constant 0 : i32
    %c0_i32_0 = arith.constant 0 : i32
    %c0_i32_1 = arith.constant 0 : i32
    return %c0_i32, %c0_i32_0 : i32, i32
  }
  func.func @transform_3(%arg0: i32) -> (i32, i32) {
    %c0_i32 = arith.constant 0 : i32
    %c0_i32_0 = arith.constant 0 : i32
    %c0_i32_1 = arith.constant 0 : i32
    return %c0_i32, %c0_i32_0 : i32, i32
  }
  func.func @transform_4(%arg0: i32) -> (i32, i32) {
    %c0_i32 = arith.constant 0 : i32
    %c0_i32_0 = arith.constant 0 : i32
    %c0_i32_1 = arith.constant 0 : i32
    return %c0_i32, %c0_i32_0 : i32, i32
  }
  func.func @transform_5(%arg0: i32) -> (i32, i32) {
    %c0_i32 = arith.constant 0 : i32
    %c0_i32_0 = arith.constant 0 : i32
    return %arg0, %c0_i32 : i32, i32
  }
}

module attributes {stable_mosaic.version = 11 : i64} {
  func.func @proj_pair_kernel(%arg0: i32, %arg1: memref<16x32xbf16, #tpu.memory_space<vmem>>, %arg2: memref<16x32xbf16, #tpu.memory_space<vmem>>, %arg3: memref<32x10xbf16, #tpu.memory_space<vmem>>, %arg4: memref<32x10xbf16, #tpu.memory_space<vmem>>, %arg5: memref<1x10xf32, #tpu.memory_space<vmem>>, %arg6: memref<16x10xf32, #tpu.memory_space<vmem>>) attributes {dimension_semantics = [#tpu.dimension_semantics<parallel>], iteration_bounds = array<i64: 1>, scalar_prefetch = 0 : i64, scratch_operands = 0 : i64, tpu.core_type = #tpu.core_type<tc>, window_params = [{transform_indices = @transform_0, window_bounds = array<i64: 16, 32>}, {transform_indices = @transform_1, window_bounds = array<i64: 16, 32>}, {pipeline_mode = #tpu.pipeline_mode<synchronous>, transform_indices = @transform_2, window_bounds = array<i64: 32, 10>}, {pipeline_mode = #tpu.pipeline_mode<synchronous>, transform_indices = @transform_3, window_bounds = array<i64: 32, 10>}, {pipeline_mode = #tpu.pipeline_mode<synchronous>, transform_indices = @transform_4, window_bounds = array<i64: 1, 10>}, {transform_indices = @transform_5, window_bounds = array<i64: 16, 10>}]} {
    %c0 = arith.constant 0 : index
    %c0_0 = arith.constant 0 : index
    %0 = vector.load %arg1[%c0, %c0_0] : memref<16x32xbf16, #tpu.memory_space<vmem>>, vector<16x32xbf16>
    %c0_1 = arith.constant 0 : index
    %c0_2 = arith.constant 0 : index
    %1 = vector.load %arg3[%c0_1, %c0_2] : memref<32x10xbf16, #tpu.memory_space<vmem>>, vector<32x10xbf16>
    %cst = arith.constant dense<0.000000e+00> : vector<16x10xf32>
    %2 = tpu.matmul %0, %1, %cst {dimension_numbers = #tpu.dot_dimension_numbers<[1], [0], [0], [1], [0, 0, 1, 1], [], []>} : vector<16x32xbf16>, vector<32x10xbf16>, vector<16x10xf32> -> vector<16x10xf32>
    %c0_3 = arith.constant 0 : index
    %c0_4 = arith.constant 0 : index
    %3 = vector.load %arg2[%c0_3, %c0_4] : memref<16x32xbf16, #tpu.memory_space<vmem>>, vector<16x32xbf16>
    %c0_5 = arith.constant 0 : index
    %c0_6 = arith.constant 0 : index
    %4 = vector.load %arg4[%c0_5, %c0_6] : memref<32x10xbf16, #tpu.memory_space<vmem>>, vector<32x10xbf16>
    %cst_7 = arith.constant dense<0.000000e+00> : vector<16x10xf32>
    %5 = tpu.matmul %3, %4, %cst_7 {dimension_numbers = #tpu.dot_dimension_numbers<[1], [0], [0], [1], [0, 0, 1, 1], [], []>} : vector<16x32xbf16>, vector<32x10xbf16>, vector<16x10xf32> -> vector<16x10xf32>
    %6 = arith.addf %2, %5 : vector<16x10xf32>
    %c0_8 = arith.constant 0 : index
    %c0_9 = arith.constant 0 : index
    %7 = vector.load %arg5[%c0_8, %c0_9] : memref<1x10xf32, #tpu.memory_space<vmem>>, vector<1x10xf32>
    %8 = vector.broadcast %7 : vector<1x10xf32> to vector<16x10xf32>
    %9 = arith.addf %6, %8 : vector<16x10xf32>
    %c0_10 = arith.constant 0 : index
    %c0_11 = arith.constant 0 : index
    %10 = vector.load %arg6[%c0_10, %c0_11] : memref<16x10xf32, #tpu.memory_space<vmem>>, vector<16x10xf32>
    tpu.vector_store %arg6[%c0_10, %c0_11], %9 {strides = array<i32>} : memref<16x10xf32, #tpu.memory_space<vmem>>, vector<16x10xf32>,
    return
  }
  func.func @transform_0(%arg0: i32) -> (i32, i32) {
    %c0_i32 = arith.constant 0 : i32
    %c0_i32_0 = arith.constant 0 : i32
    return %arg0, %c0_i32 : i32, i32
  }
  func.func @transform_1(%arg0: i32) -> (i32, i32) {
    %c0_i32 = arith.constant 0 : i32
    %c0_i32_0 = arith.constant 0 : i32
    return %arg0, %c0_i32 : i32, i32
  }
  func.func @transform_2(%arg0: i32) -> (i32, i32) {
    %c0_i32 = arith.constant 0 : i32
    %c0_i32_0 = arith.constant 0 : i32
    %c0_i32_1 = arith.constant 0 : i32
    return %c0_i32, %c0_i32_0 : i32, i32
  }
  func.func @transform_3(%arg0: i32) -> (i32, i32) {
    %c0_i32 = arith.constant 0 : i32
    %c0_i32_0 = arith.constant 0 : i32
    %c0_i32_1 = arith.constant 0 : i32
    return %c0_i32, %c0_i32_0 : i32, i32
  }
  func.func @transform_4(%arg0: i32) -> (i32, i32) {
    %c0_i32 = arith.constant 0 : i32
    %c0_i32_0 = arith.constant 0 : i32
    %c0_i32_1 = arith.constant 0 : i32
    return %c0_i32, %c0_i32_0 : i32, i32
  }
  func.func @transform_5(%arg0: i32) -> (i32, i32) {
    %c0_i32 = arith.constant 0 : i32
    %c0_i32_0 = arith.constant 0 : i32
    return %arg0, %c0_i32 : i32, i32
  }
}

</mosaic_0001>

<llo_original>
// kernel: transcription_model_forward.5
$region0: #{transcription_model_forward.5}
  #allocation0 [shape = 'u32[]', space=smem, size = 0x4, offset = 0x4, fixed_abs, tag = 'smem constant byte address 0x4 - core index']
  #allocation1 [shape = 'u32[144,128]{1,0:T(1,128)}', space=vmem, size = 0x12000, scoped, tag = 'internal scratch']
  %s0 = inlined_call_operand.vmem [shape: f32[16,16], index: 0, kind: input, shape index: {}]
  %s1 = inlined_call_operand.vmem [shape: bf16[16,256], index: 1, kind: input, shape index: {}]
  %s2 = inlined_call_operand.vmem [shape: f32[1,256], index: 2, kind: input, shape index: {}]
  %s3 = inlined_call_operand.vmem [shape: bf16[16,256], index: 3, kind: output, shape index: {}]
  %s4 = sld [smem:[#allocation0]]
  $region22: #{transcription_model_forward.5} parent=0
    _
  %s6 = ssub.s32 1, %s4
  %s7 = scalar_select 0, %s6, %s4
  // Predicated region
  $region2: #{transcription_model_forward.5} parent=0 // pred_check
    _
  $region3: #{transcription_model_forward.5} parent=0 // pred_check_branch
    %9 = sbr.rel (0) target = $region5
  $region4: #{transcription_model_forward.5} parent=0 // pred_region
    _
  $region5: #{transcription_model_forward.5} parent=0 // pred_fallthru
    _
  // Predicated region
  $region6: #{transcription_model_forward.5} parent=0 // pred_check
    _
  $region7: #{transcription_model_forward.5} parent=0 // pred_check_branch
    %11 = sbr.rel (0) target = $region9
  $region8: #{transcription_model_forward.5} parent=0 // pred_region
    _
  $region9: #{transcription_model_forward.5} parent=0 // pred_fallthru
    _
  // Predicated region
  $region10: #{transcription_model_forward.5} parent=0 // pred_check
    _
  $region11: #{transcription_model_forward.5} parent=0 // pred_check_branch
    %13 = sbr.rel (0) target = $region13
  $region12: #{transcription_model_forward.5} parent=0 // pred_region
    _
  $region13: #{transcription_model_forward.5} parent=0 // pred_fallthru
    _
  %v15 = vld [vmem:[%s0] sm:$0xff]
  %v16 = vld [vmem:[%s0 + $0x8] sm:$0xff]
  %v17 = vpack.c.bf16 %v16, %v15
  %v18 = vld [vmem:[%s1] sm:$0xff]
  %v19 = vld [vmem:[%s1 + $0x8] sm:$0xff]
  %v20 = vld [vmem:[%s2] sm:$0x3]
  %v22 = vlaneseq
  %v23 = vshrl.u32 %v22, 7
  %v24 = vsub.s32 0, %v23
  %v25 = vrot.slane %v20, %v24
  %v26 = vlaneseq
  %v27 = vshrl.u32 %v26, 7
  %v28 = vsub.s32 1, %v27
  %v29 = vrot.slane %v20, %v28
  %v34 = vunpack.c.l.b16 %v18
  %v35 = vunpack.c.h.b16 %v18
  %v36 = vunpack.c.l.b16 %v19
  %v37 = vunpack.c.h.b16 %v19
  %v38 = vpack.c.b16 %v36, %v34
  %v39 = vpack.c.b16 %v37, %v35
  %vm42 = vcmask 130048
  %v44 = vsel %vm42, %v17, 0
  %46 = vmatprep.subr.bf16.mxu0 %v39
  %47 = vmatpush1.bf16.msra.mxu0 %v38
  %48 = vmatprep.subr.bf16.mxu0 0
  %49 = vmatpush1.bf16.msra.mxu0 0
  %50 = vmatprep.subr.bf16.mxu0 0
  %51 = vmatpush1.bf16.msra.mxu0 0
  %52 = vmatprep.subr.bf16.mxu0 0
  %53 = vmatpush1.bf16.msra.mxu0 0
  %54 = vmatprep.subr.bf16.mxu0 0
  %55 = vmatpush1.bf16.msra.mxu0 0
  %56 = vmatprep.subr.bf16.mxu0 0
  %57 = vmatpush1.bf16.msra.mxu0 0
  %58 = vmatprep.subr.bf16.mxu0 0
  %59 = vmatpush1.bf16.msra.mxu0 0
  %60 = vmatprep.subr.bf16.mxu0 0
  %61 = vmatpush1.bf16.msra.mxu0 0
  %62 = vmatprep.subr.bf16.mxu0 0
  %63 = vmatpush1.bf16.msra.mxu0 0
  %64 = vmatprep.subr.bf16.mxu0 0
  %65 = vmatpush1.bf16.msra.mxu0 0
  %66 = vmatprep.subr.bf16.mxu0 0
  %67 = vmatpush1.bf16.msra.mxu0 0
  %68 = vmatprep.subr.bf16.mxu0 0
  %69 = vmatpush1.bf16.msra.mxu0 0
  %70 = vmatprep.subr.bf16.mxu0 0
  %71 = vmatpush1.bf16.msra.mxu0 0
  %72 = vmatprep.subr.bf16.mxu0 0
  %73 = vmatpush1.bf16.msra.mxu0 0
  %74 = vmatprep.subr.bf16.mxu0 0
  %75 = vmatpush1.bf16.msra.mxu0 0
  %76 = vmatprep.subr.bf16.mxu0 0
  %77 = vmatpush1.bf16.msra.mxu0 0
  %78 = vmatprep.mubr.bf16.mxu0 0
  %79 = vmatmul.mubr.bf16.gmra.mrb[0].mxu0 %v44
  %v80 = vpop.f32.mrb[0].mxu0
  %v81 = vadd.f32 %v25, %v80
  %v82 = vpop.f32.mrb[0].mxu0
  %v83 = vadd.f32 %v29, %v82
  %v84 = vpop.f32.mrb[0].mxu0
  %v85 = vadd.f32 %v25, %v84
  %v86 = vpop.f32.mrb[0].mxu0
  %v87 = vadd.f32 %v29, %v86
  %88 = vdwg.mxu0
  %v89 = vpack.c.bf16 %v85, %v81
  %v90 = vpack.c.bf16 %v87, %v83
  %v93 = vunpack.c.l.b16 %v89
  %v94 = vunpack.c.l.b16 %v90
  %v95 = vunpack.c.h.b16 %v89
  %v96 = vunpack.c.h.b16 %v90
  %v97 = vpack.c.b16 %v94, %v93
  %v98 = vpack.c.b16 %v96, %v95
  %101 = vst [vmem:[%s3] sm:$0xff] %v97
  %102 = vst [vmem:[%s3 + $0x8] sm:$0xff] %v98
  // Predicated region
  $region14: #{transcription_model_forward.5} parent=0 // pred_check
    _
  $region15: #{transcription_model_forward.5} parent=0 // pred_check_branch
    %104 = sbr.rel (0) target = $region17
  $region16: #{transcription_model_forward.5} parent=0 // pred_region
    _
  $region17: #{transcription_model_forward.5} parent=0 // pred_fallthru
    _
  // Predicated region
  $region18: #{transcription_model_forward.5} parent=0 // pred_check
    _
  $region19: #{transcription_model_forward.5} parent=0 // pred_check_branch
    %106 = sbr.rel (0) target = $region21
  $region20: #{transcription_model_forward.5} parent=0 // pred_region
    _
  $region21: #{transcription_model_forward.5} parent=0 // pred_fallthru
    _

// kernel: transcription_model_forward.7
$region0: #{transcription_model_forward.7}
  #allocation0 [shape = 'u32[]', space=smem, size = 0x4, offset = 0x4, fixed_abs, tag = 'smem constant byte address 0x4 - core index']
  #allocation1 [shape = 'u32[144,128]{1,0:T(1,128)}', space=vmem, size = 0x12000, scoped, tag = 'internal scratch']
  %s0 = inlined_call_operand.vmem [shape: bf16[16,32], index: 0, kind: input, shape index: {}]
  %s1 = inlined_call_operand.vmem [shape: bf16[16,32], index: 1, kind: input, shape index: {}]
  %s2 = inlined_call_operand.vmem [shape: bf16[32,256], index: 2, kind: input, shape index: {}]
  %s3 = inlined_call_operand.vmem [shape: bf16[32,256], index: 3, kind: input, shape index: {}]
  %s4 = inlined_call_operand.vmem [shape: f32[1,256], index: 4, kind: input, shape index: {}]
  %s5 = inlined_call_operand.vmem [shape: bf16[16,256], index: 5, kind: output, shape index: {}]
  %s6 = sld [smem:[#allocation0]]
  $region30: #{transcription_model_forward.7} parent=0
    _
  %s8 = ssub.s32 1, %s6
  %s9 = scalar_select 0, %s8, %s6
  // Predicated region
  $region2: #{transcription_model_forward.7} parent=0 // pred_check
    _
  $region3: #{transcription_model_forward.7} parent=0 // pred_check_branch
    %11 = sbr.rel (0) target = $region5
  $region4: #{transcription_model_forward.7} parent=0 // pred_region
    _
  $region5: #{transcription_model_forward.7} parent=0 // pred_fallthru
    _
  // Predicated region
  $region6: #{transcription_model_forward.7} parent=0 // pred_check
    _
  $region7: #{transcription_model_forward.7} parent=0 // pred_check_branch
    %13 = sbr.rel (0) target = $region9
  $region8: #{transcription_model_forward.7} parent=0 // pred_region
    _
  $region9: #{transcription_model_forward.7} parent=0 // pred_fallthru
    _
  // Predicated region
  $region10: #{transcription_model_forward.7} parent=0 // pred_check
    _
  $region11: #{transcription_model_forward.7} parent=0 // pred_check_branch
    %15 = sbr.rel (0) target = $region13
  $region12: #{transcription_model_forward.7} parent=0 // pred_region
    _
  $region13: #{transcription_model_forward.7} parent=0 // pred_fallthru
    _
  // Predicated region
  $region14: #{transcription_model_forward.7} parent=0 // pred_check
    _
  $region15: #{transcription_model_forward.7} parent=0 // pred_check_branch
    %17 = sbr.rel (0) target = $region17
  $region16: #{transcription_model_forward.7} parent=0 // pred_region
    _
  $region17: #{transcription_model_forward.7} parent=0 // pred_fallthru
    _
  // Predicated region
  $region18: #{transcription_model_forward.7} parent=0 // pred_check
    _
  $region19: #{transcription_model_forward.7} parent=0 // pred_check_branch
    %19 = sbr.rel (0) target = $region21
  $region20: #{transcription_model_forward.7} parent=0 // pred_region
    _
  $region21: #{transcription_model_forward.7} parent=0 // pred_fallthru
    _
  %v21 = vld [vmem:[%s0] sm:$0xf]
  %v22 = vld [vmem:[%s0 + $0x4] sm:$0xf]
  %v23 = vld [vmem:[%s2] sm:$0xff]
  %v24 = vld [vmem:[%s2 + $0x8] sm:$0xff]
  %v25 = vld [vmem:[%s2 + $0x10] sm:$0xff]
  %v26 = vld [vmem:[%s2 + $0x18] sm:$0xff]
  %v27 = vld [vmem:[%s1] sm:$0xf]
  %v28 = vld [vmem:[%s1 + $0x4] sm:$0xf]
  %v29 = vld [vmem:[%s3] sm:$0xff]
  %v30 = vld [vmem:[%s3 + $0x8] sm:$0xff]
  %v31 = vld [vmem:[%s3 + $0x10] sm:$0xff]
  %v32 = vld [vmem:[%s3 + $0x18] sm:$0xff]
  %v35 = vunpack.c.l.b16 %v27
  %v36 = vunpack.c.l.b16 %v28
  %v37 = vpack.c.b16 %v36, %v35
  %v42 = vunpack.c.l.b16 %v29
  %v43 = vunpack.c.h.b16 %v29
  %v44 = vunpack.c.l.b16 %v30
  %v45 = vunpack.c.h.b16 %v30
  %v46 = vunpack.c.l.b16 %v31
  %v47 = vunpack.c.h.b16 %v31
  %v48 = vunpack.c.l.b16 %v32
  %v49 = vunpack.c.h.b16 %v32
  %v50 = vpack.c.b16 %v44, %v42
  %v51 = vpack.c.b16 %v45, %v43
  %v52 = vpack.c.b16 %v48, %v46
  %v53 = vpack.c.b16 %v49, %v47
  %vm58 = vcmask 261120
  %v60 = vsel %vm58, %v37, 0
  %62 = vmatprep.subr.bf16.mxu0 %v51
  %63 = vmatpush1.bf16.msra.mxu0 %v50
  %64 = vmatprep.subr.bf16.mxu0 %v53
  %65 = vmatpush1.bf16.msra.mxu0 %v52
  %66 = vmatprep.subr.bf16.mxu0 0
  %67 = vmatpush1.bf16.msra.mxu0 0
  %68 = vmatprep.subr.bf16.mxu0 0
  %69 = vmatpush1.bf16.msra.mxu0 0
  %70 = vmatprep.subr.bf16.mxu0 0
  %71 = vmatpush1.bf16.msra.mxu0 0
  %72 = vmatprep.subr.bf16.mxu0 0
  %73 = vmatpush1.bf16.msra.mxu0 0
  %74 = vmatprep.subr.bf16.mxu0 0
  %75 = vmatpush1.bf16.msra.mxu0 0
  %76 = vmatprep.subr.bf16.mxu0 0
  %77 = vmatpush1.bf16.msra.mxu0 0
  %78 = vmatprep.subr.bf16.mxu0 0
  %79 = vmatpush1.bf16.msra.mxu0 0
  %80 = vmatprep.subr.bf16.mxu0 0
  %81 = vmatpush1.bf16.msra.mxu0 0
  %82 = vmatprep.subr.bf16.mxu0 0
  %83 = vmatpush1.bf16.msra.mxu0 0
  %84 = vmatprep.subr.bf16.mxu0 0
  %85 = vmatpush1.bf16.msra.mxu0 0
  %86 = vmatprep.subr.bf16.mxu0 0
  %87 = vmatpush1.bf16.msra.mxu0 0
  %88 = vmatprep.subr.bf16.mxu0 0
  %89 = vmatpush1.bf16.msra.mxu0 0
  %90 = vmatprep.subr.bf16.mxu0 0
  %91 = vmatpush1.bf16.msra.mxu0 0
  %92 = vmatprep.subr.bf16.mxu0 0
  %93 = vmatpush1.bf16.msra.mxu0 0
  %94 = vmatprep.mubr.bf16.mxu0 0
  %95 = vmatmul.mubr.bf16.gmra.mrb[0].mxu0 %v60
  %v96 = vpop.f32.mrb[0].mxu0
  %v97 = vadd.f32 0.0, %v96
  %v98 = vpop.f32.mrb[0].mxu0
  %v99 = vadd.f32 0.0, %v98
  %v100 = vpop.f32.mrb[0].mxu0
  %v101 = vadd.f32 0.0, %v100
  %v102 = vpop.f32.mrb[0].mxu0
  %v103 = vadd.f32 0.0, %v102
  %104 = vdwg.mxu0
  %v107 = vunpack.c.l.b16 %v21
  %v108 = vunpack.c.l.b16 %v22
  %v109 = vpack.c.b16 %v108, %v107
  %v114 = vunpack.c.l.b16 %v23
  %v115 = vunpack.c.h.b16 %v23
  %v116 = vunpack.c.l.b16 %v24
  %v117 = vunpack.c.h.b16 %v24
  %v118 = vunpack.c.l.b16 %v25
  %v119 = vunpack.c.h.b16 %v25
  %v120 = vunpack.c.l.b16 %v26
  %v121 = vunpack.c.h.b16 %v26
  %v122 = vpack.c.b16 %v116, %v114
  %v123 = vpack.c.b16 %v117, %v115
  %v124 = vpack.c.b16 %v120, %v118
  %v125 = vpack.c.b16 %v121, %v119
  %v131 = vsel %vm58, %v109, 0
  %133 = vmatprep.subr.bf16.mxu0 %v123
  %134 = vmatpush1.bf16.msra.mxu0 %v122
  %135 = vmatprep.subr.bf16.mxu0 %v125
  %136 = vmatpush1.bf16.msra.mxu0 %v124
  %137 = vmatprep.subr.bf16.mxu0 0
  %138 = vmatpush1.bf16.msra.mxu0 0
  %139 = vmatprep.subr.bf16.mxu0 0
  %140 = vmatpush1.bf16.msra.mxu0 0
  %141 = vmatprep.subr.bf16.mxu0 0
  %142 = vmatpush1.bf16.msra.mxu0 0
  %143 = vmatprep.subr.bf16.mxu0 0
  %144 = vmatpush1.bf16.msra.mxu0 0
  %145 = vmatprep.subr.bf16.mxu0 0
  %146 = vmatpush1.bf16.msra.mxu0 0
  %147 = vmatprep.subr.bf16.mxu0 0
  %148 = vmatpush1.bf16.msra.mxu0 0
  %149 = vmatprep.subr.bf16.mxu0 0
  %150 = vmatpush1.bf16.msra.mxu0 0
  %151 = vmatprep.subr.bf16.mxu0 0
  %152 = vmatpush1.bf16.msra.mxu0 0
  %153 = vmatprep.subr.bf16.mxu0 0
  %154 = vmatpush1.bf16.msra.mxu0 0
  %155 = vmatprep.subr.bf16.mxu0 0
  %156 = vmatpush1.bf16.msra.mxu0 0
  %157 = vmatprep.subr.bf16.mxu0 0
  %158 = vmatpush1.bf16.msra.mxu0 0
  %159 = vmatprep.subr.bf16.mxu0 0
  %160 = vmatpush1.bf16.msra.mxu0 0
  %161 = vmatprep.subr.bf16.mxu0 0
  %162 = vmatpush1.bf16.msra.mxu0 0
  %163 = vmatprep.subr.bf16.mxu0 0
  %164 = vmatpush1.bf16.msra.mxu0 0
  %165 = vmatprep.mubr.bf16.mxu0 0
  %166 = vmatmul.mubr.bf16.gmra.mrb[0].mxu0 %v131
  %v167 = vpop.f32.mrb[0].mxu0
  %v168 = vadd.f32 %v97, %v167
  %v169 = vpop.f32.mrb[0].mxu0
  %v170 = vadd.f32 %v99, %v169
  %v171 = vpop.f32.mrb[0].mxu0
  %v172 = vadd.f32 %v101, %v171
  %v173 = vpop.f32.mrb[0].mxu0
  %v174 = vadd.f32 %v103, %v173
  %175 = vdwg.mxu0
  %v176 = vld [vmem:[%s4] sm:$0x3]
  %v178 = vlaneseq
  %v179 = vshrl.u32 %v178, 7
  %v180 = vsub.s32 0, %v179
  %v181 = vrot.slane %v176, %v180
  %v182 = vlaneseq
  %v183 = vshrl.u32 %v182, 7
  %v184 = vsub.s32 1, %v183
  %v185 = vrot.slane %v176, %v184
  %v188 = vadd.f32 %v168, %v181
  %v189 = vadd.f32 %v170, %v185
  %v190 = vadd.f32 %v172, %v181
  %v191 = vadd.f32 %v174, %v185
  %v192 = vpack.c.bf16 %v190, %v188
  %v193 = vpack.c.bf16 %v191, %v189
  %v196 = vunpack.c.l.b16 %v192
  %v197 = vunpack.c.l.b16 %v193
  %v198 = vunpack.c.h.b16 %v192
  %v199 = vunpack.c.h.b16 %v193
  %v200 = vpack.c.b16 %v197, %v196
  %v201 = vpack.c.b16 %v199, %v198
  %204 = vst [vmem:[%s5] sm:$0xff] %v200
  %205 = vst [vmem:[%s5 + $0x8] sm:$0xff] %v201
  // Predicated region
  $region22: #{transcription_model_forward.7} parent=0 // pred_check
    _
  $region23: #{transcription_model_forward.7} parent=0 // pred_check_branch
    %207 = sbr.rel (0) target = $region25
  $region24: #{transcription_model_forward.7} parent=0 // pred_region
    _
  $region25: #{transcription_model_forward.7} parent=0 // pred_fallthru
    _
  // Predicated region
  $region26: #{transcription_model_forward.7} parent=0 // pred_check
    _
  $region27: #{transcription_model_forward.7} parent=0 // pred_check_branch
    %209 = sbr.rel (0) target = $region29
  $region28: #{transcription_model_forward.7} parent=0 // pred_region
    _
  $region29: #{transcription_model_forward.7} parent=0 // pred_fallthru
    _

// kernel: transcription_model_forward.9
$region0: #{transcription_model_forward.9}
  #allocation0 [shape = 'u32[]', space=smem, size = 0x4, offset = 0x4, fixed_abs, tag = 'smem constant byte address 0x4 - core index']
  #allocation1 [shape = 'u32[144,128]{1,0:T(1,128)}', space=vmem, size = 0x12000, scoped, tag = 'internal scratch']
  %s0 = inlined_call_operand.vmem [shape: bf16[16,32], index: 0, kind: input, shape index: {}]
  %s1 = inlined_call_operand.vmem [shape: bf16[16,32], index: 1, kind: input, shape index: {}]
  %s2 = inlined_call_operand.vmem [shape: bf16[32,10], index: 2, kind: input, shape index: {}]
  %s3 = inlined_call_operand.vmem [shape: bf16[32,10], index: 3, kind: input, shape index: {}]
  %s4 = inlined_call_operand.vmem [shape: f32[1,10], index: 4, kind: input, shape index: {}]
  %s5 = inlined_call_operand.vmem [shape: f32[16,10], index: 5, kind: output, shape index: {}]
  %s6 = sld [smem:[#allocation0]]
  $region30: #{transcription_model_forward.9} parent=0
    _
  %s8 = ssub.s32 1, %s6
  %s9 = scalar_select 0, %s8, %s6
  // Predicated region
  $region2: #{transcription_model_forward.9} parent=0 // pred_check
    _
  $region3: #{transcription_model_forward.9} parent=0 // pred_check_branch
    %11 = sbr.rel (0) target = $region5
  $region4: #{transcription_model_forward.9} parent=0 // pred_region
    _
  $region5: #{transcription_model_forward.9} parent=0 // pred_fallthru
    _
  // Predicated region
  $region6: #{transcription_model_forward.9} parent=0 // pred_check
    _
  $region7: #{transcription_model_forward.9} parent=0 // pred_check_branch
    %13 = sbr.rel (0) target = $region9
  $region8: #{transcription_model_forward.9} parent=0 // pred_region
    _
  $region9: #{transcription_model_forward.9} parent=0 // pred_fallthru
    _
  // Predicated region
  $region10: #{transcription_model_forward.9} parent=0 // pred_check
    _
  $region11: #{transcription_model_forward.9} parent=0 // pred_check_branch
    %15 = sbr.rel (0) target = $region13
  $region12: #{transcription_model_forward.9} parent=0 // pred_region
    _
  $region13: #{transcription_model_forward.9} parent=0 // pred_fallthru
    _
  // Predicated region
  $region14: #{transcription_model_forward.9} parent=0 // pred_check
    _
  $region15: #{transcription_model_forward.9} parent=0 // pred_check_branch
    %17 = sbr.rel (0) target = $region17
  $region16: #{transcription_model_forward.9} parent=0 // pred_region
    _
  $region17: #{transcription_model_forward.9} parent=0 // pred_fallthru
    _
  // Predicated region
  $region18: #{transcription_model_forward.9} parent=0 // pred_check
    _
  $region19: #{transcription_model_forward.9} parent=0 // pred_check_branch
    %19 = sbr.rel (0) target = $region21
  $region20: #{transcription_model_forward.9} parent=0 // pred_region
    _
  $region21: #{transcription_model_forward.9} parent=0 // pred_fallthru
    _
  %v21 = vld [vmem:[%s0] sm:$0xf]
  %v22 = vld [vmem:[%s0 + $0x4] sm:$0xf]
  %v23 = vld [vmem:[%s2] sm:$0xf]
  %v24 = vld [vmem:[%s2 + $0x4] sm:$0xf]
  %v25 = vld [vmem:[%s2 + $0x8] sm:$0xf]
  %v26 = vld [vmem:[%s2 + $0xc] sm:$0xf]
  %v27 = vld [vmem:[%s1] sm:$0xf]
  %v28 = vld [vmem:[%s1 + $0x4] sm:$0xf]
  %v29 = vld [vmem:[%s3] sm:$0xf]
  %v30 = vld [vmem:[%s3 + $0x4] sm:$0xf]
  %v31 = vld [vmem:[%s3 + $0x8] sm:$0xf]
  %v32 = vld [vmem:[%s3 + $0xc] sm:$0xf]
  %v35 = vunpack.c.l.b16 %v27
  %v36 = vunpack.c.l.b16 %v28
  %v37 = vpack.c.b16 %v36, %v35
  %v42 = vunpack.c.l.b16 %v29
  %v43 = vunpack.c.l.b16 %v30
  %v44 = vunpack.c.l.b16 %v31
  %v45 = vunpack.c.l.b16 %v32
  %v46 = vpack.c.b16 %v43, %v42
  %v47 = vpack.c.b16 %v45, %v44
  %vm50 = vcmask 261120
  %v52 = vsel %vm50, %v37, 0
  %54 = vmatprep.subr.bf16.mxu0 0
  %55 = vmatpush1.bf16.msra.mxu0 %v46
  %56 = vmatprep.subr.bf16.mxu0 0
  %57 = vmatpush1.bf16.msra.mxu0 %v47
  %58 = vmatprep.subr.bf16.mxu0 0
  %59 = vmatpush1.bf16.msra.mxu0 0
  %60 = vmatprep.subr.bf16.mxu0 0
  %61 = vmatpush1.bf16.msra.mxu0 0
  %62 = vmatprep.subr.bf16.mxu0 0
  %63 = vmatpush1.bf16.msra.mxu0 0
  %64 = vmatprep.subr.bf16.mxu0 0
  %65 = vmatpush1.bf16.msra.mxu0 0
  %66 = vmatprep.subr.bf16.mxu0 0
  %67 = vmatpush1.bf16.msra.mxu0 0
  %68 = vmatprep.subr.bf16.mxu0 0
  %69 = vmatpush1.bf16.msra.mxu0 0
  %70 = vmatprep.subr.bf16.mxu0 0
  %71 = vmatpush1.bf16.msra.mxu0 0
  %72 = vmatprep.subr.bf16.mxu0 0
  %73 = vmatpush1.bf16.msra.mxu0 0
  %74 = vmatprep.subr.bf16.mxu0 0
  %75 = vmatpush1.bf16.msra.mxu0 0
  %76 = vmatprep.subr.bf16.mxu0 0
  %77 = vmatpush1.bf16.msra.mxu0 0
  %78 = vmatprep.subr.bf16.mxu0 0
  %79 = vmatpush1.bf16.msra.mxu0 0
  %80 = vmatprep.subr.bf16.mxu0 0
  %81 = vmatpush1.bf16.msra.mxu0 0
  %82 = vmatprep.subr.bf16.mxu0 0
  %83 = vmatpush1.bf16.msra.mxu0 0
  %84 = vmatprep.subr.bf16.mxu0 0
  %85 = vmatpush1.bf16.msra.mxu0 0
  %86 = vmatprep.mubr.bf16.mxu0 0
  %87 = vmatmul.mubr.bf16.gmra.mrb[0].mxu0 %v52
  %v88 = vpop.f32.mrb[0].mxu0
  %v89 = vadd.f32 0.0, %v88
  %v90 = vpop.f32.mrb[0].mxu0
  %v91 = vpop.f32.mrb[0].mxu0
  %v92 = vadd.f32 0.0, %v91
  %v93 = vpop.f32.mrb[0].mxu0
  %94 = vdwg.mxu0
  %v97 = vunpack.c.l.b16 %v21
  %v98 = vunpack.c.l.b16 %v22
  %v99 = vpack.c.b16 %v98, %v97
  %v104 = vunpack.c.l.b16 %v23
  %v105 = vunpack.c.l.b16 %v24
  %v106 = vunpack.c.l.b16 %v25
  %v107 = vunpack.c.l.b16 %v26
  %v108 = vpack.c.b16 %v105, %v104
  %v109 = vpack.c.b16 %v107, %v106
  %v113 = vsel %vm50, %v99, 0
  %115 = vmatprep.subr.bf16.mxu0 0
  %116 = vmatpush1.bf16.msra.mxu0 %v108
  %117 = vmatprep.subr.bf16.mxu0 0
  %118 = vmatpush1.bf16.msra.mxu0 %v109
  %119 = vmatprep.subr.bf16.mxu0 0
  %120 = vmatpush1.bf16.msra.mxu0 0
  %121 = vmatprep.subr.bf16.mxu0 0
  %122 = vmatpush1.bf16.msra.mxu0 0
  %123 = vmatprep.subr.bf16.mxu0 0
  %124 = vmatpush1.bf16.msra.mxu0 0
  %125 = vmatprep.subr.bf16.mxu0 0
  %126 = vmatpush1.bf16.msra.mxu0 0
  %127 = vmatprep.subr.bf16.mxu0 0
  %128 = vmatpush1.bf16.msra.mxu0 0
  %129 = vmatprep.subr.bf16.mxu0 0
  %130 = vmatpush1.bf16.msra.mxu0 0
  %131 = vmatprep.subr.bf16.mxu0 0
  %132 = vmatpush1.bf16.msra.mxu0 0
  %133 = vmatprep.subr.bf16.mxu0 0
  %134 = vmatpush1.bf16.msra.mxu0 0
  %135 = vmatprep.subr.bf16.mxu0 0
  %136 = vmatpush1.bf16.msra.mxu0 0
  %137 = vmatprep.subr.bf16.mxu0 0
  %138 = vmatpush1.bf16.msra.mxu0 0
  %139 = vmatprep.subr.bf16.mxu0 0
  %140 = vmatpush1.bf16.msra.mxu0 0
  %141 = vmatprep.subr.bf16.mxu0 0
  %142 = vmatpush1.bf16.msra.mxu0 0
  %143 = vmatprep.subr.bf16.mxu0 0
  %144 = vmatpush1.bf16.msra.mxu0 0
  %145 = vmatprep.subr.bf16.mxu0 0
  %146 = vmatpush1.bf16.msra.mxu0 0
  %147 = vmatprep.mubr.bf16.mxu0 0
  %148 = vmatmul.mubr.bf16.gmra.mrb[0].mxu0 %v113
  %v149 = vpop.f32.mrb[0].mxu0
  %v150 = vadd.f32 %v89, %v149
  %v151 = vpop.f32.mrb[0].mxu0
  %v152 = vpop.f32.mrb[0].mxu0
  %v153 = vadd.f32 %v92, %v152
  %v154 = vpop.f32.mrb[0].mxu0
  %155 = vdwg.mxu0
  %v156 = vld [vmem:[%s4] sm:$0x1]
  %v158 = vlaneseq
  %v159 = vshrl.u32 %v158, 7
  %v160 = vsub.s32 0, %v159
  %v161 = vrot.slane %v156, %v160
  %v163 = vadd.f32 %v150, %v161
  %v164 = vadd.f32 %v153, %v161
  %vm165 = vcmask 80896
  %166 = vst.msk [vmem:[%s5] sm:$0xff] %vm165, %v163
  %167 = vst.msk [vmem:[%s5 + $0x8] sm:$0xff] %vm165, %v164
  // Predicated region
  $region22: #{transcription_model_forward.9} parent=0 // pred_check
    _
  $region23: #{transcription_model_forward.9} parent=0 // pred_check_branch
    %169 = sbr.rel (0) target = $region25
  $region24: #{transcription_model_forward.9} parent=0 // pred_region
    _
  $region25: #{transcription_model_forward.9} parent=0 // pred_fallthru
    _
  // Predicated region
  $region26: #{transcription_model_forward.9} parent=0 // pred_check
    _
  $region27: #{transcription_model_forward.9} parent=0 // pred_check_branch
    %171 = sbr.rel (0) target = $region29
  $region28: #{transcription_model_forward.9} parent=0 // pred_region
    _
  $region29: #{transcription_model_forward.9} parent=0 // pred_fallthru
    _

// kernel: transcription_model_forward.6
$region0: #{transcription_model_forward.6}
  #allocation0 [shape = 'u32[]', space=smem, size = 0x4, offset = 0x4, fixed_abs, tag = 'smem constant byte address 0x4 - core index']
  #allocation1 [shape = 'u32[144,128]{1,0:T(1,128)}', space=vmem, size = 0x12000, scoped, tag = 'internal scratch']
  #allocation2 [shape = 'f32[4,32]{1,0:T(4,128)}', space=vmem, size = 0x800, scoped, tag = 'scratch operand']
  #allocation3 [shape = 'f32[4,32]{1,0:T(4,128)}', space=vmem, size = 0x800, scoped, tag = 'scratch operand']
  %s0 = inlined_call_operand.vmem [shape: bf16[8,2,256], index: 0, kind: input, shape index: {}, may-alias: {0,1}]
  %s1 = inlined_call_operand.vmem [shape: bf16[8,2,256], index: 1, kind: input, shape index: {}, may-alias: {0,1}]
  %s2 = inlined_call_operand.vmem [shape: bf16[32,256], index: 2, kind: input, shape index: {}]
  %s3 = inlined_call_operand.vmem [shape: bf16[8,2,32], index: 3, kind: output, shape index: {0}]
  %s4 = inlined_call_operand.vmem [shape: bf16[8,2,32], index: 4, kind: output, shape index: {1}]
  %5 = xla_tuple %s3, %s4
  %s6 = sld [smem:[#allocation0]]
  $region116: #{transcription_model_forward.6} parent=0
    _
  %s8 = ssub.s32 1, %s6
  %s9 = scalar_select 0, %s8, %s6
  $region1: #{transcription_model_forward.6} parent=0
    #allocation4 [shape = 'u8[4096]{0}', space=vmem, size = 0x1000, scoped, tag = 'input window, operand 0, single buffered']
    #allocation5 [shape = 'u8[4096]{0}', space=vmem, size = 0x1000, scoped, tag = 'input window, operand 1, single buffered']
    // Predicated region
    $region2: #{transcription_model_forward.6} parent=1 // pred_check
      _
    $region3: #{transcription_model_forward.6} parent=1 // pred_check_branch
      %11 = sbr.rel (0) target = $region5
    $region4: #{transcription_model_forward.6} parent=1 // pred_region
      // Predicated region
      $region6: #{transcription_model_forward.6} parent=4 // pred_check
        _
      $region7: #{transcription_model_forward.6} parent=4 // pred_check_branch
        %13 = sbr.rel (0) target = $region9
      $region8: #{transcription_model_forward.6} parent=4 // pred_region
        // Predicated region
        $region10: #{transcription_model_forward.6} parent=8 // pred_check
          _
        $region11: #{transcription_model_forward.6} parent=8 // pred_check_branch
          %15 = sbr.rel target = $region13
        $region12: #{transcription_model_forward.6} parent=8 // pred_region
          // Predicated region
          $region25: #{transcription_model_forward.6} parent=12 // pred_check
            _
          $region26: #{transcription_model_forward.6} parent=12 // pred_check_branch
            %44 = sbr.rel (0) target = $region28
          $region27: #{transcription_model_forward.6} parent=12 // pred_region
            loop: start=0, step=1, limit=1
            $region29: #{transcription_model_forward.6} parent=27 // loop_pre_header
              _
            $region30: #{transcription_model_forward.6} parent=27 // loop_header
              %s46 = sphi 0, %s50
              %p47 = scmp.ge.s32.totalorder %s46, 1
              %s51 = sphi %s0, %s0
              %s52 = sphi [#allocation4], [#allocation4]
            $region31: #{transcription_model_forward.6} parent=27 // loop_header_branch
              %49 = sbr.rel (%p47) target = $region35
            $region32: #{transcription_model_forward.6} parent=27 // loop_body
              _
            $region33: #{transcription_model_forward.6} parent=27 // loop_footer
              %s50 = sadd.s32 1, %s46
            $region34: #{transcription_model_forward.6} parent=27 // loop_footer_branch
              %45 = sbr.rel target = $region30
            $region35: #{transcription_model_forward.6} parent=27 // loop_exit
              _
            loop: start=0, step=1, limit=1
            $region36: #{transcription_model_forward.6} parent=27 // loop_pre_header
              _
            $region37: #{transcription_model_forward.6} parent=27 // loop_header
              %s55 = sphi 0, %s59
              %p56 = scmp.ge.s32.totalorder %s55, 1
              %s60 = sphi %s0, %s0
              %s61 = sphi [#allocation4], [#allocation4]
            $region38: #{transcription_model_forward.6} parent=27 // loop_header_branch
              %58 = sbr.rel (%p56) target = $region42
            $region39: #{transcription_model_forward.6} parent=27 // loop_body
              %v62 = vld [vmem:[%s60] sm:$0x1]
              %63 = vst [vmem:[%s61] sm:$0x1] %v62
              %v64 = vld [vmem:[%s60 + $0x2] sm:$0x1]
              %65 = vst [vmem:[%s61 + $0x1] sm:$0x1] %v64
              %v66 = vld [vmem:[%s60 + $0x4] sm:$0x1]
              %67 = vst [vmem:[%s61 + $0x2] sm:$0x1] %v66
              %v68 = vld [vmem:[%s60 + $0x6] sm:$0x1]
              %69 = vst [vmem:[%s61 + $0x3] sm:$0x1] %v68
              %v70 = vld [vmem:[%s60 + $0x8] sm:$0x1]
              %71 = vst [vmem:[%s61 + $0x4] sm:$0x1] %v70
              %v72 = vld [vmem:[%s60 + $0xa] sm:$0x1]
              %73 = vst [vmem:[%s61 + $0x5] sm:$0x1] %v72
              %v74 = vld [vmem:[%s60 + $0xc] sm:$0x1]
              %75 = vst [vmem:[%s61 + $0x6] sm:$0x1] %v74
              %v76 = vld [vmem:[%s60 + $0xe] sm:$0x1]
              %77 = vst [vmem:[%s61 + $0x7] sm:$0x1] %v76
            $region40: #{transcription_model_forward.6} parent=27 // loop_footer
              %s59 = sadd.s32 1, %s55
            $region41: #{transcription_model_forward.6} parent=27 // loop_footer_branch
              %54 = sbr.rel target = $region37
            $region42: #{transcription_model_forward.6} parent=27 // loop_exit
              _
          $region28: #{transcription_model_forward.6} parent=12 // pred_fallthru
            _
        $region13: #{transcription_model_forward.6} parent=8 // pred_fallthru
          _
        // Predicated region
        $region14: #{transcription_model_forward.6} parent=8 // pred_check
          _
        $region15: #{transcription_model_forward.6} parent=8 // pred_check_branch
          %17 = sbr.rel (0) target = $region17
        $region16: #{transcription_model_forward.6} parent=8 // pred_region
          loop: start=0, step=1, limit=1
          $region18: #{transcription_model_forward.6} parent=16 // loop_pre_header
            _
          $region19: #{transcription_model_forward.6} parent=16 // loop_header
            %s20 = sphi 0, %s24
            %p21 = scmp.ge.s32.totalorder %s20, 1
            %s25 = sphi %s0, %s0
            %s26 = sphi [#allocation4], [#allocation4]
          $region20: #{transcription_model_forward.6} parent=16 // loop_header_branch
            %23 = sbr.rel (%p21) target = $region24
          $region21: #{transcription_model_forward.6} parent=16 // loop_body
            %v27 = vld [vmem:[%s25] sm:$0x1]
            %28 = vst [vmem:[%s26] sm:$0x1] %v27
            %v29 = vld [vmem:[%s25 + $0x2] sm:$0x1]
            %30 = vst [vmem:[%s26 + $0x1] sm:$0x1] %v29
            %v31 = vld [vmem:[%s25 + $0x4] sm:$0x1]
            %32 = vst [vmem:[%s26 + $0x2] sm:$0x1] %v31
            %v33 = vld [vmem:[%s25 + $0x6] sm:$0x1]
            %34 = vst [vmem:[%s26 + $0x3] sm:$0x1] %v33
            %v35 = vld [vmem:[%s25 + $0x8] sm:$0x1]
            %36 = vst [vmem:[%s26 + $0x4] sm:$0x1] %v35
            %v37 = vld [vmem:[%s25 + $0xa] sm:$0x1]
            %38 = vst [vmem:[%s26 + $0x5] sm:$0x1] %v37
            %v39 = vld [vmem:[%s25 + $0xc] sm:$0x1]
            %40 = vst [vmem:[%s26 + $0x6] sm:$0x1] %v39
            %v41 = vld [vmem:[%s25 + $0xe] sm:$0x1]
            %42 = vst [vmem:[%s26 + $0x7] sm:$0x1] %v41
          $region22: #{transcription_model_forward.6} parent=16 // loop_footer
            %s24 = sadd.s32 1, %s20
          $region23: #{transcription_model_forward.6} parent=16 // loop_footer_branch
            %19 = sbr.rel target = $region19
          $region24: #{transcription_model_forward.6} parent=16 // loop_exit
            _
        $region17: #{transcription_model_forward.6} parent=8 // pred_fallthru
          _
      $region9: #{transcription_model_forward.6} parent=4 // pred_fallthru
        _
      %78 = vnop
    $region5: #{transcription_model_forward.6} parent=1 // pred_fallthru
      _
    // Predicated region
    $region43: #{transcription_model_forward.6} parent=1 // pred_check
      _
    $region44: #{transcription_model_forward.6} parent=1 // pred_check_branch
      %80 = sbr.rel (0) target = $region46
    $region45: #{transcription_model_forward.6} parent=1 // pred_region
      %s81 = ssub.s32 0, 0
      %s82 = smul.u32 8, %s81
      %s83 = smul.addr %s82, 2
      %s84 = sadd.s32 1, %s83
      %s85 = scalar_lea.vmem %s1, %s84
      // Predicated region
      $region47: #{transcription_model_forward.6} parent=45 // pred_check
        _
      $region48: #{transcription_model_forward.6} parent=45 // pred_check_branch
        %87 = sbr.rel (0) target = $region50
      $region49: #{transcription_model_forward.6} parent=45 // pred_region
        // Predicated region
        $region51: #{transcription_model_forward.6} parent=49 // pred_check
          _
        $region52: #{transcription_model_forward.6} parent=49 // pred_check_branch
          %89 = sbr.rel target = $region54
        $region53: #{transcription_model_forward.6} parent=49 // pred_region
          // Predicated region
          $region66: #{transcription_model_forward.6} parent=53 // pred_check
            _
          $region67: #{transcription_model_forward.6} parent=53 // pred_check_branch
            %118 = sbr.rel (0) target = $region69
          $region68: #{transcription_model_forward.6} parent=53 // pred_region
            loop: start=0, step=1, limit=1
            $region70: #{transcription_model_forward.6} parent=68 // loop_pre_header
              _
            $region71: #{transcription_model_forward.6} parent=68 // loop_header
              %s120 = sphi 0, %s124
              %p121 = scmp.ge.s32.totalorder %s120, 1
              %s125 = sphi %s85, %s85
              %s126 = sphi [#allocation5], [#allocation5]
            $region72: #{transcription_model_forward.6} parent=68 // loop_header_branch
              %123 = sbr.rel (%p121) target = $region76
            $region73: #{transcription_model_forward.6} parent=68 // loop_body
              _
            $region74: #{transcription_model_forward.6} parent=68 // loop_footer
              %s124 = sadd.s32 1, %s120
            $region75: #{transcription_model_forward.6} parent=68 // loop_footer_branch
              %119 = sbr.rel target = $region71
            $region76: #{transcription_model_forward.6} parent=68 // loop_exit
              _
            loop: start=0, step=1, limit=1
            $region77: #{transcription_model_forward.6} parent=68 // loop_pre_header
              _
            $region78: #{transcription_model_forward.6} parent=68 // loop_header
              %s129 = sphi 0, %s133
              %p130 = scmp.ge.s32.totalorder %s129, 1
              %s134 = sphi %s85, %s85
              %s135 = sphi [#allocation5], [#allocation5]
            $region79: #{transcription_model_forward.6} parent=68 // loop_header_branch
              %132 = sbr.rel (%p130) target = $region83
            $region80: #{transcription_model_forward.6} parent=68 // loop_body
              %v136 = vld [vmem:[%s134] sm:$0x1]
              %137 = vst [vmem:[%s135] sm:$0x1] %v136
              %v138 = vld [vmem:[%s134 + $0x2] sm:$0x1]
              %139 = vst [vmem:[%s135 + $0x1] sm:$0x1] %v138
              %v140 = vld [vmem:[%s134 + $0x4] sm:$0x1]
              %141 = vst [vmem:[%s135 + $0x2] sm:$0x1] %v140
              %v142 = vld [vmem:[%s134 + $0x6] sm:$0x1]
              %143 = vst [vmem:[%s135 + $0x3] sm:$0x1] %v142
              %v144 = vld [vmem:[%s134 + $0x8] sm:$0x1]
              %145 = vst [vmem:[%s135 + $0x4] sm:$0x1] %v144
              %v146 = vld [vmem:[%s134 + $0xa] sm:$0x1]
              %147 = vst [vmem:[%s135 + $0x5] sm:$0x1] %v146
              %v148 = vld [vmem:[%s134 + $0xc] sm:$0x1]
              %149 = vst [vmem:[%s135 + $0x6] sm:$0x1] %v148
              %v150 = vld [vmem:[%s134 + $0xe] sm:$0x1]
              %151 = vst [vmem:[%s135 + $0x7] sm:$0x1] %v150
            $region81: #{transcription_model_forward.6} parent=68 // loop_footer
              %s133 = sadd.s32 1, %s129
            $region82: #{transcription_model_forward.6} parent=68 // loop_footer_branch
              %128 = sbr.rel target = $region78
            $region83: #{transcription_model_forward.6} parent=68 // loop_exit
              _
          $region69: #{transcription_model_forward.6} parent=53 // pred_fallthru
            _
        $region54: #{transcription_model_forward.6} parent=49 // pred_fallthru
          _
        // Predicated region
        $region55: #{transcription_model_forward.6} parent=49 // pred_check
          _
        $region56: #{transcription_model_forward.6} parent=49 // pred_check_branch
          %91 = sbr.rel (0) target = $region58
        $region57: #{transcription_model_forward.6} parent=49 // pred_region
          loop: start=0, step=1, limit=1
          $region59: #{transcription_model_forward.6} parent=57 // loop_pre_header
            _
          $region60: #{transcription_model_forward.6} parent=57 // loop_header
            %s94 = sphi 0, %s98
            %p95 = scmp.ge.s32.totalorder %s94, 1
            %s99 = sphi %s85, %s85
            %s100 = sphi [#allocation5], [#allocation5]
          $region61: #{transcription_model_forward.6} parent=57 // loop_header_branch
            %97 = sbr.rel (%p95) target = $region65
          $region62: #{transcription_model_forward.6} parent=57 // loop_body
            %v101 = vld [vmem:[%s99] sm:$0x1]
            %102 = vst [vmem:[%s100] sm:$0x1] %v101
            %v103 = vld [vmem:[%s99 + $0x2] sm:$0x1]
            %104 = vst [vmem:[%s100 + $0x1] sm:$0x1] %v103
            %v105 = vld [vmem:[%s99 + $0x4] sm:$0x1]
            %106 = vst [vmem:[%s100 + $0x2] sm:$0x1] %v105
            %v107 = vld [vmem:[%s99 + $0x6] sm:$0x1]
            %108 = vst [vmem:[%s100 + $0x3] sm:$0x1] %v107
            %v109 = vld [vmem:[%s99 + $0x8] sm:$0x1]
            %110 = vst [vmem:[%s100 + $0x4] sm:$0x1] %v109
            %v111 = vld [vmem:[%s99 + $0xa] sm:$0x1]
            %112 = vst [vmem:[%s100 + $0x5] sm:$0x1] %v111
            %v113 = vld [vmem:[%s99 + $0xc] sm:$0x1]
            %114 = vst [vmem:[%s100 + $0x6] sm:$0x1] %v113
            %v115 = vld [vmem:[%s99 + $0xe] sm:$0x1]
            %116 = vst [vmem:[%s100 + $0x7] sm:$0x1] %v115
          $region63: #{transcription_model_forward.6} parent=57 // loop_footer
            %s98 = sadd.s32 1, %s94
          $region64: #{transcription_model_forward.6} parent=57 // loop_footer_branch
            %93 = sbr.rel target = $region60
          $region65: #{transcription_model_forward.6} parent=57 // loop_exit
            _
        $region58: #{transcription_model_forward.6} parent=49 // pred_fallthru
          _
      $region50: #{transcription_model_forward.6} parent=45 // pred_fallthru
        _
      %152 = vnop
    $region46: #{transcription_model_forward.6} parent=1 // pred_fallthru
      _
    // Predicated region
    $region84: #{transcription_model_forward.6} parent=1 // pred_check
      _
    $region85: #{transcription_model_forward.6} parent=1 // pred_check_branch
      %154 = sbr.rel (0) target = $region87
    $region86: #{transcription_model_forward.6} parent=1 // pred_region
      _
    $region87: #{transcription_model_forward.6} parent=1 // pred_fallthru
      _
    // Predicated region
    $region88: #{transcription_model_forward.6} parent=1 // pred_check
      _
    $region89: #{transcription_model_forward.6} parent=1 // pred_check_branch
      %156 = sbr.rel (0) target = $region91
    $region90: #{transcription_model_forward.6} parent=1 // pred_region
      _
    $region91: #{transcription_model_forward.6} parent=1 // pred_fallthru
      _
    // Predicated region
    $region92: #{transcription_model_forward.6} parent=1 // pred_check
      _
    $region93: #{transcription_model_forward.6} parent=1 // pred_check_branch
      %158 = sbr.rel (0) target = $region95
    $region94: #{transcription_model_forward.6} parent=1 // pred_region
      _
    $region95: #{transcription_model_forward.6} parent=1 // pred_fallthru
      _
    %s159 = ssub.s32 0, 0
    %s160 = smul.u32 8, %s159
    %p161 = scmp.lt.s32.totalorder %s160, 7
    %s162 = scalar_select %p161, %s160, 7
    %s163 = scalar_lea.vmem %s4, %s162
    %s164 = ssub.s32 0, 0
    %s165 = smul.u32 8, %s164
    %s166 = ssub.s32 0, 0
    %s167 = smul.u32 8, %s166
    %p168 = scmp.lt.s32.totalorder %s167, 7
    %s169 = scalar_select %p168, %s167, 7
    %s170 = scalar_lea.vmem %s4, %s169
    %s171 = ssub.s32 0, 0
    %s172 = smul.u32 8, %s171
    %p174 = scmp.eq.s32.totalorder 0, 0
    // Predicated region
    $region96: #{transcription_model_forward.6} parent=1 // pred_check
      %p175 = pneg %p174
    $region97: #{transcription_model_forward.6} parent=1 // pred_check_branch
      %177 = sbr.rel (%p175) target = $region99
    $region98: #{transcription_model_forward.6} parent=1 // pred_region
      %vm178 = vcmask 257024
      %179 = vst.msk [vmem:[#allocation2] sm:$0xf] %vm178, 0.0
      %180 = vst.msk [vmem:[#allocation3] sm:$0xf] %vm178, 0.0
    $region99: #{transcription_model_forward.6} parent=1 // pred_fallthru
      _
    %v181 = vld [vmem:[%s2] sm:$0xff]
    %v182 = vld [vmem:[%s2 + $0x8] sm:$0xff]
    %v183 = vld [vmem:[%s2 + $0x10] sm:$0xff]
    %v184 = vld [vmem:[%s2 + $0x18] sm:$0xff]
    %v185 = vld [vmem:[#allocation2] sm:$0xf]
    %v186 = vpack.c.bf16 %v185, %v185
    %v191 = vunpack.c.l.b16 %v181
    %v192 = vunpack.c.h.b16 %v181
    %v193 = vunpack.c.l.b16 %v182
    %v194 = vunpack.c.h.b16 %v182
    %v195 = vunpack.c.l.b16 %v183
    %v196 = vunpack.c.h.b16 %v183
    %v197 = vunpack.c.l.b16 %v184
    %v198 = vunpack.c.h.b16 %v184
    %v199 = vpack.c.b16 %v193, %v191
    %v200 = vpack.c.b16 %v194, %v192
    %v201 = vpack.c.b16 %v197, %v195
    %v202 = vpack.c.b16 %v198, %v196
    %vm207 = vcmask 261120
    %v209 = vsel %vm207, %v186, 0
    %211 = vmatprep.subr.bf16.mxu0 %v200
    %212 = vmatpush1.bf16.msra.mxu0 %v199
    %213 = vmatprep.subr.bf16.mxu0 %v202
    %214 = vmatpush1.bf16.msra.mxu0 %v201
    %215 = vmatprep.subr.bf16.mxu0 0
    %216 = vmatpush1.bf16.msra.mxu0 0
    %217 = vmatprep.subr.bf16.mxu0 0
    %218 = vmatpush1.bf16.msra.mxu0 0
    %219 = vmatprep.subr.bf16.mxu0 0
    %220 = vmatpush1.bf16.msra.mxu0 0
    %221 = vmatprep.subr.bf16.mxu0 0
    %222 = vmatpush1.bf16.msra.mxu0 0
    %223 = vmatprep.subr.bf16.mxu0 0
    %224 = vmatpush1.bf16.msra.mxu0 0
    %225 = vmatprep.subr.bf16.mxu0 0
    %226 = vmatpush1.bf16.msra.mxu0 0
    %227 = vmatprep.subr.bf16.mxu0 0
    %228 = vmatpush1.bf16.msra.mxu0 0
    %229 = vmatprep.subr.bf16.mxu0 0
    %230 = vmatpush1.bf16.msra.mxu0 0
    %231 = vmatprep.subr.bf16.mxu0 0
    %232 = vmatpush1.bf16.msra.mxu0 0
    %233 = vmatprep.subr.bf16.mxu0 0
    %234 = vmatpush1.bf16.msra.mxu0 0
    %235 = vmatprep.subr.bf16.mxu0 0
    %236 = vmatpush1.bf16.msra.mxu0 0
    %237 = vmatprep.subr.bf16.mxu0 0
    %238 = vmatpush1.bf16.msra.mxu0 0
    %239 = vmatprep.subr.bf16.mxu0 0
    %240 = vmatpush1.bf16.msra.mxu0 0
    %241 = vmatprep.subr.bf16.mxu0 0
    %242 = vmatpush1.bf16.msra.mxu0 0
    %243 = vmatprep.mubr.bf16.mxu0 0
    %244 = vmatmul.mubr.bf16.gmra.mrb[0].mxu0 %v209
    %v245 = vpop.f32.mrb[0].mxu0
    %v246 = vadd.f32 0.0, %v245
    %v247 = vpop.f32.mrb[0].mxu0
    %v248 = vadd.f32 0.0, %v247
    %v249 = vpop.f32.mrb[0].mxu0
    %v250 = vpop.f32.mrb[0].mxu0
    %251 = vdwg.mxu0
    %v252 = vld [vmem:[#allocation4] sm:$0x1]
    %v253 = vunpack.c.l.bf16 %v252
    %v254 = vadd.f32 %v253, %v246
    %s255 = scalar_lea.vmem [#allocation5], 7
    %v256 = vld [vmem:[%s255] sm:$0x1]
    %v257 = vunpack.c.l.bf16 %v256
    %v260 = vunpack.c.l.s4 1983009808
    %v261 = vunpack.c.0.s8 %v260
    %v262 = vlaneseq
    %v263 = vshrl.u32 %v262, 7
    %v264 = vsub.s32 %v261, %v263
    %v265 = vrot.slane %v248, %v264
    %v266 = vcombine.high %v265, %v265
    %v268 = vadd.f32 %v257, %v266
    %v269 = vld [vmem:[#allocation3] sm:$0x3]
    %v270 = vxor.u32 %v254, 2147483648
    %v271 = vmul.f32 %v270, 1.442695
    %v272 = vpow.pop %v271
    %v273 = vadd.f32 %v272, 1.0
    %v274 = vrcp.pop %v273
    %v275 = vmul.f32 1.0, %v274
    %v276 = vtanh.pop %v254
    %v279 = vunpack.c.l.s4 1983009808
    %v280 = vunpack.c.0.s8 %v279
    %v281 = vlaneseq
    %v282 = vshrl.u32 %v281, 7
    %v283 = vsub.s32 %v280, %v282
    %v284 = vrot.slane %v269, %v283
    %285 = vrot.lane.b32.xlu0 %v284, 32
    %v286 = vpop.permute.xlu0 %285
    %v288 = vmul.f32 %v275, %v286
    %290 = vrot.lane.b32.xlu0 %v276, 64
    %v291 = vpop.permute.xlu0 %290
    %v293 = vmul.f32 %v275, %v291
    %295 = vrot.lane.b32.xlu0 %v293, 32
    %v296 = vpop.permute.xlu0 %295
    %v298 = vadd.f32 %v288, %v296
    %v299 = vtanh.pop %v298
    %301 = vrot.lane.b32.xlu0 %v299, 64
    %v302 = vpop.permute.xlu0 %301
    %v304 = vmul.f32 %v275, %v302
    %v305 = vld [vmem:[#allocation3 + $0x2] sm:$0x3]
    %v306 = vxor.u32 %v268, 2147483648
    %v307 = vmul.f32 %v306, 1.442695
    %v308 = vpow.pop %v307
    %v309 = vadd.f32 %v308, 1.0
    %v310 = vrcp.pop %v309
    %v311 = vmul.f32 1.0, %v310
    %v312 = vtanh.pop %v268
    %v315 = vunpack.c.l.s4 1983009808
    %v316 = vunpack.c.0.s8 %v315
    %v317 = vlaneseq
    %v318 = vshrl.u32 %v317, 7
    %v319 = vsub.s32 %v316, %v318
    %v320 = vrot.slane %v305, %v319
    %321 = vrot.lane.b32.xlu0 %v320, 32
    %v322 = vpop.permute.xlu0 %321
    %v324 = vmul.f32 %v311, %v322
    %326 = vrot.lane.b32.xlu0 %v312, 64
    %v327 = vpop.permute.xlu0 %326
    %v329 = vmul.f32 %v311, %v327
    %331 = vrot.lane.b32.xlu0 %v329, 32
    %v332 = vpop.permute.xlu0 %331
    %v334 = vadd.f32 %v324, %v332
    %v335 = vtanh.pop %v334
    %337 = vrot.lane.b32.xlu0 %v335, 64
    %v338 = vpop.permute.xlu0 %337
    %v340 = vmul.f32 %v311, %v338
    %v343 = vunpack.c.l.s4 1983009808
    %v344 = vunpack.c.0.s8 %v343
    %v345 = vlaneseq
    %v346 = vshrl.u32 %v345, 7
    %v347 = vsub.s32 %v344, %v346
    %v348 = vrot.slane %v304, %v347
    %349 = vrot.lane.b32.xlu0 %v348, 32
    %v350 = vpop.permute.xlu0 %349
    %vm352 = vcmask 254976
    %353 = vst.msk [vmem:[#allocation2] sm:$0x3] %vm352, %v350
    %v356 = vunpack.c.l.s4 1983009808
    %v357 = vunpack.c.0.s8 %v356
    %v358 = vlaneseq
    %v359 = vshrl.u32 %v358, 7
    %v360 = vsub.s32 %v357, %v359
    %v361 = vrot.slane %v340, %v360
    %362 = vrot.lane.b32.xlu0 %v361, 32
    %v363 = vpop.permute.xlu0 %362
    %365 = vst.msk [vmem:[#allocation2 + $0x2] sm:$0x3] %vm352, %v363
    %v368 = vunpack.c.l.s4 1983009808
    %v369 = vunpack.c.0.s8 %v368
    %v370 = vlaneseq
    %v371 = vshrl.u32 %v370, 7
    %v372 = vsub.s32 %v369, %v371
    %v373 = vrot.slane %v298, %v372
    %374 = vrot.lane.b32.xlu0 %v373, 96
    %v375 = vpop.permute.xlu0 %374
    %377 = vst.msk [vmem:[#allocation3] sm:$0x3] %vm352, %v375
    %v380 = vunpack.c.l.s4 1983009808
    %v381 = vunpack.c.0.s8 %v380
    %v382 = vlaneseq
    %v383 = vshrl.u32 %v382, 7
    %v384 = vsub.s32 %v381, %v383
    %v385 = vrot.slane %v334, %v384
    %386 = vrot.lane.b32.xlu0 %v385, 96
    %v387 = vpop.permute.xlu0 %386
    %389 = vst.msk [vmem:[#allocation3 + $0x2] sm:$0x3] %vm352, %v387
    %v390 = vpack.c.bf16 %v304, %v304
    %v391 = vpack.c.bf16 %v340, %v340
    %v392 = vld [vmem:[#allocation2] sm:$0xf]
    %v393 = vpack.c.bf16 %v392, %v392
    %v395 = vsel %vm207, %v393, 0
    %397 = vmatprep.subr.bf16.mxu0 %v200
    %398 = vmatpush1.bf16.msra.mxu0 %v199
    %399 = vmatprep.subr.bf16.mxu0 %v202
    %400 = vmatpush1.bf16.msra.mxu0 %v201
    %401 = vmatprep.subr.bf16.mxu0 0
    %402 = vmatpush1.bf16.msra.mxu0 0
    %403 = vmatprep.subr.bf16.mxu0 0
    %404 = vmatpush1.bf16.msra.mxu0 0
    %405 = vmatprep.subr.bf16.mxu0 0
    %406 = vmatpush1.bf16.msra.mxu0 0
    %407 = vmatprep.subr.bf16.mxu0 0
    %408 = vmatpush1.bf16.msra.mxu0 0
    %409 = vmatprep.subr.bf16.mxu0 0
    %410 = vmatpush1.bf16.msra.mxu0 0
    %411 = vmatprep.subr.bf16.mxu0 0
    %412 = vmatpush1.bf16.msra.mxu0 0
    %413 = vmatprep.subr.bf16.mxu0 0
    %414 = vmatpush1.bf16.msra.mxu0 0
    %415 = vmatprep.subr.bf16.mxu0 0
    %416 = vmatpush1.bf16.msra.mxu0 0
    %417 = vmatprep.subr.bf16.mxu0 0
    %418 = vmatpush1.bf16.msra.mxu0 0
    %419 = vmatprep.subr.bf16.mxu0 0
    %420 = vmatpush1.bf16.msra.mxu0 0
    %421 = vmatprep.subr.bf16.mxu0 0
    %422 = vmatpush1.bf16.msra.mxu0 0
    %423 = vmatprep.subr.bf16.mxu0 0
    %424 = vmatpush1.bf16.msra.mxu0 0
    %425 = vmatprep.subr.bf16.mxu0 0
    %426 = vmatpush1.bf16.msra.mxu0 0
    %427 = vmatprep.subr.bf16.mxu0 0
    %428 = vmatpush1.bf16.msra.mxu0 0
    %429 = vmatprep.mubr.bf16.mxu0 0
    %430 = vmatmul.mubr.bf16.gmra.mrb[0].mxu0 %v395
    %v431 = vpop.f32.mrb[0].mxu0
    %v432 = vadd.f32 0.0, %v431
    %v433 = vpop.f32.mrb[0].mxu0
    %v434 = vadd.f32 0.0, %v433
    %v435 = vpop.f32.mrb[0].mxu0
    %v436 = vpop.f32.mrb[0].mxu0
    %437 = vdwg.mxu0
    %s438 = scalar_lea.vmem [#allocation4], 1
    %v439 = vld [vmem:[%s438] sm:$0x1]
    %v440 = vunpack.c.l.bf16 %v439
    %v441 = vadd.f32 %v440, %v432
    %s442 = scalar_lea.vmem [#allocation5], 6
    %v443 = vld [vmem:[%s442] sm:$0x1]
    %v444 = vunpack.c.l.bf16 %v443
    %v447 = vunpack.c.l.s4 1983009808
    %v448 = vunpack.c.0.s8 %v447
    %v449 = vlaneseq
    %v450 = vshrl.u32 %v449, 7
    %v451 = vsub.s32 %v448, %v450
    %v452 = vrot.slane %v434, %v451
    %v453 = vcombine.high %v452, %v452
    %v455 = vadd.f32 %v444, %v453
    %v456 = vld [vmem:[#allocation3] sm:$0x3]
    %v457 = vxor.u32 %v441, 2147483648
    %v458 = vmul.f32 %v457, 1.442695
    %v459 = vpow.pop %v458
    %v460 = vadd.f32 %v459, 1.0
    %v461 = vrcp.pop %v460
    %v462 = vmul.f32 1.0, %v461
    %v463 = vtanh.pop %v441
    %v466 = vunpack.c.l.s4 1983009808
    %v467 = vunpack.c.0.s8 %v466
    %v468 = vlaneseq
    %v469 = vshrl.u32 %v468, 7
    %v470 = vsub.s32 %v467, %v469
    %v471 = vrot.slane %v456, %v470
    %472 = vrot.lane.b32.xlu0 %v471, 32
    %v473 = vpop.permute.xlu0 %472
    %v475 = vmul.f32 %v462, %v473
    %477 = vrot.lane.b32.xlu0 %v463, 64
    %v478 = vpop.permute.xlu0 %477
    %v480 = vmul.f32 %v462, %v478
    %482 = vrot.lane.b32.xlu0 %v480, 32
    %v483 = vpop.permute.xlu0 %482
    %v485 = vadd.f32 %v475, %v483
    %v486 = vtanh.pop %v485
    %488 = vrot.lane.b32.xlu0 %v486, 64
    %v489 = vpop.permute.xlu0 %488
    %v491 = vmul.f32 %v462, %v489
    %v492 = vld [vmem:[#allocation3 + $0x2] sm:$0x3]
    %v493 = vxor.u32 %v455, 2147483648
    %v494 = vmul.f32 %v493, 1.442695
    %v495 = vpow.pop %v494
    %v496 = vadd.f32 %v495, 1.0
    %v497 = vrcp.pop %v496
    %v498 = vmul.f32 1.0, %v497
    %v499 = vtanh.pop %v455
    %v502 = vunpack.c.l.s4 1983009808
    %v503 = vunpack.c.0.s8 %v502
    %v504 = vlaneseq
    %v505 = vshrl.u32 %v504, 7
    %v506 = vsub.s32 %v503, %v505
    %v507 = vrot.slane %v492, %v506
    %508 = vrot.lane.b32.xlu0 %v507, 32
    %v509 = vpop.permute.xlu0 %508
    %v511 = vmul.f32 %v498, %v509
    %513 = vrot.lane.b32.xlu0 %v499, 64
    %v514 = vpop.permute.xlu0 %513
    %v516 = vmul.f32 %v498, %v514
    %518 = vrot.lane.b32.xlu0 %v516, 32
    %v519 = vpop.permute.xlu0 %518
    %v521 = vadd.f32 %v511, %v519
    %v522 = vtanh.pop %v521
    %524 = vrot.lane.b32.xlu0 %v522, 64
    %v525 = vpop.permute.xlu0 %524
    %v527 = vmul.f32 %v498, %v525
    %v530 = vunpack.c.l.s4 1983009808
    %v531 = vunpack.c.0.s8 %v530
    %v532 = vlaneseq
    %v533 = vshrl.u32 %v532, 7
    %v534 = vsub.s32 %v531, %v533
    %v535 = vrot.slane %v491, %v534
    %536 = vrot.lane.b32.xlu0 %v535, 32
    %v537 = vpop.permute.xlu0 %536
    %539 = vst.msk [vmem:[#allocation2] sm:$0x3] %vm352, %v537
    %v542 = vunpack.c.l.s4 1983009808
    %v543 = vunpack.c.0.s8 %v542
    %v544 = vlaneseq
    %v545 = vshrl.u32 %v544, 7
    %v546 = vsub.s32 %v543, %v545
    %v547 = vrot.slane %v527, %v546
    %548 = vrot.lane.b32.xlu0 %v547, 32
    %v549 = vpop.permute.xlu0 %548
    %551 = vst.msk [vmem:[#allocation2 + $0x2] sm:$0x3] %vm352, %v549
    %v554 = vunpack.c.l.s4 1983009808
    %v555 = vunpack.c.0.s8 %v554
    %v556 = vlaneseq
    %v557 = vshrl.u32 %v556, 7
    %v558 = vsub.s32 %v555, %v557
    %v559 = vrot.slane %v485, %v558
    %560 = vrot.lane.b32.xlu0 %v559, 96
    %v561 = vpop.permute.xlu0 %560
    %563 = vst.msk [vmem:[#allocation3] sm:$0x3] %vm352, %v561
    %v566 = vunpack.c.l.s4 1983009808
    %v567 = vunpack.c.0.s8 %v566
    %v568 = vlaneseq
    %v569 = vshrl.u32 %v568, 7
    %v570 = vsub.s32 %v567, %v569
    %v571 = vrot.slane %v521, %v570
    %572 = vrot.lane.b32.xlu0 %v571, 96
    %v573 = vpop.permute.xlu0 %572
    %575 = vst.msk [vmem:[#allocation3 + $0x2] sm:$0x3] %vm352, %v573
    %v576 = vpack.c.bf16 %v491, %v491
    %v577 = vpack.c.bf16 %v527, %v527
    %v578 = vld [vmem:[#allocation2] sm:$0xf]
    %v579 = vpack.c.bf16 %v578, %v578
    %v581 = vsel %vm207, %v579, 0
    %583 = vmatprep.subr.bf16.mxu0 %v200
    %584 = vmatpush1.bf16.msra.mxu0 %v199
    %585 = vmatprep.subr.bf16.mxu0 %v202
    %586 = vmatpush1.bf16.msra.mxu0 %v201
    %587 = vmatprep.subr.bf16.mxu0 0
    %588 = vmatpush1.bf16.msra.mxu0 0
    %589 = vmatprep.subr.bf16.mxu0 0
    %590 = vmatpush1.bf16.msra.mxu0 0
    %591 = vmatprep.subr.bf16.mxu0 0
    %592 = vmatpush1.bf16.msra.mxu0 0
    %593 = vmatprep.subr.bf16.mxu0 0
    %594 = vmatpush1.bf16.msra.mxu0 0
    %595 = vmatprep.subr.bf16.mxu0 0
    %596 = vmatpush1.bf16.msra.mxu0 0
    %597 = vmatprep.subr.bf16.mxu0 0
    %598 = vmatpush1.bf16.msra.mxu0 0
    %599 = vmatprep.subr.bf16.mxu0 0
    %600 = vmatpush1.bf16.msra.mxu0 0
    %601 = vmatprep.subr.bf16.mxu0 0
    %602 = vmatpush1.bf16.msra.mxu0 0
    %603 = vmatprep.subr.bf16.mxu0 0
    %604 = vmatpush1.bf16.msra.mxu0 0
    %605 = vmatprep.subr.bf16.mxu0 0
    %606 = vmatpush1.bf16.msra.mxu0 0
    %607 = vmatprep.subr.bf16.mxu0 0
    %608 = vmatpush1.bf16.msra.mxu0 0
    %609 = vmatprep.subr.bf16.mxu0 0
    %610 = vmatpush1.bf16.msra.mxu0 0
    %611 = vmatprep.subr.bf16.mxu0 0
    %612 = vmatpush1.bf16.msra.mxu0 0
    %613 = vmatprep.subr.bf16.mxu0 0
    %614 = vmatpush1.bf16.msra.mxu0 0
    %615 = vmatprep.mubr.bf16.mxu0 0
    %616 = vmatmul.mubr.bf16.gmra.mrb[0].mxu0 %v581
    %v617 = vpop.f32.mrb[0].mxu0
    %v618 = vadd.f32 0.0, %v617
    %v619 = vpop.f32.mrb[0].mxu0
    %v620 = vadd.f32 0.0, %v619
    %v621 = vpop.f32.mrb[0].mxu0
    %v622 = vpop.f32.mrb[0].mxu0
    %623 = vdwg.mxu0
    %s624 = scalar_lea.vmem [#allocation4], 2
    %v625 = vld [vmem:[%s624] sm:$0x1]
    %v626 = vunpack.c.l.bf16 %v625
    %v627 = vadd.f32 %v626, %v618
    %s628 = scalar_lea.vmem [#allocation5], 5
    %v629 = vld [vmem:[%s628] sm:$0x1]
    %v630 = vunpack.c.l.bf16 %v629
    %v633 = vunpack.c.l.s4 1983009808
    %v634 = vunpack.c.0.s8 %v633
    %v635 = vlaneseq
    %v636 = vshrl.u32 %v635, 7
    %v637 = vsub.s32 %v634, %v636
    %v638 = vrot.slane %v620, %v637
    %v639 = vcombine.high %v638, %v638
    %v641 = vadd.f32 %v630, %v639
    %v642 = vld [vmem:[#allocation3] sm:$0x3]
    %v643 = vxor.u32 %v627, 2147483648
    %v644 = vmul.f32 %v643, 1.442695
    %v645 = vpow.pop %v644
    %v646 = vadd.f32 %v645, 1.0
    %v647 = vrcp.pop %v646
    %v648 = vmul.f32 1.0, %v647
    %v649 = vtanh.pop %v627
    %v652 = vunpack.c.l.s4 1983009808
    %v653 = vunpack.c.0.s8 %v652
    %v654 = vlaneseq
    %v655 = vshrl.u32 %v654, 7
    %v656 = vsub.s32 %v653, %v655
    %v657 = vrot.slane %v642, %v656
    %658 = vrot.lane.b32.xlu0 %v657, 32
    %v659 = vpop.permute.xlu0 %658
    %v661 = vmul.f32 %v648, %v659
    %663 = vrot.lane.b32.xlu0 %v649, 64
    %v664 = vpop.permute.xlu0 %663
    %v666 = vmul.f32 %v648, %v664
    %668 = vrot.lane.b32.xlu0 %v666, 32
    %v669 = vpop.permute.xlu0 %668
    %v671 = vadd.f32 %v661, %v669
    %v672 = vtanh.pop %v671
    %674 = vrot.lane.b32.xlu0 %v672, 64
    %v675 = vpop.permute.xlu0 %674
    %v677 = vmul.f32 %v648, %v675
    %v678 = vld [vmem:[#allocation3 + $0x2] sm:$0x3]
    %v679 = vxor.u32 %v641, 2147483648
    %v680 = vmul.f32 %v679, 1.442695
    %v681 = vpow.pop %v680
    %v682 = vadd.f32 %v681, 1.0
    %v683 = vrcp.pop %v682
    %v684 = vmul.f32 1.0, %v683
    %v685 = vtanh.pop %v641
    %v688 = vunpack.c.l.s4 1983009808
    %v689 = vunpack.c.0.s8 %v688
    %v690 = vlaneseq
    %v691 = vshrl.u32 %v690, 7
    %v692 = vsub.s32 %v689, %v691
    %v693 = vrot.slane %v678, %v692
    %694 = vrot.lane.b32.xlu0 %v693, 32
    %v695 = vpop.permute.xlu0 %694
    %v697 = vmul.f32 %v684, %v695
    %699 = vrot.lane.b32.xlu0 %v685, 64
    %v700 = vpop.permute.xlu0 %699
    %v702 = vmul.f32 %v684, %v700
    %704 = vrot.lane.b32.xlu0 %v702, 32
    %v705 = vpop.permute.xlu0 %704
    %v707 = vadd.f32 %v697, %v705
    %v708 = vtanh.pop %v707
    %710 = vrot.lane.b32.xlu0 %v708, 64
    %v711 = vpop.permute.xlu0 %710
    %v713 = vmul.f32 %v684, %v711
    %v716 = vunpack.c.l.s4 1983009808
    %v717 = vunpack.c.0.s8 %v716
    %v718 = vlaneseq
    %v719 = vshrl.u32 %v718, 7
    %v720 = vsub.s32 %v717, %v719
    %v721 = vrot.slane %v677, %v720
    %722 = vrot.lane.b32.xlu0 %v721, 32
    %v723 = vpop.permute.xlu0 %722
    %725 = vst.msk [vmem:[#allocation2] sm:$0x3] %vm352, %v723
    %v728 = vunpack.c.l.s4 1983009808
    %v729 = vunpack.c.0.s8 %v728
    %v730 = vlaneseq
    %v731 = vshrl.u32 %v730, 7
    %v732 = vsub.s32 %v729, %v731
    %v733 = vrot.slane %v713, %v732
    %734 = vrot.lane.b32.xlu0 %v733, 32
    %v735 = vpop.permute.xlu0 %734
    %737 = vst.msk [vmem:[#allocation2 + $0x2] sm:$0x3] %vm352, %v735
    %v740 = vunpack.c.l.s4 1983009808
    %v741 = vunpack.c.0.s8 %v740
    %v742 = vlaneseq
    %v743 = vshrl.u32 %v742, 7
    %v744 = vsub.s32 %v741, %v743
    %v745 = vrot.slane %v671, %v744
    %746 = vrot.lane.b32.xlu0 %v745, 96
    %v747 = vpop.permute.xlu0 %746
    %749 = vst.msk [vmem:[#allocation3] sm:$0x3] %vm352, %v747
    %v752 = vunpack.c.l.s4 1983009808
    %v753 = vunpack.c.0.s8 %v752
    %v754 = vlaneseq
    %v755 = vshrl.u32 %v754, 7
    %v756 = vsub.s32 %v753, %v755
    %v757 = vrot.slane %v707, %v756
    %758 = vrot.lane.b32.xlu0 %v757, 96
    %v759 = vpop.permute.xlu0 %758
    %761 = vst.msk [vmem:[#allocation3 + $0x2] sm:$0x3] %vm352, %v759
    %v762 = vpack.c.bf16 %v677, %v677
    %v763 = vpack.c.bf16 %v713, %v713
    %v764 = vld [vmem:[#allocation2] sm:$0xf]
    %v765 = vpack.c.bf16 %v764, %v764
    %v767 = vsel %vm207, %v765, 0
    %769 = vmatprep.subr.bf16.mxu0 %v200
    %770 = vmatpush1.bf16.msra.mxu0 %v199
    %771 = vmatprep.subr.bf16.mxu0 %v202
    %772 = vmatpush1.bf16.msra.mxu0 %v201
    %773 = vmatprep.subr.bf16.mxu0 0
    %774 = vmatpush1.bf16.msra.mxu0 0
    %775 = vmatprep.subr.bf16.mxu0 0
    %776 = vmatpush1.bf16.msra.mxu0 0
    %777 = vmatprep.subr.bf16.mxu0 0
    %778 = vmatpush1.bf16.msra.mxu0 0
    %779 = vmatprep.subr.bf16.mxu0 0
    %780 = vmatpush1.bf16.msra.mxu0 0
    %781 = vmatprep.subr.bf16.mxu0 0
    %782 = vmatpush1.bf16.msra.mxu0 0
    %783 = vmatprep.subr.bf16.mxu0 0
    %784 = vmatpush1.bf16.msra.mxu0 0
    %785 = vmatprep.subr.bf16.mxu0 0
    %786 = vmatpush1.bf16.msra.mxu0 0
    %787 = vmatprep.subr.bf16.mxu0 0
    %788 = vmatpush1.bf16.msra.mxu0 0
    %789 = vmatprep.subr.bf16.mxu0 0
    %790 = vmatpush1.bf16.msra.mxu0 0
    %791 = vmatprep.subr.bf16.mxu0 0
    %792 = vmatpush1.bf16.msra.mxu0 0
    %793 = vmatprep.subr.bf16.mxu0 0
    %794 = vmatpush1.bf16.msra.mxu0 0
    %795 = vmatprep.subr.bf16.mxu0 0
    %796 = vmatpush1.bf16.msra.mxu0 0
    %797 = vmatprep.subr.bf16.mxu0 0
    %798 = vmatpush1.bf16.msra.mxu0 0
    %799 = vmatprep.subr.bf16.mxu0 0
    %800 = vmatpush1.bf16.msra.mxu0 0
    %801 = vmatprep.mubr.bf16.mxu0 0
    %802 = vmatmul.mubr.bf16.gmra.mrb[0].mxu0 %v767
    %v803 = vpop.f32.mrb[0].mxu0
    %v804 = vadd.f32 0.0, %v803
    %v805 = vpop.f32.mrb[0].mxu0
    %v806 = vadd.f32 0.0, %v805
    %v807 = vpop.f32.mrb[0].mxu0
    %v808 = vpop.f32.mrb[0].mxu0
    %809 = vdwg.mxu0
    %s810 = scalar_lea.vmem [#allocation4], 3
    %v811 = vld [vmem:[%s810] sm:$0x1]
    %v812 = vunpack.c.l.bf16 %v811
    %v813 = vadd.f32 %v812, %v804
    %s814 = scalar_lea.vmem [#allocation5], 4
    %v815 = vld [vmem:[%s814] sm:$0x1]
    %v816 = vunpack.c.l.bf16 %v815
    %v819 = vunpack.c.l.s4 1983009808
    %v820 = vunpack.c.0.s8 %v819
    %v821 = vlaneseq
    %v822 = vshrl.u32 %v821, 7
    %v823 = vsub.s32 %v820, %v822
    %v824 = vrot.slane %v806, %v823
    %v825 = vcombine.high %v824, %v824
    %v827 = vadd.f32 %v816, %v825
    %v828 = vld [vmem:[#allocation3] sm:$0x3]
    %v829 = vxor.u32 %v813, 2147483648
    %v830 = vmul.f32 %v829, 1.442695
    %v831 = vpow.pop %v830
    %v832 = vadd.f32 %v831, 1.0
    %v833 = vrcp.pop %v832
    %v834 = vmul.f32 1.0, %v833
    %v835 = vtanh.pop %v813
    %v838 = vunpack.c.l.s4 1983009808
    %v839 = vunpack.c.0.s8 %v838
    %v840 = vlaneseq
    %v841 = vshrl.u32 %v840, 7
    %v842 = vsub.s32 %v839, %v841
    %v843 = vrot.slane %v828, %v842
    %844 = vrot.lane.b32.xlu0 %v843, 32
    %v845 = vpop.permute.xlu0 %844
    %v847 = vmul.f32 %v834, %v845
    %849 = vrot.lane.b32.xlu0 %v835, 64
    %v850 = vpop.permute.xlu0 %849
    %v852 = vmul.f32 %v834, %v850
    %854 = vrot.lane.b32.xlu0 %v852, 32
    %v855 = vpop.permute.xlu0 %854
    %v857 = vadd.f32 %v847, %v855
    %v858 = vtanh.pop %v857
    %860 = vrot.lane.b32.xlu0 %v858, 64
    %v861 = vpop.permute.xlu0 %860
    %v863 = vmul.f32 %v834, %v861
    %v864 = vld [vmem:[#allocation3 + $0x2] sm:$0x3]
    %v865 = vxor.u32 %v827, 2147483648
    %v866 = vmul.f32 %v865, 1.442695
    %v867 = vpow.pop %v866
    %v868 = vadd.f32 %v867, 1.0
    %v869 = vrcp.pop %v868
    %v870 = vmul.f32 1.0, %v869
    %v871 = vtanh.pop %v827
    %v874 = vunpack.c.l.s4 1983009808
    %v875 = vunpack.c.0.s8 %v874
    %v876 = vlaneseq
    %v877 = vshrl.u32 %v876, 7
    %v878 = vsub.s32 %v875, %v877
    %v879 = vrot.slane %v864, %v878
    %880 = vrot.lane.b32.xlu0 %v879, 32
    %v881 = vpop.permute.xlu0 %880
    %v883 = vmul.f32 %v870, %v881
    %885 = vrot.lane.b32.xlu0 %v871, 64
    %v886 = vpop.permute.xlu0 %885
    %v888 = vmul.f32 %v870, %v886
    %890 = vrot.lane.b32.xlu0 %v888, 32
    %v891 = vpop.permute.xlu0 %890
    %v893 = vadd.f32 %v883, %v891
    %v894 = vtanh.pop %v893
    %896 = vrot.lane.b32.xlu0 %v894, 64
    %v897 = vpop.permute.xlu0 %896
    %v899 = vmul.f32 %v870, %v897
    %v902 = vunpack.c.l.s4 1983009808
    %v903 = vunpack.c.0.s8 %v902
    %v904 = vlaneseq
    %v905 = vshrl.u32 %v904, 7
    %v906 = vsub.s32 %v903, %v905
    %v907 = vrot.slane %v863, %v906
    %908 = vrot.lane.b32.xlu0 %v907, 32
    %v909 = vpop.permute.xlu0 %908
    %911 = vst.msk [vmem:[#allocation2] sm:$0x3] %vm352, %v909
    %v914 = vunpack.c.l.s4 1983009808
    %v915 = vunpack.c.0.s8 %v914
    %v916 = vlaneseq
    %v917 = vshrl.u32 %v916, 7
    %v918 = vsub.s32 %v915, %v917
    %v919 = vrot.slane %v899, %v918
    %920 = vrot.lane.b32.xlu0 %v919, 32
    %v921 = vpop.permute.xlu0 %920
    %923 = vst.msk [vmem:[#allocation2 + $0x2] sm:$0x3] %vm352, %v921
    %v926 = vunpack.c.l.s4 1983009808
    %v927 = vunpack.c.0.s8 %v926
    %v928 = vlaneseq
    %v929 = vshrl.u32 %v928, 7
    %v930 = vsub.s32 %v927, %v929
    %v931 = vrot.slane %v857, %v930
    %932 = vrot.lane.b32.xlu0 %v931, 96
    %v933 = vpop.permute.xlu0 %932
    %935 = vst.msk [vmem:[#allocation3] sm:$0x3] %vm352, %v933
    %v938 = vunpack.c.l.s4 1983009808
    %v939 = vunpack.c.0.s8 %v938
    %v940 = vlaneseq
    %v941 = vshrl.u32 %v940, 7
    %v942 = vsub.s32 %v939, %v941
    %v943 = vrot.slane %v893, %v942
    %944 = vrot.lane.b32.xlu0 %v943, 96
    %v945 = vpop.permute.xlu0 %944
    %947 = vst.msk [vmem:[#allocation3 + $0x2] sm:$0x3] %vm352, %v945
    %v948 = vpack.c.bf16 %v863, %v863
    %v949 = vpack.c.bf16 %v899, %v899
    %v950 = vld [vmem:[#allocation2] sm:$0xf]
    %v951 = vpack.c.bf16 %v950, %v950
    %v953 = vsel %vm207, %v951, 0
    %955 = vmatprep.subr.bf16.mxu0 %v200
    %956 = vmatpush1.bf16.msra.mxu0 %v199
    %957 = vmatprep.subr.bf16.mxu0 %v202
    %958 = vmatpush1.bf16.msra.mxu0 %v201
    %959 = vmatprep.subr.bf16.mxu0 0
    %960 = vmatpush1.bf16.msra.mxu0 0
    %961 = vmatprep.subr.bf16.mxu0 0
    %962 = vmatpush1.bf16.msra.mxu0 0
    %963 = vmatprep.subr.bf16.mxu0 0
    %964 = vmatpush1.bf16.msra.mxu0 0
    %965 = vmatprep.subr.bf16.mxu0 0
    %966 = vmatpush1.bf16.msra.mxu0 0
    %967 = vmatprep.subr.bf16.mxu0 0
    %968 = vmatpush1.bf16.msra.mxu0 0
    %969 = vmatprep.subr.bf16.mxu0 0
    %970 = vmatpush1.bf16.msra.mxu0 0
    %971 = vmatprep.subr.bf16.mxu0 0
    %972 = vmatpush1.bf16.msra.mxu0 0
    %973 = vmatprep.subr.bf16.mxu0 0
    %974 = vmatpush1.bf16.msra.mxu0 0
    %975 = vmatprep.subr.bf16.mxu0 0
    %976 = vmatpush1.bf16.msra.mxu0 0
    %977 = vmatprep.subr.bf16.mxu0 0
    %978 = vmatpush1.bf16.msra.mxu0 0
    %979 = vmatprep.subr.bf16.mxu0 0
    %980 = vmatpush1.bf16.msra.mxu0 0
    %981 = vmatprep.subr.bf16.mxu0 0
    %982 = vmatpush1.bf16.msra.mxu0 0
    %983 = vmatprep.subr.bf16.mxu0 0
    %984 = vmatpush1.bf16.msra.mxu0 0
    %985 = vmatprep.subr.bf16.mxu0 0
    %986 = vmatpush1.bf16.msra.mxu0 0
    %987 = vmatprep.mubr.bf16.mxu0 0
    %988 = vmatmul.mubr.bf16.gmra.mrb[0].mxu0 %v953
    %v989 = vpop.f32.mrb[0].mxu0
    %v990 = vadd.f32 0.0, %v989
    %v991 = vpop.f32.mrb[0].mxu0
    %v992 = vadd.f32 0.0, %v991
    %v993 = vpop.f32.mrb[0].mxu0
    %v994 = vpop.f32.mrb[0].mxu0
    %995 = vdwg.mxu0
    %s996 = scalar_lea.vmem [#allocation4], 4
    %v997 = vld [vmem:[%s996] sm:$0x1]
    %v998 = vunpack.c.l.bf16 %v997
    %v999 = vadd.f32 %v998, %v990
    %s1000 = scalar_lea.vmem [#allocation5], 3
    %v1001 = vld [vmem:[%s1000] sm:$0x1]
    %v1002 = vunpack.c.l.bf16 %v1001
    %v1005 = vunpack.c.l.s4 1983009808
    %v1006 = vunpack.c.0.s8 %v1005
    %v1007 = vlaneseq
    %v1008 = vshrl.u32 %v1007, 7
    %v1009 = vsub.s32 %v1006, %v1008
    %v1010 = vrot.slane %v992, %v1009
    %v1011 = vcombine.high %v1010, %v1010
    %v1013 = vadd.f32 %v1002, %v1011
    %v1014 = vld [vmem:[#allocation3] sm:$0x3]
    %v1015 = vxor.u32 %v999, 2147483648
    %v1016 = vmul.f32 %v1015, 1.442695
    %v1017 = vpow.pop %v1016
    %v1018 = vadd.f32 %v1017, 1.0
    %v1019 = vrcp.pop %v1018
    %v1020 = vmul.f32 1.0, %v1019
    %v1021 = vtanh.pop %v999
    %v1024 = vunpack.c.l.s4 1983009808
    %v1025 = vunpack.c.0.s8 %v1024
    %v1026 = vlaneseq
    %v1027 = vshrl.u32 %v1026, 7
    %v1028 = vsub.s32 %v1025, %v1027
    %v1029 = vrot.slane %v1014, %v1028
    %1030 = vrot.lane.b32.xlu0 %v1029, 32
    %v1031 = vpop.permute.xlu0 %1030
    %v1033 = vmul.f32 %v1020, %v1031
    %1035 = vrot.lane.b32.xlu0 %v1021, 64
    %v1036 = vpop.permute.xlu0 %1035
    %v1038 = vmul.f32 %v1020, %v1036
    %1040 = vrot.lane.b32.xlu0 %v1038, 32
    %v1041 = vpop.permute.xlu0 %1040
    %v1043 = vadd.f32 %v1033, %v1041
    %v1044 = vtanh.pop %v1043
    %1046 = vrot.lane.b32.xlu0 %v1044, 64
    %v1047 = vpop.permute.xlu0 %1046
    %v1049 = vmul.f32 %v1020, %v1047
    %v1050 = vld [vmem:[#allocation3 + $0x2] sm:$0x3]
    %v1051 = vxor.u32 %v1013, 2147483648
    %v1052 = vmul.f32 %v1051, 1.442695
    %v1053 = vpow.pop %v1052
    %v1054 = vadd.f32 %v1053, 1.0
    %v1055 = vrcp.pop %v1054
    %v1056 = vmul.f32 1.0, %v1055
    %v1057 = vtanh.pop %v1013
    %v1060 = vunpack.c.l.s4 1983009808
    %v1061 = vunpack.c.0.s8 %v1060
    %v1062 = vlaneseq
    %v1063 = vshrl.u32 %v1062, 7
    %v1064 = vsub.s32 %v1061, %v1063
    %v1065 = vrot.slane %v1050, %v1064
    %1066 = vrot.lane.b32.xlu0 %v1065, 32
    %v1067 = vpop.permute.xlu0 %1066
    %v1069 = vmul.f32 %v1056, %v1067
    %1071 = vrot.lane.b32.xlu0 %v1057, 64
    %v1072 = vpop.permute.xlu0 %1071
    %v1074 = vmul.f32 %v1056, %v1072
    %1076 = vrot.lane.b32.xlu0 %v1074, 32
    %v1077 = vpop.permute.xlu0 %1076
    %v1079 = vadd.f32 %v1069, %v1077
    %v1080 = vtanh.pop %v1079
    %1082 = vrot.lane.b32.xlu0 %v1080, 64
    %v1083 = vpop.permute.xlu0 %1082
    %v1085 = vmul.f32 %v1056, %v1083
    %v1088 = vunpack.c.l.s4 1983009808
    %v1089 = vunpack.c.0.s8 %v1088
    %v1090 = vlaneseq
    %v1091 = vshrl.u32 %v1090, 7
    %v1092 = vsub.s32 %v1089, %v1091
    %v1093 = vrot.slane %v1049, %v1092
    %1094 = vrot.lane.b32.xlu0 %v1093, 32
    %v1095 = vpop.permute.xlu0 %1094
    %1097 = vst.msk [vmem:[#allocation2] sm:$0x3] %vm352, %v1095
    %v1100 = vunpack.c.l.s4 1983009808
    %v1101 = vunpack.c.0.s8 %v1100
    %v1102 = vlaneseq
    %v1103 = vshrl.u32 %v1102, 7
    %v1104 = vsub.s32 %v1101, %v1103
    %v1105 = vrot.slane %v1085, %v1104
    %1106 = vrot.lane.b32.xlu0 %v1105, 32
    %v1107 = vpop.permute.xlu0 %1106
    %1109 = vst.msk [vmem:[#allocation2 + $0x2] sm:$0x3] %vm352, %v1107
    %v1112 = vunpack.c.l.s4 1983009808
    %v1113 = vunpack.c.0.s8 %v1112
    %v1114 = vlaneseq
    %v1115 = vshrl.u32 %v1114, 7
    %v1116 = vsub.s32 %v1113, %v1115
    %v1117 = vrot.slane %v1043, %v1116
    %1118 = vrot.lane.b32.xlu0 %v1117, 96
    %v1119 = vpop.permute.xlu0 %1118
    %1121 = vst.msk [vmem:[#allocation3] sm:$0x3] %vm352, %v1119
    %v1124 = vunpack.c.l.s4 1983009808
    %v1125 = vunpack.c.0.s8 %v1124
    %v1126 = vlaneseq
    %v1127 = vshrl.u32 %v1126, 7
    %v1128 = vsub.s32 %v1125, %v1127
    %v1129 = vrot.slane %v1079, %v1128
    %1130 = vrot.lane.b32.xlu0 %v1129, 96
    %v1131 = vpop.permute.xlu0 %1130
    %1133 = vst.msk [vmem:[#allocation3 + $0x2] sm:$0x3] %vm352, %v1131
    %v1134 = vpack.c.bf16 %v1049, %v1049
    %v1135 = vpack.c.bf16 %v1085, %v1085
    %v1136 = vld [vmem:[#allocation2] sm:$0xf]
    %v1137 = vpack.c.bf16 %v1136, %v1136
    %v1139 = vsel %vm207, %v1137, 0
    %1141 = vmatprep.subr.bf16.mxu0 %v200
    %1142 = vmatpush1.bf16.msra.mxu0 %v199
    %1143 = vmatprep.subr.bf16.mxu0 %v202
    %1144 = vmatpush1.bf16.msra.mxu0 %v201
    %1145 = vmatprep.subr.bf16.mxu0 0
    %1146 = vmatpush1.bf16.msra.mxu0 0
    %1147 = vmatprep.subr.bf16.mxu0 0
    %1148 = vmatpush1.bf16.msra.mxu0 0
    %1149 = vmatprep.subr.bf16.mxu0 0
    %1150 = vmatpush1.bf16.msra.mxu0 0
    %1151 = vmatprep.subr.bf16.mxu0 0
    %1152 = vmatpush1.bf16.msra.mxu0 0
    %1153 = vmatprep.subr.bf16.mxu0 0
    %1154 = vmatpush1.bf16.msra.mxu0 0
    %1155 = vmatprep.subr.bf16.mxu0 0
    %1156 = vmatpush1.bf16.msra.mxu0 0
    %1157 = vmatprep.subr.bf16.mxu0 0
    %1158 = vmatpush1.bf16.msra.mxu0 0
    %1159 = vmatprep.subr.bf16.mxu0 0
    %1160 = vmatpush1.bf16.msra.mxu0 0
    %1161 = vmatprep.subr.bf16.mxu0 0
    %1162 = vmatpush1.bf16.msra.mxu0 0
    %1163 = vmatprep.subr.bf16.mxu0 0
    %1164 = vmatpush1.bf16.msra.mxu0 0
    %1165 = vmatprep.subr.bf16.mxu0 0
    %1166 = vmatpush1.bf16.msra.mxu0 0
    %1167 = vmatprep.subr.bf16.mxu0 0
    %1168 = vmatpush1.bf16.msra.mxu0 0
    %1169 = vmatprep.subr.bf16.mxu0 0
    %1170 = vmatpush1.bf16.msra.mxu0 0
    %1171 = vmatprep.subr.bf16.mxu0 0
    %1172 = vmatpush1.bf16.msra.mxu0 0
    %1173 = vmatprep.mubr.bf16.mxu0 0
    %1174 = vmatmul.mubr.bf16.gmra.mrb[0].mxu0 %v1139
    %v1175 = vpop.f32.mrb[0].mxu0
    %v1176 = vadd.f32 0.0, %v1175
    %v1177 = vpop.f32.mrb[0].mxu0
    %v1178 = vadd.f32 0.0, %v1177
    %v1179 = vpop.f32.mrb[0].mxu0
    %v1180 = vpop.f32.mrb[0].mxu0
    %1181 = vdwg.mxu0
    %s1182 = scalar_lea.vmem [#allocation4], 5
    %v1183 = vld [vmem:[%s1182] sm:$0x1]
    %v1184 = vunpack.c.l.bf16 %v1183
    %v1185 = vadd.f32 %v1184, %v1176
    %s1186 = scalar_lea.vmem [#allocation5], 2
    %v1187 = vld [vmem:[%s1186] sm:$0x1]
    %v1188 = vunpack.c.l.bf16 %v1187
    %v1191 = vunpack.c.l.s4 1983009808
    %v1192 = vunpack.c.0.s8 %v1191
    %v1193 = vlaneseq
    %v1194 = vshrl.u32 %v1193, 7
    %v1195 = vsub.s32 %v1192, %v1194
    %v1196 = vrot.slane %v1178, %v1195
    %v1197 = vcombine.high %v1196, %v1196
    %v1199 = vadd.f32 %v1188, %v1197
    %v1200 = vld [vmem:[#allocation3] sm:$0x3]
    %v1201 = vxor.u32 %v1185, 2147483648
    %v1202 = vmul.f32 %v1201, 1.442695
    %v1203 = vpow.pop %v1202
    %v1204 = vadd.f32 %v1203, 1.0
    %v1205 = vrcp.pop %v1204
    %v1206 = vmul.f32 1.0, %v1205
    %v1207 = vtanh.pop %v1185
    %v1210 = vunpack.c.l.s4 1983009808
    %v1211 = vunpack.c.0.s8 %v1210
    %v1212 = vlaneseq
    %v1213 = vshrl.u32 %v1212, 7
    %v1214 = vsub.s32 %v1211, %v1213
    %v1215 = vrot.slane %v1200, %v1214
    %1216 = vrot.lane.b32.xlu0 %v1215, 32
    %v1217 = vpop.permute.xlu0 %1216
    %v1219 = vmul.f32 %v1206, %v1217
    %1221 = vrot.lane.b32.xlu0 %v1207, 64
    %v1222 = vpop.permute.xlu0 %1221
    %v1224 = vmul.f32 %v1206, %v1222
    %1226 = vrot.lane.b32.xlu0 %v1224, 32
    %v1227 = vpop.permute.xlu0 %1226
    %v1229 = vadd.f32 %v1219, %v1227
    %v1230 = vtanh.pop %v1229
    %1232 = vrot.lane.b32.xlu0 %v1230, 64
    %v1233 = vpop.permute.xlu0 %1232
    %v1235 = vmul.f32 %v1206, %v1233
    %v1236 = vld [vmem:[#allocation3 + $0x2] sm:$0x3]
    %v1237 = vxor.u32 %v1199, 2147483648
    %v1238 = vmul.f32 %v1237, 1.442695
    %v1239 = vpow.pop %v1238
    %v1240 = vadd.f32 %v1239, 1.0
    %v1241 = vrcp.pop %v1240
    %v1242 = vmul.f32 1.0, %v1241
    %v1243 = vtanh.pop %v1199
    %v1246 = vunpack.c.l.s4 1983009808
    %v1247 = vunpack.c.0.s8 %v1246
    %v1248 = vlaneseq
    %v1249 = vshrl.u32 %v1248, 7
    %v1250 = vsub.s32 %v1247, %v1249
    %v1251 = vrot.slane %v1236, %v1250
    %1252 = vrot.lane.b32.xlu0 %v1251, 32
    %v1253 = vpop.permute.xlu0 %1252
    %v1255 = vmul.f32 %v1242, %v1253
    %1257 = vrot.lane.b32.xlu0 %v1243, 64
    %v1258 = vpop.permute.xlu0 %1257
    %v1260 = vmul.f32 %v1242, %v1258
    %1262 = vrot.lane.b32.xlu0 %v1260, 32
    %v1263 = vpop.permute.xlu0 %1262
    %v1265 = vadd.f32 %v1255, %v1263
    %v1266 = vtanh.pop %v1265
    %1268 = vrot.lane.b32.xlu0 %v1266, 64
    %v1269 = vpop.permute.xlu0 %1268
    %v1271 = vmul.f32 %v1242, %v1269
    %v1274 = vunpack.c.l.s4 1983009808
    %v1275 = vunpack.c.0.s8 %v1274
    %v1276 = vlaneseq
    %v1277 = vshrl.u32 %v1276, 7
    %v1278 = vsub.s32 %v1275, %v1277
    %v1279 = vrot.slane %v1235, %v1278
    %1280 = vrot.lane.b32.xlu0 %v1279, 32
    %v1281 = vpop.permute.xlu0 %1280
    %1283 = vst.msk [vmem:[#allocation2] sm:$0x3] %vm352, %v1281
    %v1286 = vunpack.c.l.s4 1983009808
    %v1287 = vunpack.c.0.s8 %v1286
    %v1288 = vlaneseq
    %v1289 = vshrl.u32 %v1288, 7
    %v1290 = vsub.s32 %v1287, %v1289
    %v1291 = vrot.slane %v1271, %v1290
    %1292 = vrot.lane.b32.xlu0 %v1291, 32
    %v1293 = vpop.permute.xlu0 %1292
    %1295 = vst.msk [vmem:[#allocation2 + $0x2] sm:$0x3] %vm352, %v1293
    %v1298 = vunpack.c.l.s4 1983009808
    %v1299 = vunpack.c.0.s8 %v1298
    %v1300 = vlaneseq
    %v1301 = vshrl.u32 %v1300, 7
    %v1302 = vsub.s32 %v1299, %v1301
    %v1303 = vrot.slane %v1229, %v1302
    %1304 = vrot.lane.b32.xlu0 %v1303, 96
    %v1305 = vpop.permute.xlu0 %1304
    %1307 = vst.msk [vmem:[#allocation3] sm:$0x3] %vm352, %v1305
    %v1310 = vunpack.c.l.s4 1983009808
    %v1311 = vunpack.c.0.s8 %v1310
    %v1312 = vlaneseq
    %v1313 = vshrl.u32 %v1312, 7
    %v1314 = vsub.s32 %v1311, %v1313
    %v1315 = vrot.slane %v1265, %v1314
    %1316 = vrot.lane.b32.xlu0 %v1315, 96
    %v1317 = vpop.permute.xlu0 %1316
    %1319 = vst.msk [vmem:[#allocation3 + $0x2] sm:$0x3] %vm352, %v1317
    %v1320 = vpack.c.bf16 %v1235, %v1235
    %v1321 = vpack.c.bf16 %v1271, %v1271
    %v1322 = vld [vmem:[#allocation2] sm:$0xf]
    %v1323 = vpack.c.bf16 %v1322, %v1322
    %v1325 = vsel %vm207, %v1323, 0
    %1327 = vmatprep.subr.bf16.mxu0 %v200
    %1328 = vmatpush1.bf16.msra.mxu0 %v199
    %1329 = vmatprep.subr.bf16.mxu0 %v202
    %1330 = vmatpush1.bf16.msra.mxu0 %v201
    %1331 = vmatprep.subr.bf16.mxu0 0
    %1332 = vmatpush1.bf16.msra.mxu0 0
    %1333 = vmatprep.subr.bf16.mxu0 0
    %1334 = vmatpush1.bf16.msra.mxu0 0
    %1335 = vmatprep.subr.bf16.mxu0 0
    %1336 = vmatpush1.bf16.msra.mxu0 0
    %1337 = vmatprep.subr.bf16.mxu0 0
    %1338 = vmatpush1.bf16.msra.mxu0 0
    %1339 = vmatprep.subr.bf16.mxu0 0
    %1340 = vmatpush1.bf16.msra.mxu0 0
    %1341 = vmatprep.subr.bf16.mxu0 0
    %1342 = vmatpush1.bf16.msra.mxu0 0
    %1343 = vmatprep.subr.bf16.mxu0 0
    %1344 = vmatpush1.bf16.msra.mxu0 0
    %1345 = vmatprep.subr.bf16.mxu0 0
    %1346 = vmatpush1.bf16.msra.mxu0 0
    %1347 = vmatprep.subr.bf16.mxu0 0
    %1348 = vmatpush1.bf16.msra.mxu0 0
    %1349 = vmatprep.subr.bf16.mxu0 0
    %1350 = vmatpush1.bf16.msra.mxu0 0
    %1351 = vmatprep.subr.bf16.mxu0 0
    %1352 = vmatpush1.bf16.msra.mxu0 0
    %1353 = vmatprep.subr.bf16.mxu0 0
    %1354 = vmatpush1.bf16.msra.mxu0 0
    %1355 = vmatprep.subr.bf16.mxu0 0
    %1356 = vmatpush1.bf16.msra.mxu0 0
    %1357 = vmatprep.subr.bf16.mxu0 0
    %1358 = vmatpush1.bf16.msra.mxu0 0
    %1359 = vmatprep.mubr.bf16.mxu0 0
    %1360 = vmatmul.mubr.bf16.gmra.mrb[0].mxu0 %v1325
    %v1361 = vpop.f32.mrb[0].mxu0
    %v1362 = vadd.f32 0.0, %v1361
    %v1363 = vpop.f32.mrb[0].mxu0
    %v1364 = vadd.f32 0.0, %v1363
    %v1365 = vpop.f32.mrb[0].mxu0
    %v1366 = vpop.f32.mrb[0].mxu0
    %1367 = vdwg.mxu0
    %s1368 = scalar_lea.vmem [#allocation4], 6
    %v1369 = vld [vmem:[%s1368] sm:$0x1]
    %v1370 = vunpack.c.l.bf16 %v1369
    %v1371 = vadd.f32 %v1370, %v1362
    %s1372 = scalar_lea.vmem [#allocation5], 1
    %v1373 = vld [vmem:[%s1372] sm:$0x1]
    %v1374 = vunpack.c.l.bf16 %v1373
    %v1377 = vunpack.c.l.s4 1983009808
    %v1378 = vunpack.c.0.s8 %v1377
    %v1379 = vlaneseq
    %v1380 = vshrl.u32 %v1379, 7
    %v1381 = vsub.s32 %v1378, %v1380
    %v1382 = vrot.slane %v1364, %v1381
    %v1383 = vcombine.high %v1382, %v1382
    %v1385 = vadd.f32 %v1374, %v1383
    %v1386 = vld [vmem:[#allocation3] sm:$0x3]
    %v1387 = vxor.u32 %v1371, 2147483648
    %v1388 = vmul.f32 %v1387, 1.442695
    %v1389 = vpow.pop %v1388
    %v1390 = vadd.f32 %v1389, 1.0
    %v1391 = vrcp.pop %v1390
    %v1392 = vmul.f32 1.0, %v1391
    %v1393 = vtanh.pop %v1371
    %v1396 = vunpack.c.l.s4 1983009808
    %v1397 = vunpack.c.0.s8 %v1396
    %v1398 = vlaneseq
    %v1399 = vshrl.u32 %v1398, 7
    %v1400 = vsub.s32 %v1397, %v1399
    %v1401 = vrot.slane %v1386, %v1400
    %1402 = vrot.lane.b32.xlu0 %v1401, 32
    %v1403 = vpop.permute.xlu0 %1402
    %v1405 = vmul.f32 %v1392, %v1403
    %1407 = vrot.lane.b32.xlu0 %v1393, 64
    %v1408 = vpop.permute.xlu0 %1407
    %v1410 = vmul.f32 %v1392, %v1408
    %1412 = vrot.lane.b32.xlu0 %v1410, 32
    %v1413 = vpop.permute.xlu0 %1412
    %v1415 = vadd.f32 %v1405, %v1413
    %v1416 = vtanh.pop %v1415
    %1418 = vrot.lane.b32.xlu0 %v1416, 64
    %v1419 = vpop.permute.xlu0 %1418
    %v1421 = vmul.f32 %v1392, %v1419
    %v1422 = vld [vmem:[#allocation3 + $0x2] sm:$0x3]
    %v1423 = vxor.u32 %v1385, 2147483648
    %v1424 = vmul.f32 %v1423, 1.442695
    %v1425 = vpow.pop %v1424
    %v1426 = vadd.f32 %v1425, 1.0
    %v1427 = vrcp.pop %v1426
    %v1428 = vmul.f32 1.0, %v1427
    %v1429 = vtanh.pop %v1385
    %v1432 = vunpack.c.l.s4 1983009808
    %v1433 = vunpack.c.0.s8 %v1432
    %v1434 = vlaneseq
    %v1435 = vshrl.u32 %v1434, 7
    %v1436 = vsub.s32 %v1433, %v1435
    %v1437 = vrot.slane %v1422, %v1436
    %1438 = vrot.lane.b32.xlu0 %v1437, 32
    %v1439 = vpop.permute.xlu0 %1438
    %v1441 = vmul.f32 %v1428, %v1439
    %1443 = vrot.lane.b32.xlu0 %v1429, 64
    %v1444 = vpop.permute.xlu0 %1443
    %v1446 = vmul.f32 %v1428, %v1444
    %1448 = vrot.lane.b32.xlu0 %v1446, 32
    %v1449 = vpop.permute.xlu0 %1448
    %v1451 = vadd.f32 %v1441, %v1449
    %v1452 = vtanh.pop %v1451
    %1454 = vrot.lane.b32.xlu0 %v1452, 64
    %v1455 = vpop.permute.xlu0 %1454
    %v1457 = vmul.f32 %v1428, %v1455
    %v1460 = vunpack.c.l.s4 1983009808
    %v1461 = vunpack.c.0.s8 %v1460
    %v1462 = vlaneseq
    %v1463 = vshrl.u32 %v1462, 7
    %v1464 = vsub.s32 %v1461, %v1463
    %v1465 = vrot.slane %v1421, %v1464
    %1466 = vrot.lane.b32.xlu0 %v1465, 32
    %v1467 = vpop.permute.xlu0 %1466
    %1469 = vst.msk [vmem:[#allocation2] sm:$0x3] %vm352, %v1467
    %v1472 = vunpack.c.l.s4 1983009808
    %v1473 = vunpack.c.0.s8 %v1472
    %v1474 = vlaneseq
    %v1475 = vshrl.u32 %v1474, 7
    %v1476 = vsub.s32 %v1473, %v1475
    %v1477 = vrot.slane %v1457, %v1476
    %1478 = vrot.lane.b32.xlu0 %v1477, 32
    %v1479 = vpop.permute.xlu0 %1478
    %1481 = vst.msk [vmem:[#allocation2 + $0x2] sm:$0x3] %vm352, %v1479
    %v1484 = vunpack.c.l.s4 1983009808
    %v1485 = vunpack.c.0.s8 %v1484
    %v1486 = vlaneseq
    %v1487 = vshrl.u32 %v1486, 7
    %v1488 = vsub.s32 %v1485, %v1487
    %v1489 = vrot.slane %v1415, %v1488
    %1490 = vrot.lane.b32.xlu0 %v1489, 96
    %v1491 = vpop.permute.xlu0 %1490
    %1493 = vst.msk [vmem:[#allocation3] sm:$0x3] %vm352, %v1491
    %v1496 = vunpack.c.l.s4 1983009808
    %v1497 = vunpack.c.0.s8 %v1496
    %v1498 = vlaneseq
    %v1499 = vshrl.u32 %v1498, 7
    %v1500 = vsub.s32 %v1497, %v1499
    %v1501 = vrot.slane %v1451, %v1500
    %1502 = vrot.lane.b32.xlu0 %v1501, 96
    %v1503 = vpop.permute.xlu0 %1502
    %1505 = vst.msk [vmem:[#allocation3 + $0x2] sm:$0x3] %vm352, %v1503
    %v1506 = vpack.c.bf16 %v1421, %v1421
    %v1507 = vpack.c.bf16 %v1457, %v1457
    %v1508 = vld [vmem:[#allocation2] sm:$0xf]
    %v1509 = vpack.c.bf16 %v1508, %v1508
    %v1511 = vsel %vm207, %v1509, 0
    %1513 = vmatprep.subr.bf16.mxu0 %v200
    %1514 = vmatpush1.bf16.msra.mxu0 %v199
    %1515 = vmatprep.subr.bf16.mxu0 %v202
    %1516 = vmatpush1.bf16.msra.mxu0 %v201
    %1517 = vmatprep.subr.bf16.mxu0 0
    %1518 = vmatpush1.bf16.msra.mxu0 0
    %1519 = vmatprep.subr.bf16.mxu0 0
    %1520 = vmatpush1.bf16.msra.mxu0 0
    %1521 = vmatprep.subr.bf16.mxu0 0
    %1522 = vmatpush1.bf16.msra.mxu0 0
    %1523 = vmatprep.subr.bf16.mxu0 0
    %1524 = vmatpush1.bf16.msra.mxu0 0
    %1525 = vmatprep.subr.bf16.mxu0 0
    %1526 = vmatpush1.bf16.msra.mxu0 0
    %1527 = vmatprep.subr.bf16.mxu0 0
    %1528 = vmatpush1.bf16.msra.mxu0 0
    %1529 = vmatprep.subr.bf16.mxu0 0
    %1530 = vmatpush1.bf16.msra.mxu0 0
    %1531 = vmatprep.subr.bf16.mxu0 0
    %1532 = vmatpush1.bf16.msra.mxu0 0
    %1533 = vmatprep.subr.bf16.mxu0 0
    %1534 = vmatpush1.bf16.msra.mxu0 0
    %1535 = vmatprep.subr.bf16.mxu0 0
    %1536 = vmatpush1.bf16.msra.mxu0 0
    %1537 = vmatprep.subr.bf16.mxu0 0
    %1538 = vmatpush1.bf16.msra.mxu0 0
    %1539 = vmatprep.subr.bf16.mxu0 0
    %1540 = vmatpush1.bf16.msra.mxu0 0
    %1541 = vmatprep.subr.bf16.mxu0 0
    %1542 = vmatpush1.bf16.msra.mxu0 0
    %1543 = vmatprep.subr.bf16.mxu0 0
    %1544 = vmatpush1.bf16.msra.mxu0 0
    %1545 = vmatprep.mubr.bf16.mxu0 0
    %1546 = vmatmul.mubr.bf16.gmra.mrb[0].mxu0 %v1511
    %v1547 = vpop.f32.mrb[0].mxu0
    %v1548 = vadd.f32 0.0, %v1547
    %v1549 = vpop.f32.mrb[0].mxu0
    %v1550 = vadd.f32 0.0, %v1549
    %v1551 = vpop.f32.mrb[0].mxu0
    %v1552 = vpop.f32.mrb[0].mxu0
    %1553 = vdwg.mxu0
    %s1554 = scalar_lea.vmem [#allocation4], 7
    %v1555 = vld [vmem:[%s1554] sm:$0x1]
    %v1556 = vunpack.c.l.bf16 %v1555
    %v1557 = vadd.f32 %v1556, %v1548
    %v1558 = vld [vmem:[#allocation5] sm:$0x1]
    %v1559 = vunpack.c.l.bf16 %v1558
    %v1562 = vunpack.c.l.s4 1983009808
    %v1563 = vunpack.c.0.s8 %v1562
    %v1564 = vlaneseq
    %v1565 = vshrl.u32 %v1564, 7
    %v1566 = vsub.s32 %v1563, %v1565
    %v1567 = vrot.slane %v1550, %v1566
    %v1568 = vcombine.high %v1567, %v1567
    %v1570 = vadd.f32 %v1559, %v1568
    %v1571 = vld [vmem:[#allocation3] sm:$0x3]
    %v1572 = vxor.u32 %v1557, 2147483648
    %v1573 = vmul.f32 %v1572, 1.442695
    %v1574 = vpow.pop %v1573
    %v1575 = vadd.f32 %v1574, 1.0
    %v1576 = vrcp.pop %v1575
    %v1577 = vmul.f32 1.0, %v1576
    %v1578 = vtanh.pop %v1557
    %v1581 = vunpack.c.l.s4 1983009808
    %v1582 = vunpack.c.0.s8 %v1581
    %v1583 = vlaneseq
    %v1584 = vshrl.u32 %v1583, 7
    %v1585 = vsub.s32 %v1582, %v1584
    %v1586 = vrot.slane %v1571, %v1585
    %1587 = vrot.lane.b32.xlu0 %v1586, 32
    %v1588 = vpop.permute.xlu0 %1587
    %v1590 = vmul.f32 %v1577, %v1588
    %1592 = vrot.lane.b32.xlu0 %v1578, 64
    %v1593 = vpop.permute.xlu0 %1592
    %v1595 = vmul.f32 %v1577, %v1593
    %1597 = vrot.lane.b32.xlu0 %v1595, 32
    %v1598 = vpop.permute.xlu0 %1597
    %v1600 = vadd.f32 %v1590, %v1598
    %v1601 = vtanh.pop %v1600
    %1603 = vrot.lane.b32.xlu0 %v1601, 64
    %v1604 = vpop.permute.xlu0 %1603
    %v1606 = vmul.f32 %v1577, %v1604
    %v1607 = vld [vmem:[#allocation3 + $0x2] sm:$0x3]
    %v1608 = vxor.u32 %v1570, 2147483648
    %v1609 = vmul.f32 %v1608, 1.442695
    %v1610 = vpow.pop %v1609
    %v1611 = vadd.f32 %v1610, 1.0
    %v1612 = vrcp.pop %v1611
    %v1613 = vmul.f32 1.0, %v1612
    %v1614 = vtanh.pop %v1570
    %v1617 = vunpack.c.l.s4 1983009808
    %v1618 = vunpack.c.0.s8 %v1617
    %v1619 = vlaneseq
    %v1620 = vshrl.u32 %v1619, 7
    %v1621 = vsub.s32 %v1618, %v1620
    %v1622 = vrot.slane %v1607, %v1621
    %1623 = vrot.lane.b32.xlu0 %v1622, 32
    %v1624 = vpop.permute.xlu0 %1623
    %v1626 = vmul.f32 %v1613, %v1624
    %1628 = vrot.lane.b32.xlu0 %v1614, 64
    %v1629 = vpop.permute.xlu0 %1628
    %v1631 = vmul.f32 %v1613, %v1629
    %1633 = vrot.lane.b32.xlu0 %v1631, 32
    %v1634 = vpop.permute.xlu0 %1633
    %v1636 = vadd.f32 %v1626, %v1634
    %v1637 = vtanh.pop %v1636
    %1639 = vrot.lane.b32.xlu0 %v1637, 64
    %v1640 = vpop.permute.xlu0 %1639
    %v1642 = vmul.f32 %v1613, %v1640
    %v1645 = vunpack.c.l.s4 1983009808
    %v1646 = vunpack.c.0.s8 %v1645
    %v1647 = vlaneseq
    %v1648 = vshrl.u32 %v1647, 7
    %v1649 = vsub.s32 %v1646, %v1648
    %v1650 = vrot.slane %v1606, %v1649
    %1651 = vrot.lane.b32.xlu0 %v1650, 32
    %v1652 = vpop.permute.xlu0 %1651
    %1654 = vst.msk [vmem:[#allocation2] sm:$0x3] %vm352, %v1652
    %v1657 = vunpack.c.l.s4 1983009808
    %v1658 = vunpack.c.0.s8 %v1657
    %v1659 = vlaneseq
    %v1660 = vshrl.u32 %v1659, 7
    %v1661 = vsub.s32 %v1658, %v1660
    %v1662 = vrot.slane %v1642, %v1661
    %1663 = vrot.lane.b32.xlu0 %v1662, 32
    %v1664 = vpop.permute.xlu0 %1663
    %1666 = vst.msk [vmem:[#allocation2 + $0x2] sm:$0x3] %vm352, %v1664
    %v1669 = vunpack.c.l.s4 1983009808
    %v1670 = vunpack.c.0.s8 %v1669
    %v1671 = vlaneseq
    %v1672 = vshrl.u32 %v1671, 7
    %v1673 = vsub.s32 %v1670, %v1672
    %v1674 = vrot.slane %v1600, %v1673
    %1675 = vrot.lane.b32.xlu0 %v1674, 96
    %v1676 = vpop.permute.xlu0 %1675
    %1678 = vst.msk [vmem:[#allocation3] sm:$0x3] %vm352, %v1676
    %v1681 = vunpack.c.l.s4 1983009808
    %v1682 = vunpack.c.0.s8 %v1681
    %v1683 = vlaneseq
    %v1684 = vshrl.u32 %v1683, 7
    %v1685 = vsub.s32 %v1682, %v1684
    %v1686 = vrot.slane %v1636, %v1685
    %1687 = vrot.lane.b32.xlu0 %v1686, 96
    %v1688 = vpop.permute.xlu0 %1687
    %1690 = vst.msk [vmem:[#allocation3 + $0x2] sm:$0x3] %vm352, %v1688
    %v1691 = vpack.c.bf16 %v1606, %v1606
    %v1692 = vpack.c.bf16 %v1642, %v1642
    %v1702 = vunpack.c.l.s4 1966171168
    %v1703 = vunpack.c.0.s8 %v1702
    %v1704 = vlaneseq
    %v1705 = vshrl.u32 %v1704, 7
    %v1706 = vsub.s32 %v1703, %v1705
    %v1707 = vrot.slane %v390, %v1706
    %v1709 = vunpack.c.l.s4 1966171168
    %v1710 = vunpack.c.0.s8 %v1709
    %v1711 = vlaneseq
    %v1712 = vshrl.u32 %v1711, 7
    %v1713 = vsub.s32 %v1710, %v1712
    %v1714 = vrot.slane %v1707, %v1713
    %v1716 = vunpack.c.l.s4 1966171168
    %v1717 = vunpack.c.0.s8 %v1716
    %v1718 = vlaneseq
    %v1719 = vshrl.u32 %v1718, 7
    %v1720 = vsub.s32 %v1717, %v1719
    %v1721 = vrot.slane %v576, %v1720
    %v1723 = vunpack.c.l.s4 1966171168
    %v1724 = vunpack.c.0.s8 %v1723
    %v1725 = vlaneseq
    %v1726 = vshrl.u32 %v1725, 7
    %v1727 = vsub.s32 %v1724, %v1726
    %v1728 = vrot.slane %v1721, %v1727
    %v1730 = vunpack.c.l.s4 1966171168
    %v1731 = vunpack.c.0.s8 %v1730
    %v1732 = vlaneseq
    %v1733 = vshrl.u32 %v1732, 7
    %v1734 = vsub.s32 %v1731, %v1733
    %v1735 = vrot.slane %v762, %v1734
    %v1737 = vunpack.c.l.s4 1966171168
    %v1738 = vunpack.c.0.s8 %v1737
    %v1739 = vlaneseq
    %v1740 = vshrl.u32 %v1739, 7
    %v1741 = vsub.s32 %v1738, %v1740
    %v1742 = vrot.slane %v1735, %v1741
    %v1744 = vunpack.c.l.s4 1966171168
    %v1745 = vunpack.c.0.s8 %v1744
    %v1746 = vlaneseq
    %v1747 = vshrl.u32 %v1746, 7
    %v1748 = vsub.s32 %v1745, %v1747
    %v1749 = vrot.slane %v948, %v1748
    %v1751 = vunpack.c.l.s4 1966171168
    %v1752 = vunpack.c.0.s8 %v1751
    %v1753 = vlaneseq
    %v1754 = vshrl.u32 %v1753, 7
    %v1755 = vsub.s32 %v1752, %v1754
    %v1756 = vrot.slane %v1749, %v1755
    %v1758 = vunpack.c.l.s4 1966171168
    %v1759 = vunpack.c.0.s8 %v1758
    %v1760 = vlaneseq
    %v1761 = vshrl.u32 %v1760, 7
    %v1762 = vsub.s32 %v1759, %v1761
    %v1763 = vrot.slane %v1134, %v1762
    %v1765 = vunpack.c.l.s4 1966171168
    %v1766 = vunpack.c.0.s8 %v1765
    %v1767 = vlaneseq
    %v1768 = vshrl.u32 %v1767, 7
    %v1769 = vsub.s32 %v1766, %v1768
    %v1770 = vrot.slane %v1763, %v1769
    %v1772 = vunpack.c.l.s4 1966171168
    %v1773 = vunpack.c.0.s8 %v1772
    %v1774 = vlaneseq
    %v1775 = vshrl.u32 %v1774, 7
    %v1776 = vsub.s32 %v1773, %v1775
    %v1777 = vrot.slane %v1320, %v1776
    %v1779 = vunpack.c.l.s4 1966171168
    %v1780 = vunpack.c.0.s8 %v1779
    %v1781 = vlaneseq
    %v1782 = vshrl.u32 %v1781, 7
    %v1783 = vsub.s32 %v1780, %v1782
    %v1784 = vrot.slane %v1777, %v1783
    %v1786 = vunpack.c.l.s4 1966171168
    %v1787 = vunpack.c.0.s8 %v1786
    %v1788 = vlaneseq
    %v1789 = vshrl.u32 %v1788, 7
    %v1790 = vsub.s32 %v1787, %v1789
    %v1791 = vrot.slane %v1506, %v1790
    %v1793 = vunpack.c.l.s4 1966171168
    %v1794 = vunpack.c.0.s8 %v1793
    %v1795 = vlaneseq
    %v1796 = vshrl.u32 %v1795, 7
    %v1797 = vsub.s32 %v1794, %v1796
    %v1798 = vrot.slane %v1791, %v1797
    %v1800 = vunpack.c.l.s4 1966171168
    %v1801 = vunpack.c.0.s8 %v1800
    %v1802 = vlaneseq
    %v1803 = vshrl.u32 %v1802, 7
    %v1804 = vsub.s32 %v1801, %v1803
    %v1805 = vrot.slane %v1691, %v1804
    %v1807 = vunpack.c.l.s4 1966171168
    %v1808 = vunpack.c.0.s8 %v1807
    %v1809 = vlaneseq
    %v1810 = vshrl.u32 %v1809, 7
    %v1811 = vsub.s32 %v1808, %v1810
    %v1812 = vrot.slane %v1805, %v1811
    %1813 = vrot.lane.b32.xlu0 %v1714, 32
    %v1814 = vpop.permute.xlu0 %1813
    %1815 = vrot.lane.b32.xlu0 %v1728, 32
    %v1816 = vpop.permute.xlu0 %1815
    %1817 = vrot.lane.b32.xlu0 %v1742, 32
    %v1818 = vpop.permute.xlu0 %1817
    %1819 = vrot.lane.b32.xlu0 %v1756, 32
    %v1820 = vpop.permute.xlu0 %1819
    %1821 = vrot.lane.b32.xlu0 %v1770, 32
    %v1822 = vpop.permute.xlu0 %1821
    %1823 = vrot.lane.b32.xlu0 %v1784, 32
    %v1824 = vpop.permute.xlu0 %1823
    %1825 = vrot.lane.b32.xlu0 %v1798, 32
    %v1826 = vpop.permute.xlu0 %1825
    %1827 = vrot.lane.b32.xlu0 %v1812, 32
    %v1828 = vpop.permute.xlu0 %1827
    %vm1837 = vcmask 253952
    %1838 = vst.msk [vmem:[%s3] sm:$0x1] %vm1837, %v1814
    %1839 = vst.msk [vmem:[%s3 + $0x1] sm:$0x1] %vm1837, %v1816
    %1840 = vst.msk [vmem:[%s3 + $0x2] sm:$0x1] %vm1837, %v1818
    %1841 = vst.msk [vmem:[%s3 + $0x3] sm:$0x1] %vm1837, %v1820
    %1842 = vst.msk [vmem:[%s3 + $0x4] sm:$0x1] %vm1837, %v1822
    %1843 = vst.msk [vmem:[%s3 + $0x5] sm:$0x1] %vm1837, %v1824
    %1844 = vst.msk [vmem:[%s3 + $0x6] sm:$0x1] %vm1837, %v1826
    %1845 = vst.msk [vmem:[%s3 + $0x7] sm:$0x1] %vm1837, %v1828
    %v1855 = vunpack.c.l.s4 1966171168
    %v1856 = vunpack.c.0.s8 %v1855
    %v1857 = vlaneseq
    %v1858 = vshrl.u32 %v1857, 7
    %v1859 = vsub.s32 %v1856, %v1858
    %v1860 = vrot.slane %v1692, %v1859
    %v1862 = vunpack.c.l.s4 1966171168
    %v1863 = vunpack.c.0.s8 %v1862
    %v1864 = vlaneseq
    %v1865 = vshrl.u32 %v1864, 7
    %v1866 = vsub.s32 %v1863, %v1865
    %v1867 = vrot.slane %v1860, %v1866
    %v1869 = vunpack.c.l.s4 1966171168
    %v1870 = vunpack.c.0.s8 %v1869
    %v1871 = vlaneseq
    %v1872 = vshrl.u32 %v1871, 7
    %v1873 = vsub.s32 %v1870, %v1872
    %v1874 = vrot.slane %v1507, %v1873
    %v1876 = vunpack.c.l.s4 1966171168
    %v1877 = vunpack.c.0.s8 %v1876
    %v1878 = vlaneseq
    %v1879 = vshrl.u32 %v1878, 7
    %v1880 = vsub.s32 %v1877, %v1879
    %v1881 = vrot.slane %v1874, %v1880
    %v1883 = vunpack.c.l.s4 1966171168
    %v1884 = vunpack.c.0.s8 %v1883
    %v1885 = vlaneseq
    %v1886 = vshrl.u32 %v1885, 7
    %v1887 = vsub.s32 %v1884, %v1886
    %v1888 = vrot.slane %v1321, %v1887
    %v1890 = vunpack.c.l.s4 1966171168
    %v1891 = vunpack.c.0.s8 %v1890
    %v1892 = vlaneseq
    %v1893 = vshrl.u32 %v1892, 7
    %v1894 = vsub.s32 %v1891, %v1893
    %v1895 = vrot.slane %v1888, %v1894
    %v1897 = vunpack.c.l.s4 1966171168
    %v1898 = vunpack.c.0.s8 %v1897
    %v1899 = vlaneseq
    %v1900 = vshrl.u32 %v1899, 7
    %v1901 = vsub.s32 %v1898, %v1900
    %v1902 = vrot.slane %v1135, %v1901
    %v1904 = vunpack.c.l.s4 1966171168
    %v1905 = vunpack.c.0.s8 %v1904
    %v1906 = vlaneseq
    %v1907 = vshrl.u32 %v1906, 7
    %v1908 = vsub.s32 %v1905, %v1907
    %v1909 = vrot.slane %v1902, %v1908
    %v1911 = vunpack.c.l.s4 1966171168
    %v1912 = vunpack.c.0.s8 %v1911
    %v1913 = vlaneseq
    %v1914 = vshrl.u32 %v1913, 7
    %v1915 = vsub.s32 %v1912, %v1914
    %v1916 = vrot.slane %v949, %v1915
    %v1918 = vunpack.c.l.s4 1966171168
    %v1919 = vunpack.c.0.s8 %v1918
    %v1920 = vlaneseq
    %v1921 = vshrl.u32 %v1920, 7
    %v1922 = vsub.s32 %v1919, %v1921
    %v1923 = vrot.slane %v1916, %v1922
    %v1925 = vunpack.c.l.s4 1966171168
    %v1926 = vunpack.c.0.s8 %v1925
    %v1927 = vlaneseq
    %v1928 = vshrl.u32 %v1927, 7
    %v1929 = vsub.s32 %v1926, %v1928
    %v1930 = vrot.slane %v763, %v1929
    %v1932 = vunpack.c.l.s4 1966171168
    %v1933 = vunpack.c.0.s8 %v1932
    %v1934 = vlaneseq
    %v1935 = vshrl.u32 %v1934, 7
    %v1936 = vsub.s32 %v1933, %v1935
    %v1937 = vrot.slane %v1930, %v1936
    %v1939 = vunpack.c.l.s4 1966171168
    %v1940 = vunpack.c.0.s8 %v1939
    %v1941 = vlaneseq
    %v1942 = vshrl.u32 %v1941, 7
    %v1943 = vsub.s32 %v1940, %v1942
    %v1944 = vrot.slane %v577, %v1943
    %v1946 = vunpack.c.l.s4 1966171168
    %v1947 = vunpack.c.0.s8 %v1946
    %v1948 = vlaneseq
    %v1949 = vshrl.u32 %v1948, 7
    %v1950 = vsub.s32 %v1947, %v1949
    %v1951 = vrot.slane %v1944, %v1950
    %v1953 = vunpack.c.l.s4 1966171168
    %v1954 = vunpack.c.0.s8 %v1953
    %v1955 = vlaneseq
    %v1956 = vshrl.u32 %v1955, 7
    %v1957 = vsub.s32 %v1954, %v1956
    %v1958 = vrot.slane %v391, %v1957
    %v1960 = vunpack.c.l.s4 1966171168
    %v1961 = vunpack.c.0.s8 %v1960
    %v1962 = vlaneseq
    %v1963 = vshrl.u32 %v1962, 7
    %v1964 = vsub.s32 %v1961, %v1963
    %v1965 = vrot.slane %v1958, %v1964
    %1966 = vrot.lane.b32.xlu0 %v1867, 32
    %v1967 = vpop.permute.xlu0 %1966
    %1968 = vrot.lane.b32.xlu0 %v1881, 32
    %v1969 = vpop.permute.xlu0 %1968
    %1970 = vrot.lane.b32.xlu0 %v1895, 32
    %v1971 = vpop.permute.xlu0 %1970
    %1972 = vrot.lane.b32.xlu0 %v1909, 32
    %v1973 = vpop.permute.xlu0 %1972
    %1974 = vrot.lane.b32.xlu0 %v1923, 32
    %v1975 = vpop.permute.xlu0 %1974
    %1976 = vrot.lane.b32.xlu0 %v1937, 32
    %v1977 = vpop.permute.xlu0 %1976
    %1978 = vrot.lane.b32.xlu0 %v1951, 32
    %v1979 = vpop.permute.xlu0 %1978
    %1980 = vrot.lane.b32.xlu0 %v1965, 32
    %v1981 = vpop.permute.xlu0 %1980
    %1990 = vst.msk [vmem:[%s170] sm:$0x1] %vm1837, %v1967
    %1991 = vst.msk [vmem:[%s170 + $0x1] sm:$0x1] %vm1837, %v1969
    %1992 = vst.msk [vmem:[%s170 + $0x2] sm:$0x1] %vm1837, %v1971
    %1993 = vst.msk [vmem:[%s170 + $0x3] sm:$0x1] %vm1837, %v1973
    %1994 = vst.msk [vmem:[%s170 + $0x4] sm:$0x1] %vm1837, %v1975
    %1995 = vst.msk [vmem:[%s170 + $0x5] sm:$0x1] %vm1837, %v1977
    %1996 = vst.msk [vmem:[%s170 + $0x6] sm:$0x1] %vm1837, %v1979
    %1997 = vst.msk [vmem:[%s170 + $0x7] sm:$0x1] %vm1837, %v1981
    %s1998 = ssub.s32 0, 0
    %s1999 = smul.u32 8, %s1998
    %p2000 = scmp.lt.s32.totalorder %s1999, 7
    %s2001 = scalar_select %p2000, %s1999, 7
    %s2002 = scalar_lea.vmem %s4, %s2001
    // Predicated region
    $region100: #{transcription_model_forward.6} parent=1 // pred_check
      _
    $region101: #{transcription_model_forward.6} parent=1 // pred_check_branch
      %2004 = sbr.rel (0) target = $region103
    $region102: #{transcription_model_forward.6} parent=1 // pred_region
      _
    $region103: #{transcription_model_forward.6} parent=1 // pred_fallthru
      _
    // Predicated region
    $region104: #{transcription_model_forward.6} parent=1 // pred_check
      _
    $region105: #{transcription_model_forward.6} parent=1 // pred_check_branch
      %2006 = sbr.rel (0) target = $region107
    $region106: #{transcription_model_forward.6} parent=1 // pred_region
      %s2007 = ssub.s32 0, 0
      %s2008 = smul.u32 8, %s2007
    $region107: #{transcription_model_forward.6} parent=1 // pred_fallthru
      _
    // Predicated region
    $region108: #{transcription_model_forward.6} parent=1 // pred_check
      _
    $region109: #{transcription_model_forward.6} parent=1 // pred_check_branch
      %2010 = sbr.rel (0) target = $region111
    $region110: #{transcription_model_forward.6} parent=1 // pred_region
      _
    $region111: #{transcription_model_forward.6} parent=1 // pred_fallthru
      _
    // Predicated region
    $region112: #{transcription_model_forward.6} parent=1 // pred_check
      _
    $region113: #{transcription_model_forward.6} parent=1 // pred_check_branch
      %2012 = sbr.rel (0) target = $region115
    $region114: #{transcription_model_forward.6} parent=1 // pred_region
      %s2013 = ssub.s32 0, 0
      %s2014 = smul.u32 8, %s2013
      %p2015 = scmp.lt.s32.totalorder %s2014, 7
      %s2016 = scalar_select %p2015, %s2014, 7
      %s2017 = scalar_lea.vmem %s4, %s2016
    $region115: #{transcription_model_forward.6} parent=1 // pred_fallthru
      _

</llo_original>
